<compile_context>
chip_gen: v6e
topology: v6e:2x2x1
jax: 0.10.0
libtpu: 0.0.40
codegen_flags: <defaults>
</compile_context>

<pallas_src>
import jax
import jax.numpy as jnp
from jax.experimental import pallas as pl
from jax.experimental.pallas import tpu as pltpu


def _round_up(n, m=128):
    return ((n + m - 1) // m) * m


def _make_kernel(has_proj, W, Cp, Cop, TH, R):
    """Build the fused BasicBlock kernel for one (batch, row-block) grid step."""
    Wo = W
    KH = TH + 2  # conv1 rows produced per step (incl. 1-row halo for conv2)

    def kernel(x_ref, w1_ref, s1_ref, b1_ref, w2_ref, s2_ref, b2_ref, *rest):
        if has_proj:
            wsc_ref, ssc_ref, bsc_ref, o_ref, e1_scr = rest
        else:
            o_ref, e1_scr = rest

        r = pl.program_id(1)
        row0 = pl.multiple_of(r * TH, TH)

        # Input slab for this row block: (TH+4, W+2, Cp) bf16 (spatial halo incl).
        xb = x_ref[0, pl.ds(row0, TH + 4), :, :]

        # ---- conv1 (3x3, stride 1, pad 1): 3 matmuls with K = 3*Cp ----------
        # Concatenate the three dx taps on the channel (lane) axis once and
        # reuse the slab for every dy tap (row slices are cheap).
        xcat1 = jnp.concatenate(
            [jax.lax.slice(xb, (0, dx, 0), (TH + 4, dx + Wo, Cp))
             for dx in range(3)], axis=-1)                       # (TH+4, Wo, 3*Cp)
        acc1 = None
        for dy in range(3):
            xs = jax.lax.slice(xcat1, (dy, 0, 0), (dy + KH, Wo, 3 * Cp))
            xs = xs.reshape(KH * Wo, 3 * Cp)
            part = jnp.dot(xs, w1_ref[dy], preferred_element_type=jnp.float32)
            acc1 = part if acc1 is None else acc1 + part
        # bn1 (folded, f32) + relu, then one cast to bf16 for the conv2 input.
        e1 = jnp.maximum(acc1 * s1_ref[...] + b1_ref[...], 0.0)  # (KH*Wo, Cop) f32
        e1_bf = e1.astype(jnp.bfloat16).reshape(KH, Wo, Cop)

        # ---- stage conv1 output (+ halo rows) into a W-padded bf16 scratch --
        # Only the two halo columns are zeroed each step; the top/bottom image
        # edge rows are zeroed only on the edge row-blocks (conv2 zero padding).
        e1_scr[:, 1:Wo + 1, :] = e1_bf
        e1_scr[:, 0:1, :] = jnp.zeros((KH, 1, Cop), jnp.bfloat16)
        e1_scr[:, Wo + 1:Wo + 2, :] = jnp.zeros((KH, 1, Cop), jnp.bfloat16)

        @pl.when(r == 0)
        def _():
            e1_scr[0, :, :] = jnp.zeros((Wo + 2, Cop), jnp.bfloat16)

        @pl.when(r == R - 1)
        def _():
            e1_scr[KH - 1, :, :] = jnp.zeros((Wo + 2, Cop), jnp.bfloat16)

        xp = e1_scr[...]                                         # (KH, Wo+2, Cop) bf16

        # ---- conv2 (3x3, stride 1, pad 1): 3 matmuls with K = 3*Cop ---------
        xcat2 = jnp.concatenate(
            [jax.lax.slice(xp, (0, dx, 0), (KH, dx + Wo, Cop))
             for dx in range(3)], axis=-1)                       # (KH, Wo, 3*Cop)
        acc2 = None
        for dy in range(3):
            xs = jax.lax.slice(xcat2, (dy, 0, 0), (dy + TH, Wo, 3 * Cop))
            xs = xs.reshape(TH * Wo, 3 * Cop)
            part = jnp.dot(xs, w2_ref[dy], preferred_element_type=jnp.float32)
            acc2 = part if acc2 is None else acc2 + part
        out2 = acc2 * s2_ref[...] + b2_ref[...]                  # bn2 (folded), f32

        # ---- shortcut + residual add + final relu ---------------------------
        xc = jax.lax.slice(xb, (2, 1, 0), (TH + 2, Wo + 1, Cp)).reshape(TH * Wo, Cp)
        if has_proj:
            sc = jnp.dot(xc, wsc_ref[...], preferred_element_type=jnp.float32)
            sc = sc * ssc_ref[...] + bsc_ref[...]
        else:
            sc = xc.astype(jnp.float32)

        o_ref[0] = jnp.maximum(out2 + sc, 0.0).reshape(TH, Wo, Cop)

    return kernel


def _fold_bn(bn, cop, eps=1e-5):
    """Fold BatchNorm running stats into per-channel scale/bias, padded to cop."""
    scale = bn["gamma"] / jnp.sqrt(bn["var"] + eps)
    bias = bn["beta"] - bn["mean"] * scale
    c = scale.shape[0]
    s = jnp.zeros((1, cop), jnp.float32).at[0, :c].set(scale.astype(jnp.float32))
    b = jnp.zeros((1, cop), jnp.float32).at[0, :c].set(bias.astype(jnp.float32))
    return s, b


def _pad_conv3(w, cp, cop):
    """(3,3,Cin,Cout) HWIO -> (3, 3*cp, cop) bf16, rows ordered (dx, cin)."""
    ci, co = w.shape[2], w.shape[3]
    wp = jnp.zeros((3, 3, cp, cop), jnp.float32).at[:, :, :ci, :co].set(
        w.astype(jnp.float32))
    return wp.reshape(3, 3 * cp, cop).astype(jnp.bfloat16)


def basic_block_forward(x_nchw, params, stride=1):
    """Fused BasicBlock forward.  x_nchw: (N, Cin, H, W) f32.  Returns NCHW f32."""
    if stride != 1:
        # TODO(synk): strided 3x3 conv path not implemented in-kernel.
        raise NotImplementedError("stride != 1 is not supported by this kernel")

    N, Cin, H, W = x_nchw.shape
    Cout = params["w1"].shape[-1]
    has_proj = (stride != 1) or (Cin != Cout)
    Ho, Wo = H, W
    Cp, Cop = _round_up(Cin), _round_up(Cout)

    # Row-block height: largest divisor of Ho that is <= 8 (TH*Wo ~ one MXU M pass).
    TH = max(d for d in range(1, min(Ho, 8) + 1) if Ho % d == 0)
    R = Ho // TH

    # Single fused pass: NCHW -> NHWC, cast to bf16, +2-row / +1-col spatial halo,
    # channel pad to a 128-lane multiple.
    x = jnp.transpose(x_nchw, (0, 2, 3, 1)).astype(jnp.bfloat16)
    x = jnp.pad(x, ((0, 0), (2, 2), (1, 1), (0, Cp - Cin)))

    w1 = _pad_conv3(params["w1"], Cp, Cop)
    w2 = _pad_conv3(params["w2"], Cop, Cop)
    s1, b1 = _fold_bn(params["bn1"], Cop)
    s2, b2 = _fold_bn(params["bn2"], Cop)

    inputs = [x, w1, s1, b1, w2, s2, b2]
    in_specs = [
        pl.BlockSpec((1, H + 4, W + 2, Cp), lambda n, r: (n, 0, 0, 0)),
        pl.BlockSpec((3, 3 * Cp, Cop), lambda n, r: (0, 0, 0)),
        pl.BlockSpec((1, Cop), lambda n, r: (0, 0)),
        pl.BlockSpec((1, Cop), lambda n, r: (0, 0)),
        pl.BlockSpec((3, 3 * Cop, Cop), lambda n, r: (0, 0, 0)),
        pl.BlockSpec((1, Cop), lambda n, r: (0, 0)),
        pl.BlockSpec((1, Cop), lambda n, r: (0, 0)),
    ]
    if has_proj:
        wsc = jnp.zeros((Cp, Cop), jnp.float32).at[:Cin, :Cout].set(
            params["w_sc"].reshape(Cin, Cout).astype(jnp.float32)
        ).astype(jnp.bfloat16)
        ssc, bsc = _fold_bn(params["bn_sc"], Cop)
        inputs += [wsc, ssc, bsc]
        in_specs += [
            pl.BlockSpec((Cp, Cop), lambda n, r: (0, 0)),
            pl.BlockSpec((1, Cop), lambda n, r: (0, 0)),
            pl.BlockSpec((1, Cop), lambda n, r: (0, 0)),
        ]

    kernel = _make_kernel(has_proj, W, Cp, Cop, TH, R)

    out = pl.pallas_call(
        kernel,
        out_shape=jax.ShapeDtypeStruct((N, Ho, Wo, Cop), jnp.float32),
        grid=(N, R),
        in_specs=in_specs,
        out_specs=pl.BlockSpec((1, TH, Wo, Cop), lambda n, r: (n, r, 0, 0)),
        scratch_shapes=[pltpu.VMEM((TH + 2, Wo + 2, Cop), jnp.bfloat16)],
        compiler_params=pltpu.CompilerParams(
            dimension_semantics=("parallel", "parallel"),
            vmem_limit_bytes=32 * 1024 * 1024,   # headroom on v7x's 64 MiB VMEM
        ),
    )(*inputs)

    # Lane-dense kernel output -> drop channel padding, back to NCHW.
    return jnp.transpose(out[:, :, :, :Cout], (0, 3, 1, 2))


def init_params(key, in_planes, planes, stride=1):
    """Deterministic synthetic parameters (shapes match nn.Module __init__)."""
    ks = jax.random.split(key, 6)

    def bn_params(k):
        k1, k2, k3, k4 = jax.random.split(k, 4)
        return dict(
            gamma=jax.random.uniform(k1, (planes,), jnp.float32, 0.5, 1.5),
            beta=jax.random.normal(k2, (planes,), jnp.float32) * 0.1,
            mean=jax.random.normal(k3, (planes,), jnp.float32) * 0.1,
            var=jax.random.uniform(k4, (planes,), jnp.float32, 0.5, 1.5),
        )

    params = dict(
        w1=jax.random.normal(ks[0], (3, 3, in_planes, planes), jnp.float32) * 0.1,
        bn1=bn_params(ks[1]),
        w2=jax.random.normal(ks[2], (3, 3, planes, planes), jnp.float32) * 0.1,
        bn2=bn_params(ks[3]),
    )
    if stride != 1 or in_planes != planes:
        params["w_sc"] = (
            jax.random.normal(ks[4], (1, 1, in_planes, planes), jnp.float32) * 0.1)
        params["bn_sc"] = bn_params(ks[5])
    return params


def _ref_forward(x_nchw, params, stride=1, quantized=False):
    """Pure-JAX reference.  quantized=True mimics the kernel's bf16 matmul inputs
    (f32 accumulation), giving a precision-matched reference."""
    q = (lambda a: a.astype(jnp.bfloat16)) if quantized else (lambda a: a.astype(jnp.float32))
    x = jnp.transpose(x_nchw, (0, 2, 3, 1)).astype(jnp.float32)

    def conv(v, w, s, pad):
        return jax.lax.conv_general_dilated(
            q(v), q(w), (s, s), pad,
            dimension_numbers=("NHWC", "HWIO", "NHWC"),
            preferred_element_type=jnp.float32)

    def bn(v, p):
        scale = p["gamma"] / jnp.sqrt(p["var"] + 1e-5)
        return v * scale + (p["beta"] - p["mean"] * scale)

    out = jax.nn.relu(bn(conv(x, params["w1"], stride, ((1, 1), (1, 1))), params["bn1"]))
    out = bn(conv(out, params["w2"], 1, ((1, 1), (1, 1))), params["bn2"])
    if "w_sc" in params:
        sc = bn(conv(x, params["w_sc"], stride, ((0, 0), (0, 0))), params["bn_sc"])
    else:
        sc = q(x).astype(jnp.float32)
    return jnp.transpose(jax.nn.relu(out + sc), (0, 3, 1, 2))


if __name__ == "__main__":
    key = jax.random.PRNGKey(0)
    kx1, kx2, kp1, kp2 = jax.random.split(key, 4)

    fwd = jax.jit(basic_block_forward, static_argnames=("stride",))

    # Config 1: identity shortcut (in_planes == planes, stride 1).
    x1 = jax.random.normal(kx1, (2, 8, 16, 16), jnp.float32)        # NCHW
    p1 = init_params(kp1, in_planes=8, planes=8, stride=1)
    y1 = jax.block_until_ready(fwd(x1, p1, stride=1))
    assert y1.shape == (2, 8, 16, 16)
    rq1 = _ref_forward(x1, p1, stride=1, quantized=True)
    rf1 = _ref_forward(x1, p1, stride=1, quantized=False)
    assert jnp.allclose(y1, rq1, atol=5e-3, rtol=5e-3), float(jnp.max(jnp.abs(y1 - rq1)))
    assert jnp.allclose(y1, rf1, atol=1e-1, rtol=1e-1), float(jnp.max(jnp.abs(y1 - rf1)))

    # Config 2: projection shortcut (channel expansion 4 -> 8, stride 1).
    x2 = jax.random.normal(kx2, (2, 4, 16, 16), jnp.float32)        # NCHW
    p2 = init_params(kp2, in_planes=4, planes=8, stride=1)
    y2 = jax.block_until_ready(fwd(x2, p2, stride=1))
    assert y2.shape == (2, 8, 16, 16)
    rq2 = _ref_forward(x2, p2, stride=1, quantized=True)
    rf2 = _ref_forward(x2, p2, stride=1, quantized=False)
    assert jnp.allclose(y2, rq2, atol=5e-3, rtol=5e-3), float(jnp.max(jnp.abs(y2 - rq2)))
    assert jnp.allclose(y2, rf2, atol=1e-1, rtol=1e-1), float(jnp.max(jnp.abs(y2 - rf2)))

    print("KERNEL_OK")
</pallas_src>

<mosaic_0001>
module attributes {stable_mosaic.version = 11 : i64} {
  func.func @kernel(%arg0: i32, %arg1: i32, %arg2: memref<1x20x18x128xbf16, #tpu.memory_space<vmem>>, %arg3: memref<3x384x128xbf16, #tpu.memory_space<vmem>>, %arg4: memref<1x128xf32, #tpu.memory_space<vmem>>, %arg5: memref<1x128xf32, #tpu.memory_space<vmem>>, %arg6: memref<3x384x128xbf16, #tpu.memory_space<vmem>>, %arg7: memref<1x128xf32, #tpu.memory_space<vmem>>, %arg8: memref<1x128xf32, #tpu.memory_space<vmem>>, %arg9: memref<1x8x16x128xf32, #tpu.memory_space<vmem>>, %arg10: memref<10x18x128xbf16, #tpu.memory_space<vmem>>) attributes {dimension_semantics = [#tpu.dimension_semantics<parallel>, #tpu.dimension_semantics<parallel>], iteration_bounds = array<i64: 2, 2>, scalar_prefetch = 0 : i64, scratch_operands = 1 : i64, tpu.core_type = #tpu.core_type<tc>, window_params = [{transform_indices = @transform_0, window_bounds = array<i64: 1, 20, 18, 128>}, {pipeline_mode = #tpu.pipeline_mode<synchronous>, transform_indices = @transform_1, window_bounds = array<i64: 3, 384, 128>}, {pipeline_mode = #tpu.pipeline_mode<synchronous>, transform_indices = @transform_2, window_bounds = array<i64: 1, 128>}, {pipeline_mode = #tpu.pipeline_mode<synchronous>, transform_indices = @transform_3, window_bounds = array<i64: 1, 128>}, {pipeline_mode = #tpu.pipeline_mode<synchronous>, transform_indices = @transform_4, window_bounds = array<i64: 3, 384, 128>}, {pipeline_mode = #tpu.pipeline_mode<synchronous>, transform_indices = @transform_5, window_bounds = array<i64: 1, 128>}, {pipeline_mode = #tpu.pipeline_mode<synchronous>, transform_indices = @transform_6, window_bounds = array<i64: 1, 128>}, {transform_indices = @transform_7, window_bounds = array<i64: 1, 8, 16, 128>}]} {
    %c8_i32 = arith.constant 8 : i32
    %0 = arith.muli %arg1, %c8_i32 : i32
    %1 = tpu.assume_multiple %0, 8 : i32
    %c0 = arith.constant 0 : index
    %2 = arith.index_cast %1 : i32 to index
    %c0_0 = arith.constant 0 : index
    %c0_1 = arith.constant 0 : index
    %3 = vector.load %arg2[%c0, %2, %c0_0, %c0_1] : memref<1x20x18x128xbf16, #tpu.memory_space<vmem>>, vector<1x12x18x128xbf16>
    %4 = vector.shape_cast %3 : vector<1x12x18x128xbf16> to vector<12x18x128xbf16>
    %5 = vector.extract_strided_slice %4 {offsets = [0, 0, 0], sizes = [12, 16, 128], strides = [1, 1, 1]} : vector<12x18x128xbf16> to vector<12x16x128xbf16>
    %6 = vector.extract_strided_slice %4 {offsets = [0, 1, 0], sizes = [12, 16, 128], strides = [1, 1, 1]} : vector<12x18x128xbf16> to vector<12x16x128xbf16>
    %7 = vector.extract_strided_slice %4 {offsets = [0, 2, 0], sizes = [12, 16, 128], strides = [1, 1, 1]} : vector<12x18x128xbf16> to vector<12x16x128xbf16>
    %8 = tpu.concatenate %5, %6, %7 in 2 : vector<12x16x128xbf16>, vector<12x16x128xbf16>, vector<12x16x128xbf16> -> vector<12x16x384xbf16>
    %9 = vector.extract_strided_slice %8 {offsets = [0, 0, 0], sizes = [10, 16, 384], strides = [1, 1, 1]} : vector<12x16x384xbf16> to vector<10x16x384xbf16>
    %10 = vector.shape_cast %9 : vector<10x16x384xbf16> to vector<160x384xbf16>
    %c0_2 = arith.constant 0 : index
    %c0_3 = arith.constant 0 : index
    %c0_4 = arith.constant 0 : index
    %11 = vector.load %arg3[%c0_2, %c0_3, %c0_4] : memref<3x384x128xbf16, #tpu.memory_space<vmem>>, vector<1x384x128xbf16>
    %12 = vector.shape_cast %11 : vector<1x384x128xbf16> to vector<384x128xbf16>
    %cst = arith.constant dense<0.000000e+00> : vector<160x128xf32>
    %13 = tpu.matmul %10, %12, %cst {dimension_numbers = #tpu.dot_dimension_numbers<[1], [0], [0], [1], [0, 0, 1, 1], [], []>} : vector<160x384xbf16>, vector<384x128xbf16>, vector<160x128xf32> -> vector<160x128xf32>
    %14 = vector.extract_strided_slice %8 {offsets = [1, 0, 0], sizes = [10, 16, 384], strides = [1, 1, 1]} : vector<12x16x384xbf16> to vector<10x16x384xbf16>
    %15 = vector.shape_cast %14 : vector<10x16x384xbf16> to vector<160x384xbf16>
    %c1 = arith.constant 1 : index
    %c0_5 = arith.constant 0 : index
    %c0_6 = arith.constant 0 : index
    %16 = vector.load %arg3[%c1, %c0_5, %c0_6] : memref<3x384x128xbf16, #tpu.memory_space<vmem>>, vector<1x384x128xbf16>
    %17 = vector.shape_cast %16 : vector<1x384x128xbf16> to vector<384x128xbf16>
    %cst_7 = arith.constant dense<0.000000e+00> : vector<160x128xf32>
    %18 = tpu.matmul %15, %17, %cst_7 {dimension_numbers = #tpu.dot_dimension_numbers<[1], [0], [0], [1], [0, 0, 1, 1], [], []>} : vector<160x384xbf16>, vector<384x128xbf16>, vector<160x128xf32> -> vector<160x128xf32>
    %19 = arith.addf %13, %18 : vector<160x128xf32>
    %20 = vector.extract_strided_slice %8 {offsets = [2, 0, 0], sizes = [10, 16, 384], strides = [1, 1, 1]} : vector<12x16x384xbf16> to vector<10x16x384xbf16>
    %21 = vector.shape_cast %20 : vector<10x16x384xbf16> to vector<160x384xbf16>
    %c2 = arith.constant 2 : index
    %c0_8 = arith.constant 0 : index
    %c0_9 = arith.constant 0 : index
    %22 = vector.load %arg3[%c2, %c0_8, %c0_9] : memref<3x384x128xbf16, #tpu.memory_space<vmem>>, vector<1x384x128xbf16>
    %23 = vector.shape_cast %22 : vector<1x384x128xbf16> to vector<384x128xbf16>
    %cst_10 = arith.constant dense<0.000000e+00> : vector<160x128xf32>
    %24 = tpu.matmul %21, %23, %cst_10 {dimension_numbers = #tpu.dot_dimension_numbers<[1], [0], [0], [1], [0, 0, 1, 1], [], []>} : vector<160x384xbf16>, vector<384x128xbf16>, vector<160x128xf32> -> vector<160x128xf32>
    %25 = arith.addf %19, %24 : vector<160x128xf32>
    %c0_11 = arith.constant 0 : index
    %c0_12 = arith.constant 0 : index
    %26 = vector.load %arg4[%c0_11, %c0_12] : memref<1x128xf32, #tpu.memory_space<vmem>>, vector<1x128xf32>
    %27 = vector.broadcast %26 : vector<1x128xf32> to vector<160x128xf32>
    %28 = arith.mulf %25, %27 : vector<160x128xf32>
    %c0_13 = arith.constant 0 : index
    %c0_14 = arith.constant 0 : index
    %29 = vector.load %arg5[%c0_13, %c0_14] : memref<1x128xf32, #tpu.memory_space<vmem>>, vector<1x128xf32>
    %30 = vector.broadcast %29 : vector<1x128xf32> to vector<160x128xf32>
    %31 = arith.addf %28, %30 : vector<160x128xf32>
    %cst_15 = arith.constant 0.000000e+00 : f32
    %32 = vector.broadcast %cst_15 : f32 to vector<160x128xf32>
    %33 = arith.maximumf %31, %32 : vector<160x128xf32>
    %34 = arith.truncf %33 : vector<160x128xf32> to vector<160x128xbf16>
    %35 = vector.shape_cast %34 : vector<160x128xbf16> to vector<10x16x128xbf16>
    %c0_16 = arith.constant 0 : index
    %c1_17 = arith.constant 1 : index
    %c0_18 = arith.constant 0 : index
    %36 = vector.load %arg10[%c0_16, %c1_17, %c0_18] : memref<10x18x128xbf16, #tpu.memory_space<vmem>>, vector<10x16x128xbf16>
    tpu.vector_store %arg10[%c0_16, %c1_17, %c0_18], %35 {strides = array<i32>} : memref<10x18x128xbf16, #tpu.memory_space<vmem>>, vector<10x16x128xbf16>,
    %cst_19 = arith.constant 0.000000e+00 : bf16
    %37 = vector.broadcast %cst_19 : bf16 to vector<10x1x128xbf16>
    %c0_20 = arith.constant 0 : index
    %c0_21 = arith.constant 0 : index
    %c0_22 = arith.constant 0 : index
    %38 = vector.load %arg10[%c0_20, %c0_21, %c0_22] : memref<10x18x128xbf16, #tpu.memory_space<vmem>>, vector<10x1x128xbf16>
    tpu.vector_store %arg10[%c0_20, %c0_21, %c0_22], %37 {strides = array<i32>} : memref<10x18x128xbf16, #tpu.memory_space<vmem>>, vector<10x1x128xbf16>,
    %cst_23 = arith.constant 0.000000e+00 : bf16
    %39 = vector.broadcast %cst_23 : bf16 to vector<10x1x128xbf16>
    %c0_24 = arith.constant 0 : index
    %c17 = arith.constant 17 : index
    %c0_25 = arith.constant 0 : index
    %40 = vector.load %arg10[%c0_24, %c17, %c0_25] : memref<10x18x128xbf16, #tpu.memory_space<vmem>>, vector<10x1x128xbf16>
    tpu.vector_store %arg10[%c0_24, %c17, %c0_25], %39 {strides = array<i32>} : memref<10x18x128xbf16, #tpu.memory_space<vmem>>, vector<10x1x128xbf16>,
    %c0_i32 = arith.constant 0 : i32
    %41 = arith.cmpi eq, %arg1, %c0_i32 : i32
    %42 = arith.extui %41 : i1 to i32
    %c0_i32_26 = arith.constant 0 : i32
    %43 = arith.cmpi ne, %42, %c0_i32_26 : i32
    scf.if %43 {
      %cst_52 = arith.constant 0.000000e+00 : bf16
      %85 = vector.broadcast %cst_52 : bf16 to vector<18x128xbf16>
      %c0_53 = arith.constant 0 : index
      %c0_54 = arith.constant 0 : index
      %c0_55 = arith.constant 0 : index
      %86 = vector.load %arg10[%c0_53, %c0_54, %c0_55] : memref<10x18x128xbf16, #tpu.memory_space<vmem>>, vector<1x18x128xbf16>
      %87 = vector.shape_cast %86 : vector<1x18x128xbf16> to vector<18x128xbf16>
      %88 = vector.shape_cast %85 : vector<18x128xbf16> to vector<1x18x128xbf16>
      tpu.vector_store %arg10[%c0_53, %c0_54, %c0_55], %88 {strides = array<i32>} : memref<10x18x128xbf16, #tpu.memory_space<vmem>>, vector<1x18x128xbf16>,
    } else {
    }
    %c1_i32 = arith.constant 1 : i32
    %44 = arith.cmpi eq, %arg1, %c1_i32 : i32
    %45 = arith.extui %44 : i1 to i32
    %c0_i32_27 = arith.constant 0 : i32
    %46 = arith.cmpi ne, %45, %c0_i32_27 : i32
    scf.if %46 {
      %cst_52 = arith.constant 0.000000e+00 : bf16
      %85 = vector.broadcast %cst_52 : bf16 to vector<18x128xbf16>
      %c9 = arith.constant 9 : index
      %c0_53 = arith.constant 0 : index
      %c0_54 = arith.constant 0 : index
      %86 = vector.load %arg10[%c9, %c0_53, %c0_54] : memref<10x18x128xbf16, #tpu.memory_space<vmem>>, vector<1x18x128xbf16>
      %87 = vector.shape_cast %86 : vector<1x18x128xbf16> to vector<18x128xbf16>
      %88 = vector.shape_cast %85 : vector<18x128xbf16> to vector<1x18x128xbf16>
      tpu.vector_store %arg10[%c9, %c0_53, %c0_54], %88 {strides = array<i32>} : memref<10x18x128xbf16, #tpu.memory_space<vmem>>, vector<1x18x128xbf16>,
    } else {
    }
    %c0_28 = arith.constant 0 : index
    %c0_29 = arith.constant 0 : index
    %c0_30 = arith.constant 0 : index
    %47 = vector.load %arg10[%c0_28, %c0_29, %c0_30] : memref<10x18x128xbf16, #tpu.memory_space<vmem>>, vector<10x18x128xbf16>
    %48 = vector.extract_strided_slice %47 {offsets = [0, 0, 0], sizes = [10, 16, 128], strides = [1, 1, 1]} : vector<10x18x128xbf16> to vector<10x16x128xbf16>
    %49 = vector.extract_strided_slice %47 {offsets = [0, 1, 0], sizes = [10, 16, 128], strides = [1, 1, 1]} : vector<10x18x128xbf16> to vector<10x16x128xbf16>
    %50 = vector.extract_strided_slice %47 {offsets = [0, 2, 0], sizes = [10, 16, 128], strides = [1, 1, 1]} : vector<10x18x128xbf16> to vector<10x16x128xbf16>
    %51 = tpu.concatenate %48, %49, %50 in 2 : vector<10x16x128xbf16>, vector<10x16x128xbf16>, vector<10x16x128xbf16> -> vector<10x16x384xbf16>
    %52 = vector.extract_strided_slice %51 {offsets = [0, 0, 0], sizes = [8, 16, 384], strides = [1, 1, 1]} : vector<10x16x384xbf16> to vector<8x16x384xbf16>
    %53 = vector.shape_cast %52 : vector<8x16x384xbf16> to vector<128x384xbf16>
    %c0_31 = arith.constant 0 : index
    %c0_32 = arith.constant 0 : index
    %c0_33 = arith.constant 0 : index
    %54 = vector.load %arg6[%c0_31, %c0_32, %c0_33] : memref<3x384x128xbf16, #tpu.memory_space<vmem>>, vector<1x384x128xbf16>
    %55 = vector.shape_cast %54 : vector<1x384x128xbf16> to vector<384x128xbf16>
    %cst_34 = arith.constant dense<0.000000e+00> : vector<128x128xf32>
    %56 = tpu.matmul %53, %55, %cst_34 {dimension_numbers = #tpu.dot_dimension_numbers<[1], [0], [0], [1], [0, 0, 1, 1], [], []>} : vector<128x384xbf16>, vector<384x128xbf16>, vector<128x128xf32> -> vector<128x128xf32>
    %57 = vector.extract_strided_slice %51 {offsets = [1, 0, 0], sizes = [8, 16, 384], strides = [1, 1, 1]} : vector<10x16x384xbf16> to vector<8x16x384xbf16>
    %58 = vector.shape_cast %57 : vector<8x16x384xbf16> to vector<128x384xbf16>
    %c1_35 = arith.constant 1 : index
    %c0_36 = arith.constant 0 : index
    %c0_37 = arith.constant 0 : index
    %59 = vector.load %arg6[%c1_35, %c0_36, %c0_37] : memref<3x384x128xbf16, #tpu.memory_space<vmem>>, vector<1x384x128xbf16>
    %60 = vector.shape_cast %59 : vector<1x384x128xbf16> to vector<384x128xbf16>
    %cst_38 = arith.constant dense<0.000000e+00> : vector<128x128xf32>
    %61 = tpu.matmul %58, %60, %cst_38 {dimension_numbers = #tpu.dot_dimension_numbers<[1], [0], [0], [1], [0, 0, 1, 1], [], []>} : vector<128x384xbf16>, vector<384x128xbf16>, vector<128x128xf32> -> vector<128x128xf32>
    %62 = arith.addf %56, %61 : vector<128x128xf32>
    %63 = vector.extract_strided_slice %51 {offsets = [2, 0, 0], sizes = [8, 16, 384], strides = [1, 1, 1]} : vector<10x16x384xbf16> to vector<8x16x384xbf16>
    %64 = vector.shape_cast %63 : vector<8x16x384xbf16> to vector<128x384xbf16>
    %c2_39 = arith.constant 2 : index
    %c0_40 = arith.constant 0 : index
    %c0_41 = arith.constant 0 : index
    %65 = vector.load %arg6[%c2_39, %c0_40, %c0_41] : memref<3x384x128xbf16, #tpu.memory_space<vmem>>, vector<1x384x128xbf16>
    %66 = vector.shape_cast %65 : vector<1x384x128xbf16> to vector<384x128xbf16>
    %cst_42 = arith.constant dense<0.000000e+00> : vector<128x128xf32>
    %67 = tpu.matmul %64, %66, %cst_42 {dimension_numbers = #tpu.dot_dimension_numbers<[1], [0], [0], [1], [0, 0, 1, 1], [], []>} : vector<128x384xbf16>, vector<384x128xbf16>, vector<128x128xf32> -> vector<128x128xf32>
    %68 = arith.addf %62, %67 : vector<128x128xf32>
    %c0_43 = arith.constant 0 : index
    %c0_44 = arith.constant 0 : index
    %69 = vector.load %arg7[%c0_43, %c0_44] : memref<1x128xf32, #tpu.memory_space<vmem>>, vector<1x128xf32>
    %70 = vector.broadcast %69 : vector<1x128xf32> to vector<128x128xf32>
    %71 = arith.mulf %68, %70 : vector<128x128xf32>
    %c0_45 = arith.constant 0 : index
    %c0_46 = arith.constant 0 : index
    %72 = vector.load %arg8[%c0_45, %c0_46] : memref<1x128xf32, #tpu.memory_space<vmem>>, vector<1x128xf32>
    %73 = vector.broadcast %72 : vector<1x128xf32> to vector<128x128xf32>
    %74 = arith.addf %71, %73 : vector<128x128xf32>
    %75 = vector.extract_strided_slice %4 {offsets = [2, 1, 0], sizes = [8, 16, 128], strides = [1, 1, 1]} : vector<12x18x128xbf16> to vector<8x16x128xbf16>
    %76 = vector.shape_cast %75 : vector<8x16x128xbf16> to vector<128x128xbf16>
    %77 = arith.extf %76 : vector<128x128xbf16> to vector<128x128xf32>
    %78 = arith.addf %74, %77 : vector<128x128xf32>
    %cst_47 = arith.constant 0.000000e+00 : f32
    %79 = vector.broadcast %cst_47 : f32 to vector<128x128xf32>
    %80 = arith.maximumf %78, %79 : vector<128x128xf32>
    %81 = vector.shape_cast %80 : vector<128x128xf32> to vector<8x16x128xf32>
    %c0_48 = arith.constant 0 : index
    %c0_49 = arith.constant 0 : index
    %c0_50 = arith.constant 0 : index
    %c0_51 = arith.constant 0 : index
    %82 = vector.load %arg9[%c0_48, %c0_49, %c0_50, %c0_51] : memref<1x8x16x128xf32, #tpu.memory_space<vmem>>, vector<1x8x16x128xf32>
    %83 = vector.shape_cast %82 : vector<1x8x16x128xf32> to vector<8x16x128xf32>
    %84 = vector.shape_cast %81 : vector<8x16x128xf32> to vector<1x8x16x128xf32>
    tpu.vector_store %arg9[%c0_48, %c0_49, %c0_50, %c0_51], %84 {strides = array<i32>} : memref<1x8x16x128xf32, #tpu.memory_space<vmem>>, vector<1x8x16x128xf32>,
    return
  }
  func.func @transform_0(%arg0: i32, %arg1: i32) -> (i32, i32, i32, i32) {
    %c0_i32 = arith.constant 0 : i32
    %c0_i32_0 = arith.constant 0 : i32
    %c0_i32_1 = arith.constant 0 : i32
    %c0_i32_2 = arith.constant 0 : i32
    return %arg0, %c0_i32, %c0_i32_0, %c0_i32_1 : i32, i32, i32, i32
  }
  func.func @transform_1(%arg0: i32, %arg1: i32) -> (i32, i32, i32) {
    %c0_i32 = arith.constant 0 : i32
    %c0_i32_0 = arith.constant 0 : i32
    %c0_i32_1 = arith.constant 0 : i32
    %c0_i32_2 = arith.constant 0 : i32
    return %c0_i32, %c0_i32_0, %c0_i32_1 : i32, i32, i32
  }
  func.func @transform_2(%arg0: i32, %arg1: i32) -> (i32, i32) {
    %c0_i32 = arith.constant 0 : i32
    %c0_i32_0 = arith.constant 0 : i32
    %c0_i32_1 = arith.constant 0 : i32
    return %c0_i32, %c0_i32_0 : i32, i32
  }
  func.func @transform_3(%arg0: i32, %arg1: i32) -> (i32, i32) {
    %c0_i32 = arith.constant 0 : i32
    %c0_i32_0 = arith.constant 0 : i32
    %c0_i32_1 = arith.constant 0 : i32
    return %c0_i32, %c0_i32_0 : i32, i32
  }
  func.func @transform_4(%arg0: i32, %arg1: i32) -> (i32, i32, i32) {
    %c0_i32 = arith.constant 0 : i32
    %c0_i32_0 = arith.constant 0 : i32
    %c0_i32_1 = arith.constant 0 : i32
    %c0_i32_2 = arith.constant 0 : i32
    return %c0_i32, %c0_i32_0, %c0_i32_1 : i32, i32, i32
  }
  func.func @transform_5(%arg0: i32, %arg1: i32) -> (i32, i32) {
    %c0_i32 = arith.constant 0 : i32
    %c0_i32_0 = arith.constant 0 : i32
    %c0_i32_1 = arith.constant 0 : i32
    return %c0_i32, %c0_i32_0 : i32, i32
  }
  func.func @transform_6(%arg0: i32, %arg1: i32) -> (i32, i32) {
    %c0_i32 = arith.constant 0 : i32
    %c0_i32_0 = arith.constant 0 : i32
    %c0_i32_1 = arith.constant 0 : i32
    return %c0_i32, %c0_i32_0 : i32, i32
  }
  func.func @transform_7(%arg0: i32, %arg1: i32) -> (i32, i32, i32, i32) {
    %c0_i32 = arith.constant 0 : i32
    %c0_i32_0 = arith.constant 0 : i32
    %c0_i32_1 = arith.constant 0 : i32
    return %arg0, %arg1, %c0_i32, %c0_i32_0 : i32, i32, i32, i32
  }
}

</mosaic_0001>

<llo_original>
// kernel: basic_block_forward.1
$region0: #{basic_block_forward.1}
  #allocation0 [shape = 'u32[]', space=smem, size = 0x4, offset = 0x4, fixed_abs, tag = 'smem constant byte address 0x4 - core index']
  #allocation1 [shape = 'u32[144,128]{1,0:T(1,128)}', space=vmem, size = 0x12000, scoped, tag = 'internal scratch']
  #allocation2 [shape = 'bf16[10,18,128]{2,1,0:T(8,128)(2,1)}', space=vmem, size = 0xf000, scoped, tag = 'scratch operand']
  %s0 = inlined_call_operand.vmem [shape: bf16[2,20,18,128], index: 0, kind: input, shape index: {}]
  %s1 = inlined_call_operand.vmem [shape: bf16[3,384,128], index: 1, kind: input, shape index: {}]
  %s2 = inlined_call_operand.vmem [shape: f32[1,128], index: 2, kind: input, shape index: {}]
  %s3 = inlined_call_operand.vmem [shape: f32[1,128], index: 3, kind: input, shape index: {}]
  %s4 = inlined_call_operand.vmem [shape: bf16[3,384,128], index: 4, kind: input, shape index: {}]
  %s5 = inlined_call_operand.vmem [shape: f32[1,128], index: 5, kind: input, shape index: {}]
  %s6 = inlined_call_operand.vmem [shape: f32[1,128], index: 6, kind: input, shape index: {}]
  %s7 = inlined_call_operand.vmem [shape: f32[2,16,16,128], index: 7, kind: output, shape index: {}]
  %s8 = sld [smem:[#allocation0]]
  $region69: #{basic_block_forward.1} parent=0
    _
  %s10 = ssub.s32 1, %s8
  %s11 = scalar_select 0, %s10, %s8
  loop: start=0, step=1, limit=6
  $region2: #{basic_block_forward.1} parent=0 // loop_pre_header
    _
  $region3: #{basic_block_forward.1} parent=0 // loop_header
    %s13 = sphi 0, %s17
    %p14 = scmp.ge.s32.totalorder %s13, 6
    %s20 = sphi 0, %s32
    %s21 = sphi 0, %s28
    %s22 = sphi 0, %s20
    %s23 = sphi 0, %s21
    %s24 = sphi 0, %s22
    %s25 = sphi 0, %s23
    %s35 = sphi 0, %s37
    %s38 = sphi 0, %s35
    %s39 = sphi 0, %s38
    %s55 = sphi 0, %s39
    %s59 = sphi 0, %s59
    %s61 = sphi 0, %s59
    %s62 = sphi 0, %s61
    %s76 = sphi 0, %s62
    %s80 = sphi 0, %s80
    %s82 = sphi 0, %s80
    %s83 = sphi 0, %s82
    %s97 = sphi 0, %s83
    %s101 = sphi 0, %s101
    %s103 = sphi 0, %s101
    %s104 = sphi 0, %s103
    %s118 = sphi 0, %s104
    %s122 = sphi 0, %s122
    %s124 = sphi 0, %s122
    %s125 = sphi 0, %s124
    %s139 = sphi 0, %s125
    %s143 = sphi 0, %s143
    %s145 = sphi 0, %s143
    %s146 = sphi 0, %s145
    %s160 = sphi 0, %s146
    %s164 = sphi 0, %s164
    %s166 = sphi 0, %s164
    %s167 = sphi 0, %s166
    %s181 = sphi 0, %s167
    %s189 = sphi 0, %s191
    %s192 = sphi 0, %s189
    %s193 = sphi 0, %s192
    %s209 = sphi 0, %s193
  $region4: #{basic_block_forward.1} parent=0 // loop_header_branch
    %16 = sbr.rel (%p14) target = $region8
  $region5: #{basic_block_forward.1} parent=0 // loop_body
    %s18 = ssub.s32 %s13, 1
    %s19 = ssub.s32 %s13, 2
    %s26 = sadd.s32 1, %s21
    %p27 = scmp.ge.s32.totalorder %s26, 2
    %s28 = scalar_select %p27, 0, %s26
    %s29 = sadd.s32 1, %s20
    %s30 = scalar_select %p27, %s29, %s20
    %p31 = scmp.ge.s32.totalorder %s30, 2
    %s32 = scalar_select %p31, 0, %s30
    %s33 = ssub.s32 %s20, %s32
    %p34 = scmp.eq.s32.totalorder %s33, 0
    %s36 = sadd.s32 %s35, 1
    %s37 = scalar_select %p34, %s35, %s36
    %p40 = pneg %p34
    %p41 = scmp.eq.s32.totalorder %s13, 3
    %p42 = por %p40, %p41
    %p43 = scmp.ne.s32.totalorder %s35, %s38
    %p44 = scmp.eq.s32.totalorder %s13, 0
    %p45 = por %p43, %p44
    %p46 = scmp.ne.s32.totalorder %s35, %s38
    %p47 = scmp.eq.s32.totalorder %s18, 3
    %p48 = por %p46, %p47
    %p49 = scmp.ne.s32.totalorder %s38, %s39
    %p50 = scmp.eq.s32.totalorder %s18, 0
    %p51 = por %p49, %p50
    %p52 = scmp.ne.s32.totalorder %s38, %s39
    %p53 = scmp.eq.s32.totalorder %s19, 3
    %p54 = por %p52, %p53
    %p56 = scmp.ne.s32.totalorder %s39, %s55
    %p57 = scmp.eq.s32.totalorder %s19, 0
    %p58 = por %p56, %p57
    %s60 = sadd.s32 %s59, 1
    %p63 = scmp.eq.s32.totalorder %s13, 3
    %p64 = scmp.ne.s32.totalorder %s59, %s61
    %p65 = scmp.eq.s32.totalorder %s13, 0
    %p66 = por %p64, %p65
    %p67 = scmp.ne.s32.totalorder %s59, %s61
    %p68 = scmp.eq.s32.totalorder %s18, 3
    %p69 = por %p67, %p68
    %p70 = scmp.ne.s32.totalorder %s61, %s62
    %p71 = scmp.eq.s32.totalorder %s18, 0
    %p72 = por %p70, %p71
    %p73 = scmp.ne.s32.totalorder %s61, %s62
    %p74 = scmp.eq.s32.totalorder %s19, 3
    %p75 = por %p73, %p74
    %p77 = scmp.ne.s32.totalorder %s62, %s76
    %p78 = scmp.eq.s32.totalorder %s19, 0
    %p79 = por %p77, %p78
    %s81 = sadd.s32 %s80, 1
    %p84 = scmp.eq.s32.totalorder %s13, 3
    %p85 = scmp.ne.s32.totalorder %s80, %s82
    %p86 = scmp.eq.s32.totalorder %s13, 0
    %p87 = por %p85, %p86
    %p88 = scmp.ne.s32.totalorder %s80, %s82
    %p89 = scmp.eq.s32.totalorder %s18, 3
    %p90 = por %p88, %p89
    %p91 = scmp.ne.s32.totalorder %s82, %s83
    %p92 = scmp.eq.s32.totalorder %s18, 0
    %p93 = por %p91, %p92
    %p94 = scmp.ne.s32.totalorder %s82, %s83
    %p95 = scmp.eq.s32.totalorder %s19, 3
    %p96 = por %p94, %p95
    %p98 = scmp.ne.s32.totalorder %s83, %s97
    %p99 = scmp.eq.s32.totalorder %s19, 0
    %p100 = por %p98, %p99
    %s102 = sadd.s32 %s101, 1
    %p105 = scmp.eq.s32.totalorder %s13, 3
    %p106 = scmp.ne.s32.totalorder %s101, %s103
    %p107 = scmp.eq.s32.totalorder %s13, 0
    %p108 = por %p106, %p107
    %p109 = scmp.ne.s32.totalorder %s101, %s103
    %p110 = scmp.eq.s32.totalorder %s18, 3
    %p111 = por %p109, %p110
    %p112 = scmp.ne.s32.totalorder %s103, %s104
    %p113 = scmp.eq.s32.totalorder %s18, 0
    %p114 = por %p112, %p113
    %p115 = scmp.ne.s32.totalorder %s103, %s104
    %p116 = scmp.eq.s32.totalorder %s19, 3
    %p117 = por %p115, %p116
    %p119 = scmp.ne.s32.totalorder %s104, %s118
    %p120 = scmp.eq.s32.totalorder %s19, 0
    %p121 = por %p119, %p120
    %s123 = sadd.s32 %s122, 1
    %p126 = scmp.eq.s32.totalorder %s13, 3
    %p127 = scmp.ne.s32.totalorder %s122, %s124
    %p128 = scmp.eq.s32.totalorder %s13, 0
    %p129 = por %p127, %p128
    %p130 = scmp.ne.s32.totalorder %s122, %s124
    %p131 = scmp.eq.s32.totalorder %s18, 3
    %p132 = por %p130, %p131
    %p133 = scmp.ne.s32.totalorder %s124, %s125
    %p134 = scmp.eq.s32.totalorder %s18, 0
    %p135 = por %p133, %p134
    %p136 = scmp.ne.s32.totalorder %s124, %s125
    %p137 = scmp.eq.s32.totalorder %s19, 3
    %p138 = por %p136, %p137
    %p140 = scmp.ne.s32.totalorder %s125, %s139
    %p141 = scmp.eq.s32.totalorder %s19, 0
    %p142 = por %p140, %p141
    %s144 = sadd.s32 %s143, 1
    %p147 = scmp.eq.s32.totalorder %s13, 3
    %p148 = scmp.ne.s32.totalorder %s143, %s145
    %p149 = scmp.eq.s32.totalorder %s13, 0
    %p150 = por %p148, %p149
    %p151 = scmp.ne.s32.totalorder %s143, %s145
    %p152 = scmp.eq.s32.totalorder %s18, 3
    %p153 = por %p151, %p152
    %p154 = scmp.ne.s32.totalorder %s145, %s146
    %p155 = scmp.eq.s32.totalorder %s18, 0
    %p156 = por %p154, %p155
    %p157 = scmp.ne.s32.totalorder %s145, %s146
    %p158 = scmp.eq.s32.totalorder %s19, 3
    %p159 = por %p157, %p158
    %p161 = scmp.ne.s32.totalorder %s146, %s160
    %p162 = scmp.eq.s32.totalorder %s19, 0
    %p163 = por %p161, %p162
    %s165 = sadd.s32 %s164, 1
    %p168 = scmp.eq.s32.totalorder %s13, 3
    %p169 = scmp.ne.s32.totalorder %s164, %s166
    %p170 = scmp.eq.s32.totalorder %s13, 0
    %p171 = por %p169, %p170
    %p172 = scmp.ne.s32.totalorder %s164, %s166
    %p173 = scmp.eq.s32.totalorder %s18, 3
    %p174 = por %p172, %p173
    %p175 = scmp.ne.s32.totalorder %s166, %s167
    %p176 = scmp.eq.s32.totalorder %s18, 0
    %p177 = por %p175, %p176
    %p178 = scmp.ne.s32.totalorder %s166, %s167
    %p179 = scmp.eq.s32.totalorder %s19, 3
    %p180 = por %p178, %p179
    %p182 = scmp.ne.s32.totalorder %s167, %s181
    %p183 = scmp.eq.s32.totalorder %s19, 0
    %p184 = por %p182, %p183
    %s185 = ssub.s32 %s20, %s32
    %s186 = ssub.s32 %s21, %s28
    %s187 = sor.u32 %s185, %s186
    %p188 = scmp.eq.s32.totalorder %s187, 0
    %s190 = sadd.s32 %s189, 1
    %s191 = scalar_select %p188, %s189, %s190
    %p194 = pneg %p188
    %p195 = scmp.eq.s32.totalorder %s13, 3
    %p196 = por %p194, %p195
    %p197 = scmp.ne.s32.totalorder %s189, %s192
    %p198 = scmp.eq.s32.totalorder %s13, 0
    %p199 = por %p197, %p198
    %p200 = scmp.ne.s32.totalorder %s189, %s192
    %p201 = scmp.eq.s32.totalorder %s18, 3
    %p202 = por %p200, %p201
    %p203 = scmp.ne.s32.totalorder %s192, %s193
    %p204 = scmp.eq.s32.totalorder %s18, 0
    %p205 = por %p203, %p204
    %p206 = scmp.ne.s32.totalorder %s192, %s193
    %p207 = scmp.eq.s32.totalorder %s19, 3
    %p208 = por %p206, %p207
    %p210 = scmp.ne.s32.totalorder %s193, %s209
    %p211 = scmp.eq.s32.totalorder %s19, 0
    %p212 = por %p210, %p211
    %p213 = scmp.le.s32.totalorder 1, %s13
    %p214 = scmp.lt.s32.totalorder %s13, 5
    %p215 = pnand %p213, %p214
    %p216 = pneg %p215
    // Predicated region
    $region9: #{basic_block_forward.1} parent=5 // pred_check
      _
    $region10: #{basic_block_forward.1} parent=5 // pred_check_branch
      %218 = sbr.rel (%p215) target = $region12
    $region11: #{basic_block_forward.1} parent=5 // pred_region
      %s219 = ssub.s32 %s13, 1
      // Predicated region
      $region13: #{basic_block_forward.1} parent=11 // pred_check
        %p220 = pneg %p72
      $region14: #{basic_block_forward.1} parent=11 // pred_check_branch
        %222 = sbr.rel (%p220) target = $region16
      $region15: #{basic_block_forward.1} parent=11 // pred_region
        _
      $region16: #{basic_block_forward.1} parent=11 // pred_fallthru
        _
      // Predicated region
      $region17: #{basic_block_forward.1} parent=11 // pred_check
        %p223 = pneg %p93
      $region18: #{basic_block_forward.1} parent=11 // pred_check_branch
        %225 = sbr.rel (%p223) target = $region20
      $region19: #{basic_block_forward.1} parent=11 // pred_region
        _
      $region20: #{basic_block_forward.1} parent=11 // pred_fallthru
        _
      // Predicated region
      $region21: #{basic_block_forward.1} parent=11 // pred_check
        %p226 = pneg %p114
      $region22: #{basic_block_forward.1} parent=11 // pred_check_branch
        %228 = sbr.rel (%p226) target = $region24
      $region23: #{basic_block_forward.1} parent=11 // pred_region
        _
      $region24: #{basic_block_forward.1} parent=11 // pred_fallthru
        _
      // Predicated region
      $region25: #{basic_block_forward.1} parent=11 // pred_check
        %p229 = pneg %p135
      $region26: #{basic_block_forward.1} parent=11 // pred_check_branch
        %231 = sbr.rel (%p229) target = $region28
      $region27: #{basic_block_forward.1} parent=11 // pred_region
        _
      $region28: #{basic_block_forward.1} parent=11 // pred_fallthru
        _
      // Predicated region
      $region29: #{basic_block_forward.1} parent=11 // pred_check
        %p232 = pneg %p156
      $region30: #{basic_block_forward.1} parent=11 // pred_check_branch
        %234 = sbr.rel (%p232) target = $region32
      $region31: #{basic_block_forward.1} parent=11 // pred_region
        _
      $region32: #{basic_block_forward.1} parent=11 // pred_fallthru
        _
      // Predicated region
      $region33: #{basic_block_forward.1} parent=11 // pred_check
        %p235 = pneg %p177
      $region34: #{basic_block_forward.1} parent=11 // pred_check_branch
        %237 = sbr.rel (%p235) target = $region36
      $region35: #{basic_block_forward.1} parent=11 // pred_region
        _
      $region36: #{basic_block_forward.1} parent=11 // pred_fallthru
        _
    $region12: #{basic_block_forward.1} parent=5 // pred_fallthru
      _
    %p238 = scmp.lt.s32.totalorder %s13, 4
    // Predicated region
    $region37: #{basic_block_forward.1} parent=5 // pred_check
      %p239 = pneg %p238
    $region38: #{basic_block_forward.1} parent=5 // pred_check_branch
      %241 = sbr.rel (%p239) target = $region40
    $region39: #{basic_block_forward.1} parent=5 // pred_region
      // Predicated region
      $region41: #{basic_block_forward.1} parent=39 // pred_check
        %p242 = pneg %p45
      $region42: #{basic_block_forward.1} parent=39 // pred_check_branch
        %244 = sbr.rel (%p242) target = $region44
      $region43: #{basic_block_forward.1} parent=39 // pred_region
        %p245 = scmp.lt.s32.totalorder %s20, 1
        %s246 = scalar_select %p245, %s20, 1
        %s247 = smul.addr %s246, 60
        %s248 = smul.addr %s247, 4
        %s249 = scalar_lea.vmem %s0, %s248
      $region44: #{basic_block_forward.1} parent=39 // pred_fallthru
        _
    $region40: #{basic_block_forward.1} parent=5 // pred_fallthru
      _
    %p250 = scmp.le.s32.totalorder 1, %s13
    %p251 = scmp.lt.s32.totalorder %s13, 5
    %p252 = pnand %p250, %p251
    %p253 = pneg %p252
    // Predicated region
    $region45: #{basic_block_forward.1} parent=5 // pred_check
      _
    $region46: #{basic_block_forward.1} parent=5 // pred_check_branch
      %255 = sbr.rel (%p252) target = $region48
    $region47: #{basic_block_forward.1} parent=5 // pred_region
      %s256 = ssub.s32 %s13, 1
      %p257 = scmp.lt.s32.totalorder %s22, 1
      %s258 = scalar_select %p257, %s22, 1
      %s259 = smul.addr %s258, 60
      %s260 = smul.addr %s259, 4
      %s261 = scalar_lea.vmem %s0, %s260
      %p262 = pneg %p51
      %p263 = pneg %p48
      %p264 = pneg %p72
      %p265 = pneg %p69
      %p266 = pneg %p93
      %p267 = pneg %p90
      %p268 = pneg %p114
      %p269 = pneg %p111
      %p270 = pneg %p135
      %p271 = pneg %p132
      %p272 = pneg %p156
      %p273 = pneg %p153
      %p274 = pneg %p177
      %p275 = pneg %p174
      %p276 = pneg %p205
      %p277 = pneg %p202
      %s278 = smul.u32 8, %s23
      %p279 = scmp.lt.s32.totalorder %s22, 1
      %s280 = scalar_select %p279, %s22, 1
      %p281 = scmp.lt.s32.totalorder %s278, 15
      %s282 = scalar_select %p281, %s278, 15
      %s283 = smul.addr %s282, 2
      %s284 = smul.addr %s280, 32
      %s285 = sadd.s32 %s283, %s284
      %s286 = smul.addr %s285, 8
      %s287 = scalar_lea.vmem %s7, %s286
      %p288 = scmp.lt.s32.totalorder %s22, 1
      %s289 = scalar_select %p288, %s22, 1
      %s290 = smul.addr %s289, 60
      %s291 = smul.addr %s290, 4
      %s292 = scalar_lea.vmem %s0, %s291
      %s293 = smul.u32 8, %s23
      %p294 = scmp.lt.s32.totalorder %s22, 1
      %s295 = scalar_select %p294, %s22, 1
      %p296 = scmp.lt.s32.totalorder %s293, 15
      %s297 = scalar_select %p296, %s293, 15
      %s298 = smul.addr %s297, 2
      %s299 = smul.addr %s295, 32
      %s300 = sadd.s32 %s298, %s299
      %s301 = smul.addr %s300, 8
      %s302 = scalar_lea.vmem %s7, %s301
      %s303 = smul.u32 8, %s23
      %s305 = smul.u32 %s23, 8
      %s306 = smul.u32 %s305, 3
      %s307 = smul.addr %s306, 4
      %s308 = scalar_lea.vmem %s292, %s307
      %v309 = vld [vmem:[%s308] sm:$0xf]
      %v310 = vld [vmem:[%s308 + $0x4] sm:$0xf]
      %v311 = vld [vmem:[%s308 + $0x8] sm:$0x1]
      %v312 = vld [vmem:[%s308 + $0xc] sm:$0xf]
      %v313 = vld [vmem:[%s308 + $0x10] sm:$0xf]
      %v314 = vld [vmem:[%s308 + $0x14] sm:$0x1]
      %v315 = vld [vmem:[%s308 + $0x18] sm:$0xf]
      %v316 = vld [vmem:[%s308 + $0x1c] sm:$0xf]
      %v317 = vld [vmem:[%s308 + $0x20] sm:$0x1]
      %v318 = vld [vmem:[%s308 + $0x24] sm:$0xf]
      %v319 = vld [vmem:[%s308 + $0x28] sm:$0xf]
      %v320 = vld [vmem:[%s308 + $0x2c] sm:$0x1]
      %v321 = vld [vmem:[%s308 + $0x30] sm:$0xf]
      %v322 = vld [vmem:[%s308 + $0x34] sm:$0xf]
      %v323 = vld [vmem:[%s308 + $0x38] sm:$0x1]
      %v324 = vld [vmem:[%s308 + $0x3c] sm:$0xf]
      %v325 = vld [vmem:[%s308 + $0x40] sm:$0xf]
      %v326 = vld [vmem:[%s308 + $0x44] sm:$0x1]
      %v327 = vld [vmem:[%s308 + $0x48] sm:$0xf]
      %v328 = vld [vmem:[%s308 + $0x4c] sm:$0xf]
      %v329 = vld [vmem:[%s308 + $0x50] sm:$0x1]
      %v330 = vld [vmem:[%s308 + $0x54] sm:$0xf]
      %v331 = vld [vmem:[%s308 + $0x58] sm:$0xf]
      %v332 = vld [vmem:[%s308 + $0x5c] sm:$0x1]
      %v333 = vld [vmem:[%s308 + $0x60] sm:$0xf]
      %v334 = vld [vmem:[%s308 + $0x64] sm:$0xf]
      %v335 = vld [vmem:[%s308 + $0x68] sm:$0x1]
      %v336 = vld [vmem:[%s308 + $0x6c] sm:$0xf]
      %v337 = vld [vmem:[%s308 + $0x70] sm:$0xf]
      %v338 = vld [vmem:[%s308 + $0x74] sm:$0x1]
      %v339 = vld [vmem:[%s308 + $0x78] sm:$0xf]
      %v340 = vld [vmem:[%s308 + $0x7c] sm:$0xf]
      %v341 = vld [vmem:[%s308 + $0x80] sm:$0x1]
      %v342 = vld [vmem:[%s308 + $0x84] sm:$0xf]
      %v343 = vld [vmem:[%s308 + $0x88] sm:$0xf]
      %v344 = vld [vmem:[%s308 + $0x8c] sm:$0x1]
      %v369 = vunpack.c.l.b16 %v309
      %v370 = vunpack.c.l.b16 %v310
      %v371 = vunpack.c.l.b16 %v312
      %v372 = vunpack.c.l.b16 %v313
      %v373 = vunpack.c.l.b16 %v315
      %v374 = vunpack.c.l.b16 %v316
      %v375 = vunpack.c.l.b16 %v318
      %v376 = vunpack.c.l.b16 %v319
      %v377 = vunpack.c.l.b16 %v321
      %v378 = vunpack.c.l.b16 %v322
      %v379 = vunpack.c.l.b16 %v324
      %v380 = vunpack.c.l.b16 %v325
      %v381 = vunpack.c.l.b16 %v327
      %v382 = vunpack.c.l.b16 %v328
      %v383 = vunpack.c.l.b16 %v330
      %v384 = vunpack.c.l.b16 %v331
      %v385 = vunpack.c.l.b16 %v333
      %v386 = vunpack.c.l.b16 %v334
      %v387 = vunpack.c.l.b16 %v336
      %v388 = vunpack.c.l.b16 %v337
      %v389 = vunpack.c.l.b16 %v339
      %v390 = vunpack.c.l.b16 %v340
      %v391 = vunpack.c.l.b16 %v342
      %v392 = vunpack.c.l.b16 %v343
      %v393 = vpack.c.b16 %v370, %v369
      %v394 = vpack.c.b16 %v372, %v371
      %v395 = vpack.c.b16 %v374, %v373
      %v396 = vpack.c.b16 %v376, %v375
      %v397 = vpack.c.b16 %v378, %v377
      %v398 = vpack.c.b16 %v380, %v379
      %v399 = vpack.c.b16 %v382, %v381
      %v400 = vpack.c.b16 %v384, %v383
      %v401 = vpack.c.b16 %v386, %v385
      %v402 = vpack.c.b16 %v388, %v387
      %v403 = vpack.c.b16 %v390, %v389
      %v404 = vpack.c.b16 %v392, %v391
      %v429 = vunpack.c.l.b16 %v311
      %v430 = vunpack.c.l.b16 %v314
      %v431 = vunpack.c.l.b16 %v317
      %v432 = vunpack.c.l.b16 %v320
      %v433 = vunpack.c.l.b16 %v323
      %v434 = vunpack.c.l.b16 %v326
      %v435 = vunpack.c.l.b16 %v329
      %v436 = vunpack.c.l.b16 %v332
      %v437 = vunpack.c.l.b16 %v335
      %v438 = vunpack.c.l.b16 %v338
      %v439 = vunpack.c.l.b16 %v341
      %v440 = vunpack.c.l.b16 %v344
      %v441 = vpack.c.b16 %v429, %v429
      %v442 = vpack.c.b16 %v430, %v430
      %v443 = vpack.c.b16 %v431, %v431
      %v444 = vpack.c.b16 %v432, %v432
      %v445 = vpack.c.b16 %v433, %v433
      %v446 = vpack.c.b16 %v434, %v434
      %v447 = vpack.c.b16 %v435, %v435
      %v448 = vpack.c.b16 %v436, %v436
      %v449 = vpack.c.b16 %v437, %v437
      %v450 = vpack.c.b16 %v438, %v438
      %v451 = vpack.c.b16 %v439, %v439
      %v452 = vpack.c.b16 %v440, %v440
      %vm453 = vsmask.f32 7424
      %v455 = vshrl.u32 %v393, 16
      %v457 = vshll.u32 %v393, 16
      %v459 = vrot.slane %v457, 1
      %v460 = vor.u32 %v455, %v459
      %v462 = vshll.u32 %v441, 16
      %v464 = vrot.slane %v462, 1
      %v465 = vsel %vm453, %v460, %v464
      %v467 = vshrl.u32 %v394, 16
      %v469 = vshll.u32 %v394, 16
      %v471 = vrot.slane %v469, 1
      %v472 = vor.u32 %v467, %v471
      %v474 = vshll.u32 %v442, 16
      %v476 = vrot.slane %v474, 1
      %v477 = vsel %vm453, %v472, %v476
      %v479 = vshrl.u32 %v395, 16
      %v481 = vshll.u32 %v395, 16
      %v483 = vrot.slane %v481, 1
      %v484 = vor.u32 %v479, %v483
      %v486 = vshll.u32 %v443, 16
      %v488 = vrot.slane %v486, 1
      %v489 = vsel %vm453, %v484, %v488
      %v491 = vshrl.u32 %v396, 16
      %v493 = vshll.u32 %v396, 16
      %v495 = vrot.slane %v493, 1
      %v496 = vor.u32 %v491, %v495
      %v498 = vshll.u32 %v444, 16
      %v500 = vrot.slane %v498, 1
      %v501 = vsel %vm453, %v496, %v500
      %v503 = vshrl.u32 %v397, 16
      %v505 = vshll.u32 %v397, 16
      %v507 = vrot.slane %v505, 1
      %v508 = vor.u32 %v503, %v507
      %v510 = vshll.u32 %v445, 16
      %v512 = vrot.slane %v510, 1
      %v513 = vsel %vm453, %v508, %v512
      %v515 = vshrl.u32 %v398, 16
      %v517 = vshll.u32 %v398, 16
      %v519 = vrot.slane %v517, 1
      %v520 = vor.u32 %v515, %v519
      %v522 = vshll.u32 %v446, 16
      %v524 = vrot.slane %v522, 1
      %v525 = vsel %vm453, %v520, %v524
      %v527 = vshrl.u32 %v399, 16
      %v529 = vshll.u32 %v399, 16
      %v531 = vrot.slane %v529, 1
      %v532 = vor.u32 %v527, %v531
      %v534 = vshll.u32 %v447, 16
      %v536 = vrot.slane %v534, 1
      %v537 = vsel %vm453, %v532, %v536
      %v539 = vshrl.u32 %v400, 16
      %v541 = vshll.u32 %v400, 16
      %v543 = vrot.slane %v541, 1
      %v544 = vor.u32 %v539, %v543
      %v546 = vshll.u32 %v448, 16
      %v548 = vrot.slane %v546, 1
      %v549 = vsel %vm453, %v544, %v548
      %v551 = vshrl.u32 %v401, 16
      %v553 = vshll.u32 %v401, 16
      %v555 = vrot.slane %v553, 1
      %v556 = vor.u32 %v551, %v555
      %v558 = vshll.u32 %v449, 16
      %v560 = vrot.slane %v558, 1
      %v561 = vsel %vm453, %v556, %v560
      %v563 = vshrl.u32 %v402, 16
      %v565 = vshll.u32 %v402, 16
      %v567 = vrot.slane %v565, 1
      %v568 = vor.u32 %v563, %v567
      %v570 = vshll.u32 %v450, 16
      %v572 = vrot.slane %v570, 1
      %v573 = vsel %vm453, %v568, %v572
      %v575 = vshrl.u32 %v403, 16
      %v577 = vshll.u32 %v403, 16
      %v579 = vrot.slane %v577, 1
      %v580 = vor.u32 %v575, %v579
      %v582 = vshll.u32 %v451, 16
      %v584 = vrot.slane %v582, 1
      %v585 = vsel %vm453, %v580, %v584
      %v587 = vshrl.u32 %v404, 16
      %v589 = vshll.u32 %v404, 16
      %v591 = vrot.slane %v589, 1
      %v592 = vor.u32 %v587, %v591
      %v594 = vshll.u32 %v452, 16
      %v596 = vrot.slane %v594, 1
      %v597 = vsel %vm453, %v592, %v596
      %vm610 = vcmask 1046528
      %v611 = vrot.slane %v393, 1
      %v612 = vrot.slane %v441, 1
      %v613 = vsel %vm610, %v611, %v612
      %v614 = vrot.slane %v394, 1
      %v615 = vrot.slane %v442, 1
      %v616 = vsel %vm610, %v614, %v615
      %v617 = vrot.slane %v395, 1
      %v618 = vrot.slane %v443, 1
      %v619 = vsel %vm610, %v617, %v618
      %v620 = vrot.slane %v396, 1
      %v621 = vrot.slane %v444, 1
      %v622 = vsel %vm610, %v620, %v621
      %v623 = vrot.slane %v397, 1
      %v624 = vrot.slane %v445, 1
      %v625 = vsel %vm610, %v623, %v624
      %v626 = vrot.slane %v398, 1
      %v627 = vrot.slane %v446, 1
      %v628 = vsel %vm610, %v626, %v627
      %v629 = vrot.slane %v399, 1
      %v630 = vrot.slane %v447, 1
      %v631 = vsel %vm610, %v629, %v630
      %v632 = vrot.slane %v400, 1
      %v633 = vrot.slane %v448, 1
      %v634 = vsel %vm610, %v632, %v633
      %v635 = vrot.slane %v401, 1
      %v636 = vrot.slane %v449, 1
      %v637 = vsel %vm610, %v635, %v636
      %v638 = vrot.slane %v402, 1
      %v639 = vrot.slane %v450, 1
      %v640 = vsel %vm610, %v638, %v639
      %v641 = vrot.slane %v403, 1
      %v642 = vrot.slane %v451, 1
      %v643 = vsel %vm610, %v641, %v642
      %v644 = vrot.slane %v404, 1
      %v645 = vrot.slane %v452, 1
      %v646 = vsel %vm610, %v644, %v645
      %v659 = vld [vmem:[%s1] sm:$0xf]
      %v660 = vld [vmem:[%s1 + $0x4] sm:$0xf]
      %v661 = vld [vmem:[%s1 + $0x8] sm:$0xf]
      %v662 = vld [vmem:[%s1 + $0xc] sm:$0xf]
      %v663 = vld [vmem:[%s1 + $0x10] sm:$0xf]
      %v664 = vld [vmem:[%s1 + $0x14] sm:$0xf]
      %v665 = vld [vmem:[%s1 + $0x18] sm:$0xf]
      %v666 = vld [vmem:[%s1 + $0x1c] sm:$0xf]
      %v667 = vld [vmem:[%s1 + $0x20] sm:$0xf]
      %v668 = vld [vmem:[%s1 + $0x24] sm:$0xf]
      %v669 = vld [vmem:[%s1 + $0x28] sm:$0xf]
      %v670 = vld [vmem:[%s1 + $0x2c] sm:$0xf]
      %v671 = vld [vmem:[%s1 + $0x30] sm:$0xf]
      %v672 = vld [vmem:[%s1 + $0x34] sm:$0xf]
      %v673 = vld [vmem:[%s1 + $0x38] sm:$0xf]
      %v674 = vld [vmem:[%s1 + $0x3c] sm:$0xf]
      %v675 = vld [vmem:[%s1 + $0x40] sm:$0xf]
      %v676 = vld [vmem:[%s1 + $0x44] sm:$0xf]
      %v677 = vld [vmem:[%s1 + $0x48] sm:$0xf]
      %v678 = vld [vmem:[%s1 + $0x4c] sm:$0xf]
      %v679 = vld [vmem:[%s1 + $0x50] sm:$0xf]
      %v680 = vld [vmem:[%s1 + $0x54] sm:$0xf]
      %v681 = vld [vmem:[%s1 + $0x58] sm:$0xf]
      %v682 = vld [vmem:[%s1 + $0x5c] sm:$0xf]
      %v683 = vld [vmem:[%s1 + $0x60] sm:$0xf]
      %v684 = vld [vmem:[%s1 + $0x64] sm:$0xf]
      %v685 = vld [vmem:[%s1 + $0x68] sm:$0xf]
      %v686 = vld [vmem:[%s1 + $0x6c] sm:$0xf]
      %v687 = vld [vmem:[%s1 + $0x70] sm:$0xf]
      %v688 = vld [vmem:[%s1 + $0x74] sm:$0xf]
      %v689 = vld [vmem:[%s1 + $0x78] sm:$0xf]
      %v690 = vld [vmem:[%s1 + $0x7c] sm:$0xf]
      %v691 = vld [vmem:[%s1 + $0x80] sm:$0xf]
      %v692 = vld [vmem:[%s1 + $0x84] sm:$0xf]
      %v693 = vld [vmem:[%s1 + $0x88] sm:$0xf]
      %v694 = vld [vmem:[%s1 + $0x8c] sm:$0xf]
      %v695 = vld [vmem:[%s1 + $0x90] sm:$0xf]
      %v696 = vld [vmem:[%s1 + $0x94] sm:$0xf]
      %v697 = vld [vmem:[%s1 + $0x98] sm:$0xf]
      %v698 = vld [vmem:[%s1 + $0x9c] sm:$0xf]
      %v699 = vld [vmem:[%s1 + $0xa0] sm:$0xf]
      %v700 = vld [vmem:[%s1 + $0xa4] sm:$0xf]
      %v701 = vld [vmem:[%s1 + $0xa8] sm:$0xf]
      %v702 = vld [vmem:[%s1 + $0xac] sm:$0xf]
      %v703 = vld [vmem:[%s1 + $0xb0] sm:$0xf]
      %v704 = vld [vmem:[%s1 + $0xb4] sm:$0xf]
      %v705 = vld [vmem:[%s1 + $0xb8] sm:$0xf]
      %v706 = vld [vmem:[%s1 + $0xbc] sm:$0xf]
      %s707 = scalar_lea.vmem %s1, 192
      %v708 = vld [vmem:[%s707] sm:$0xf]
      %v709 = vld [vmem:[%s707 + $0x4] sm:$0xf]
      %v710 = vld [vmem:[%s707 + $0x8] sm:$0xf]
      %v711 = vld [vmem:[%s707 + $0xc] sm:$0xf]
      %v712 = vld [vmem:[%s707 + $0x10] sm:$0xf]
      %v713 = vld [vmem:[%s707 + $0x14] sm:$0xf]
      %v714 = vld [vmem:[%s707 + $0x18] sm:$0xf]
      %v715 = vld [vmem:[%s707 + $0x1c] sm:$0xf]
      %v716 = vld [vmem:[%s707 + $0x20] sm:$0xf]
      %v717 = vld [vmem:[%s707 + $0x24] sm:$0xf]
      %v718 = vld [vmem:[%s707 + $0x28] sm:$0xf]
      %v719 = vld [vmem:[%s707 + $0x2c] sm:$0xf]
      %v720 = vld [vmem:[%s707 + $0x30] sm:$0xf]
      %v721 = vld [vmem:[%s707 + $0x34] sm:$0xf]
      %v722 = vld [vmem:[%s707 + $0x38] sm:$0xf]
      %v723 = vld [vmem:[%s707 + $0x3c] sm:$0xf]
      %v724 = vld [vmem:[%s707 + $0x40] sm:$0xf]
      %v725 = vld [vmem:[%s707 + $0x44] sm:$0xf]
      %v726 = vld [vmem:[%s707 + $0x48] sm:$0xf]
      %v727 = vld [vmem:[%s707 + $0x4c] sm:$0xf]
      %v728 = vld [vmem:[%s707 + $0x50] sm:$0xf]
      %v729 = vld [vmem:[%s707 + $0x54] sm:$0xf]
      %v730 = vld [vmem:[%s707 + $0x58] sm:$0xf]
      %v731 = vld [vmem:[%s707 + $0x5c] sm:$0xf]
      %v732 = vld [vmem:[%s707 + $0x60] sm:$0xf]
      %v733 = vld [vmem:[%s707 + $0x64] sm:$0xf]
      %v734 = vld [vmem:[%s707 + $0x68] sm:$0xf]
      %v735 = vld [vmem:[%s707 + $0x6c] sm:$0xf]
      %v736 = vld [vmem:[%s707 + $0x70] sm:$0xf]
      %v737 = vld [vmem:[%s707 + $0x74] sm:$0xf]
      %v738 = vld [vmem:[%s707 + $0x78] sm:$0xf]
      %v739 = vld [vmem:[%s707 + $0x7c] sm:$0xf]
      %v740 = vld [vmem:[%s707 + $0x80] sm:$0xf]
      %v741 = vld [vmem:[%s707 + $0x84] sm:$0xf]
      %v742 = vld [vmem:[%s707 + $0x88] sm:$0xf]
      %v743 = vld [vmem:[%s707 + $0x8c] sm:$0xf]
      %v744 = vld [vmem:[%s707 + $0x90] sm:$0xf]
      %v745 = vld [vmem:[%s707 + $0x94] sm:$0xf]
      %v746 = vld [vmem:[%s707 + $0x98] sm:$0xf]
      %v747 = vld [vmem:[%s707 + $0x9c] sm:$0xf]
      %v748 = vld [vmem:[%s707 + $0xa0] sm:$0xf]
      %v749 = vld [vmem:[%s707 + $0xa4] sm:$0xf]
      %v750 = vld [vmem:[%s707 + $0xa8] sm:$0xf]
      %v751 = vld [vmem:[%s707 + $0xac] sm:$0xf]
      %v752 = vld [vmem:[%s707 + $0xb0] sm:$0xf]
      %v753 = vld [vmem:[%s707 + $0xb4] sm:$0xf]
      %v754 = vld [vmem:[%s707 + $0xb8] sm:$0xf]
      %v755 = vld [vmem:[%s707 + $0xbc] sm:$0xf]
      %v804 = vunpack.c.l.b16 %v708
      %v805 = vunpack.c.l.b16 %v709
      %v806 = vunpack.c.l.b16 %v710
      %v807 = vunpack.c.l.b16 %v711
      %v808 = vunpack.c.l.b16 %v712
      %v809 = vunpack.c.l.b16 %v713
      %v810 = vunpack.c.l.b16 %v714
      %v811 = vunpack.c.l.b16 %v715
      %v812 = vunpack.c.l.b16 %v716
      %v813 = vunpack.c.l.b16 %v717
      %v814 = vunpack.c.l.b16 %v718
      %v815 = vunpack.c.l.b16 %v719
      %v816 = vunpack.c.l.b16 %v720
      %v817 = vunpack.c.l.b16 %v721
      %v818 = vunpack.c.l.b16 %v722
      %v819 = vunpack.c.l.b16 %v723
      %v820 = vunpack.c.l.b16 %v724
      %v821 = vunpack.c.l.b16 %v725
      %v822 = vunpack.c.l.b16 %v726
      %v823 = vunpack.c.l.b16 %v727
      %v824 = vunpack.c.l.b16 %v728
      %v825 = vunpack.c.l.b16 %v729
      %v826 = vunpack.c.l.b16 %v730
      %v827 = vunpack.c.l.b16 %v731
      %v828 = vunpack.c.l.b16 %v732
      %v829 = vunpack.c.l.b16 %v733
      %v830 = vunpack.c.l.b16 %v734
      %v831 = vunpack.c.l.b16 %v735
      %v832 = vunpack.c.l.b16 %v736
      %v833 = vunpack.c.l.b16 %v737
      %v834 = vunpack.c.l.b16 %v738
      %v835 = vunpack.c.l.b16 %v739
      %v836 = vunpack.c.l.b16 %v740
      %v837 = vunpack.c.l.b16 %v741
      %v838 = vunpack.c.l.b16 %v742
      %v839 = vunpack.c.l.b16 %v743
      %v840 = vunpack.c.l.b16 %v744
      %v841 = vunpack.c.l.b16 %v745
      %v842 = vunpack.c.l.b16 %v746
      %v843 = vunpack.c.l.b16 %v747
      %v844 = vunpack.c.l.b16 %v748
      %v845 = vunpack.c.l.b16 %v749
      %v846 = vunpack.c.l.b16 %v750
      %v847 = vunpack.c.l.b16 %v751
      %v848 = vunpack.c.l.b16 %v752
      %v849 = vunpack.c.l.b16 %v753
      %v850 = vunpack.c.l.b16 %v754
      %v851 = vunpack.c.l.b16 %v755
      %v852 = vpack.c.b16 %v805, %v804
      %v853 = vpack.c.b16 %v807, %v806
      %v854 = vpack.c.b16 %v809, %v808
      %v855 = vpack.c.b16 %v811, %v810
      %v856 = vpack.c.b16 %v813, %v812
      %v857 = vpack.c.b16 %v815, %v814
      %v858 = vpack.c.b16 %v817, %v816
      %v859 = vpack.c.b16 %v819, %v818
      %v860 = vpack.c.b16 %v821, %v820
      %v861 = vpack.c.b16 %v823, %v822
      %v862 = vpack.c.b16 %v825, %v824
      %v863 = vpack.c.b16 %v827, %v826
      %v864 = vpack.c.b16 %v829, %v828
      %v865 = vpack.c.b16 %v831, %v830
      %v866 = vpack.c.b16 %v833, %v832
      %v867 = vpack.c.b16 %v835, %v834
      %v868 = vpack.c.b16 %v837, %v836
      %v869 = vpack.c.b16 %v839, %v838
      %v870 = vpack.c.b16 %v841, %v840
      %v871 = vpack.c.b16 %v843, %v842
      %v872 = vpack.c.b16 %v845, %v844
      %v873 = vpack.c.b16 %v847, %v846
      %v874 = vpack.c.b16 %v849, %v848
      %v875 = vpack.c.b16 %v851, %v850
      %900 = vmatprep.subr.bf16.mxu0 0
      %901 = vmatpush1.bf16.msra.mxu0 %v859
      %902 = vmatprep.subr.bf16.mxu0 0
      %903 = vmatpush1.bf16.msra.mxu0 %v858
      %904 = vmatprep.subr.bf16.mxu0 0
      %905 = vmatpush1.bf16.msra.mxu0 %v857
      %906 = vmatprep.subr.bf16.mxu0 0
      %907 = vmatpush1.bf16.msra.mxu0 %v856
      %908 = vmatprep.subr.bf16.mxu0 0
      %909 = vmatpush1.bf16.msra.mxu0 %v855
      %910 = vmatprep.subr.bf16.mxu0 0
      %911 = vmatpush1.bf16.msra.mxu0 %v854
      %912 = vmatprep.subr.bf16.mxu0 0
      %913 = vmatpush1.bf16.msra.mxu0 %v853
      %914 = vmatprep.subr.bf16.mxu0 0
      %915 = vmatpush1.bf16.msra.mxu0 %v852
      %916 = vmatprep.subr.bf16.mxu0 0
      %917 = vmatpush2.bf16.msra.mxu0 %v867
      %918 = vmatprep.subr.bf16.mxu0 0
      %919 = vmatpush2.bf16.msra.mxu0 %v866
      %920 = vmatprep.subr.bf16.mxu0 0
      %921 = vmatpush2.bf16.msra.mxu0 %v865
      %922 = vmatprep.subr.bf16.mxu0 0
      %923 = vmatpush2.bf16.msra.mxu0 %v864
      %924 = vmatprep.subr.bf16.mxu0 0
      %925 = vmatpush2.bf16.msra.mxu0 %v863
      %926 = vmatprep.subr.bf16.mxu0 0
      %927 = vmatpush2.bf16.msra.mxu0 %v862
      %928 = vmatprep.subr.bf16.mxu0 0
      %929 = vmatpush2.bf16.msra.mxu0 %v861
      %930 = vmatprep.subr.bf16.mxu0 0
      %931 = vmatpush2.bf16.msra.mxu0 %v860
      %932 = vmatprep.mubr.bf16.mxu0 %v477
      %933 = vmatmul.mubr.bf16.gmra.mxu0 %v394
      %v934 = vpop.f32.mrf.mxu0
      %v935 = vadd.f32 0.0, %v934
      %v936 = vpop.f32.mrf.mxu0
      %v937 = vpop.f32.mrf.mxu0
      %v938 = vadd.f32 0.0, %v937
      %v939 = vpop.f32.mrf.mxu0
      %940 = vmatprep.mubr.bf16.mxu0 %v489
      %941 = vmatmul.mubr.bf16.gmra.mxu0 %v395
      %v942 = vpop.f32.mrf.mxu0
      %v943 = vadd.f32 0.0, %v942
      %v944 = vpop.f32.mrf.mxu0
      %v945 = vpop.f32.mrf.mxu0
      %v946 = vadd.f32 0.0, %v945
      %v947 = vpop.f32.mrf.mxu0
      %948 = vmatprep.mubr.bf16.mxu0 %v501
      %949 = vmatmul.mubr.bf16.gmra.mxu0 %v396
      %v950 = vpop.f32.mrf.mxu0
      %v951 = vadd.f32 0.0, %v950
      %v952 = vpop.f32.mrf.mxu0
      %v953 = vpop.f32.mrf.mxu0
      %v954 = vadd.f32 0.0, %v953
      %v955 = vpop.f32.mrf.mxu0
      %956 = vmatprep.mubr.bf16.mxu0 %v513
      %957 = vmatmul.mubr.bf16.gmra.mxu0 %v397
      %v958 = vpop.f32.mrf.mxu0
      %v959 = vadd.f32 0.0, %v958
      %v960 = vpop.f32.mrf.mxu0
      %v961 = vpop.f32.mrf.mxu0
      %v962 = vadd.f32 0.0, %v961
      %v963 = vpop.f32.mrf.mxu0
      %964 = vmatprep.mubr.bf16.mxu0 %v525
      %965 = vmatmul.mubr.bf16.gmra.mxu0 %v398
      %v966 = vpop.f32.mrf.mxu0
      %v967 = vadd.f32 0.0, %v966
      %v968 = vpop.f32.mrf.mxu0
      %v969 = vpop.f32.mrf.mxu0
      %v970 = vadd.f32 0.0, %v969
      %v971 = vpop.f32.mrf.mxu0
      %972 = vmatprep.mubr.bf16.mxu0 %v537
      %973 = vmatmul.mubr.bf16.gmra.mxu0 %v399
      %v974 = vpop.f32.mrf.mxu0
      %v975 = vadd.f32 0.0, %v974
      %v976 = vpop.f32.mrf.mxu0
      %v977 = vpop.f32.mrf.mxu0
      %v978 = vadd.f32 0.0, %v977
      %v979 = vpop.f32.mrf.mxu0
      %980 = vmatprep.mubr.bf16.mxu0 %v549
      %981 = vmatmul.mubr.bf16.gmra.mxu0 %v400
      %v982 = vpop.f32.mrf.mxu0
      %v983 = vadd.f32 0.0, %v982
      %v984 = vpop.f32.mrf.mxu0
      %v985 = vpop.f32.mrf.mxu0
      %v986 = vadd.f32 0.0, %v985
      %v987 = vpop.f32.mrf.mxu0
      %988 = vmatprep.mubr.bf16.mxu0 %v561
      %989 = vmatmul.mubr.bf16.gmra.mxu0 %v401
      %v990 = vpop.f32.mrf.mxu0
      %v991 = vadd.f32 0.0, %v990
      %v992 = vpop.f32.mrf.mxu0
      %v993 = vpop.f32.mrf.mxu0
      %v994 = vadd.f32 0.0, %v993
      %v995 = vpop.f32.mrf.mxu0
      %996 = vmatprep.mubr.bf16.mxu0 %v573
      %997 = vmatmul.mubr.bf16.gmra.mxu0 %v402
      %v998 = vpop.f32.mrf.mxu0
      %v999 = vadd.f32 0.0, %v998
      %v1000 = vpop.f32.mrf.mxu0
      %v1001 = vpop.f32.mrf.mxu0
      %v1002 = vadd.f32 0.0, %v1001
      %v1003 = vpop.f32.mrf.mxu0
      %1004 = vmatprep.mubr.bf16.mxu0 %v585
      %1005 = vmatmul.mubr.bf16.gmra.mxu0 %v403
      %v1006 = vpop.f32.mrf.mxu0
      %v1007 = vadd.f32 0.0, %v1006
      %v1008 = vpop.f32.mrf.mxu0
      %v1009 = vpop.f32.mrf.mxu0
      %v1010 = vadd.f32 0.0, %v1009
      %v1011 = vpop.f32.mrf.mxu0
      %1012 = vdwg.mxu0
      %1013 = vmatprep.subr.bf16.mxu0 0
      %1014 = vmatpush1.bf16.msra.mxu0 %v875
      %1015 = vmatprep.subr.bf16.mxu0 0
      %1016 = vmatpush1.bf16.msra.mxu0 %v874
      %1017 = vmatprep.subr.bf16.mxu0 0
      %1018 = vmatpush1.bf16.msra.mxu0 %v873
      %1019 = vmatprep.subr.bf16.mxu0 0
      %1020 = vmatpush1.bf16.msra.mxu0 %v872
      %1021 = vmatprep.subr.bf16.mxu0 0
      %1022 = vmatpush1.bf16.msra.mxu0 %v871
      %1023 = vmatprep.subr.bf16.mxu0 0
      %1024 = vmatpush1.bf16.msra.mxu0 %v870
      %1025 = vmatprep.subr.bf16.mxu0 0
      %1026 = vmatpush1.bf16.msra.mxu0 %v869
      %1027 = vmatprep.subr.bf16.mxu0 0
      %1028 = vmatpush1.bf16.msra.mxu0 %v868
      %1029 = vmatprep.subr.bf16.mxu0 0
      %1030 = vmatpush2.bf16.msra.mxu0 0
      %1031 = vmatprep.subr.bf16.mxu0 0
      %1032 = vmatpush2.bf16.msra.mxu0 0
      %1033 = vmatprep.subr.bf16.mxu0 0
      %1034 = vmatpush2.bf16.msra.mxu0 0
      %1035 = vmatprep.subr.bf16.mxu0 0
      %1036 = vmatpush2.bf16.msra.mxu0 0
      %1037 = vmatprep.subr.bf16.mxu0 0
      %1038 = vmatpush2.bf16.msra.mxu0 0
      %1039 = vmatprep.subr.bf16.mxu0 0
      %1040 = vmatpush2.bf16.msra.mxu0 0
      %1041 = vmatprep.subr.bf16.mxu0 0
      %1042 = vmatpush2.bf16.msra.mxu0 0
      %1043 = vmatprep.subr.bf16.mxu0 0
      %1044 = vmatpush2.bf16.msra.mxu0 0
      %1045 = vmatprep.mubr.bf16.mxu0 0
      %1046 = vmatmul.mubr.bf16.gmra.mxu0 %v616
      %v1047 = vpop.f32.mrf.mxu0
      %v1048 = vadd.f32 %v935, %v1047
      %v1049 = vpop.f32.mrf.mxu0
      %v1050 = vpop.f32.mrf.mxu0
      %v1051 = vadd.f32 %v938, %v1050
      %v1052 = vpop.f32.mrf.mxu0
      %1053 = vmatprep.mubr.bf16.mxu0 0
      %1054 = vmatmul.mubr.bf16.gmra.mxu0 %v619
      %v1055 = vpop.f32.mrf.mxu0
      %v1056 = vadd.f32 %v943, %v1055
      %v1057 = vpop.f32.mrf.mxu0
      %v1058 = vpop.f32.mrf.mxu0
      %v1059 = vadd.f32 %v946, %v1058
      %v1060 = vpop.f32.mrf.mxu0
      %1061 = vmatprep.mubr.bf16.mxu0 0
      %1062 = vmatmul.mubr.bf16.gmra.mxu0 %v622
      %v1063 = vpop.f32.mrf.mxu0
      %v1064 = vadd.f32 %v951, %v1063
      %v1065 = vpop.f32.mrf.mxu0
      %v1066 = vpop.f32.mrf.mxu0
      %v1067 = vadd.f32 %v954, %v1066
      %v1068 = vpop.f32.mrf.mxu0
      %1069 = vmatprep.mubr.bf16.mxu0 0
      %1070 = vmatmul.mubr.bf16.gmra.mxu0 %v625
      %v1071 = vpop.f32.mrf.mxu0
      %v1072 = vadd.f32 %v959, %v1071
      %v1073 = vpop.f32.mrf.mxu0
      %v1074 = vpop.f32.mrf.mxu0
      %v1075 = vadd.f32 %v962, %v1074
      %v1076 = vpop.f32.mrf.mxu0
      %1077 = vmatprep.mubr.bf16.mxu0 0
      %1078 = vmatmul.mubr.bf16.gmra.mxu0 %v628
      %v1079 = vpop.f32.mrf.mxu0
      %v1080 = vadd.f32 %v967, %v1079
      %v1081 = vpop.f32.mrf.mxu0
      %v1082 = vpop.f32.mrf.mxu0
      %v1083 = vadd.f32 %v970, %v1082
      %v1084 = vpop.f32.mrf.mxu0
      %1085 = vmatprep.mubr.bf16.mxu0 0
      %1086 = vmatmul.mubr.bf16.gmra.mxu0 %v631
      %v1087 = vpop.f32.mrf.mxu0
      %v1088 = vadd.f32 %v975, %v1087
      %v1089 = vpop.f32.mrf.mxu0
      %v1090 = vpop.f32.mrf.mxu0
      %v1091 = vadd.f32 %v978, %v1090
      %v1092 = vpop.f32.mrf.mxu0
      %1093 = vmatprep.mubr.bf16.mxu0 0
      %1094 = vmatmul.mubr.bf16.gmra.mxu0 %v634
      %v1095 = vpop.f32.mrf.mxu0
      %v1096 = vadd.f32 %v983, %v1095
      %v1097 = vpop.f32.mrf.mxu0
      %v1098 = vpop.f32.mrf.mxu0
      %v1099 = vadd.f32 %v986, %v1098
      %v1100 = vpop.f32.mrf.mxu0
      %1101 = vmatprep.mubr.bf16.mxu0 0
      %1102 = vmatmul.mubr.bf16.gmra.mxu0 %v637
      %v1103 = vpop.f32.mrf.mxu0
      %v1104 = vadd.f32 %v991, %v1103
      %v1105 = vpop.f32.mrf.mxu0
      %v1106 = vpop.f32.mrf.mxu0
      %v1107 = vadd.f32 %v994, %v1106
      %v1108 = vpop.f32.mrf.mxu0
      %1109 = vmatprep.mubr.bf16.mxu0 0
      %1110 = vmatmul.mubr.bf16.gmra.mxu0 %v640
      %v1111 = vpop.f32.mrf.mxu0
      %v1112 = vadd.f32 %v999, %v1111
      %v1113 = vpop.f32.mrf.mxu0
      %v1114 = vpop.f32.mrf.mxu0
      %v1115 = vadd.f32 %v1002, %v1114
      %v1116 = vpop.f32.mrf.mxu0
      %1117 = vmatprep.mubr.bf16.mxu0 0
      %1118 = vmatmul.mubr.bf16.gmra.mxu0 %v643
      %v1119 = vpop.f32.mrf.mxu0
      %v1120 = vadd.f32 %v1007, %v1119
      %v1121 = vpop.f32.mrf.mxu0
      %v1122 = vpop.f32.mrf.mxu0
      %v1123 = vadd.f32 %v1010, %v1122
      %v1124 = vpop.f32.mrf.mxu0
      %1125 = vdwg.mxu0
      %v1174 = vunpack.c.l.b16 %v659
      %v1175 = vunpack.c.l.b16 %v660
      %v1176 = vunpack.c.l.b16 %v661
      %v1177 = vunpack.c.l.b16 %v662
      %v1178 = vunpack.c.l.b16 %v663
      %v1179 = vunpack.c.l.b16 %v664
      %v1180 = vunpack.c.l.b16 %v665
      %v1181 = vunpack.c.l.b16 %v666
      %v1182 = vunpack.c.l.b16 %v667
      %v1183 = vunpack.c.l.b16 %v668
      %v1184 = vunpack.c.l.b16 %v669
      %v1185 = vunpack.c.l.b16 %v670
      %v1186 = vunpack.c.l.b16 %v671
      %v1187 = vunpack.c.l.b16 %v672
      %v1188 = vunpack.c.l.b16 %v673
      %v1189 = vunpack.c.l.b16 %v674
      %v1190 = vunpack.c.l.b16 %v675
      %v1191 = vunpack.c.l.b16 %v676
      %v1192 = vunpack.c.l.b16 %v677
      %v1193 = vunpack.c.l.b16 %v678
      %v1194 = vunpack.c.l.b16 %v679
      %v1195 = vunpack.c.l.b16 %v680
      %v1196 = vunpack.c.l.b16 %v681
      %v1197 = vunpack.c.l.b16 %v682
      %v1198 = vunpack.c.l.b16 %v683
      %v1199 = vunpack.c.l.b16 %v684
      %v1200 = vunpack.c.l.b16 %v685
      %v1201 = vunpack.c.l.b16 %v686
      %v1202 = vunpack.c.l.b16 %v687
      %v1203 = vunpack.c.l.b16 %v688
      %v1204 = vunpack.c.l.b16 %v689
      %v1205 = vunpack.c.l.b16 %v690
      %v1206 = vunpack.c.l.b16 %v691
      %v1207 = vunpack.c.l.b16 %v692
      %v1208 = vunpack.c.l.b16 %v693
      %v1209 = vunpack.c.l.b16 %v694
      %v1210 = vunpack.c.l.b16 %v695
      %v1211 = vunpack.c.l.b16 %v696
      %v1212 = vunpack.c.l.b16 %v697
      %v1213 = vunpack.c.l.b16 %v698
      %v1214 = vunpack.c.l.b16 %v699
      %v1215 = vunpack.c.l.b16 %v700
      %v1216 = vunpack.c.l.b16 %v701
      %v1217 = vunpack.c.l.b16 %v702
      %v1218 = vunpack.c.l.b16 %v703
      %v1219 = vunpack.c.l.b16 %v704
      %v1220 = vunpack.c.l.b16 %v705
      %v1221 = vunpack.c.l.b16 %v706
      %v1222 = vpack.c.b16 %v1175, %v1174
      %v1223 = vpack.c.b16 %v1177, %v1176
      %v1224 = vpack.c.b16 %v1179, %v1178
      %v1225 = vpack.c.b16 %v1181, %v1180
      %v1226 = vpack.c.b16 %v1183, %v1182
      %v1227 = vpack.c.b16 %v1185, %v1184
      %v1228 = vpack.c.b16 %v1187, %v1186
      %v1229 = vpack.c.b16 %v1189, %v1188
      %v1230 = vpack.c.b16 %v1191, %v1190
      %v1231 = vpack.c.b16 %v1193, %v1192
      %v1232 = vpack.c.b16 %v1195, %v1194
      %v1233 = vpack.c.b16 %v1197, %v1196
      %v1234 = vpack.c.b16 %v1199, %v1198
      %v1235 = vpack.c.b16 %v1201, %v1200
      %v1236 = vpack.c.b16 %v1203, %v1202
      %v1237 = vpack.c.b16 %v1205, %v1204
      %v1238 = vpack.c.b16 %v1207, %v1206
      %v1239 = vpack.c.b16 %v1209, %v1208
      %v1240 = vpack.c.b16 %v1211, %v1210
      %v1241 = vpack.c.b16 %v1213, %v1212
      %v1242 = vpack.c.b16 %v1215, %v1214
      %v1243 = vpack.c.b16 %v1217, %v1216
      %v1244 = vpack.c.b16 %v1219, %v1218
      %v1245 = vpack.c.b16 %v1221, %v1220
      %1270 = vmatprep.subr.bf16.mxu0 0
      %1271 = vmatpush1.bf16.msra.mxu0 %v1229
      %1272 = vmatprep.subr.bf16.mxu0 0
      %1273 = vmatpush1.bf16.msra.mxu0 %v1228
      %1274 = vmatprep.subr.bf16.mxu0 0
      %1275 = vmatpush1.bf16.msra.mxu0 %v1227
      %1276 = vmatprep.subr.bf16.mxu0 0
      %1277 = vmatpush1.bf16.msra.mxu0 %v1226
      %1278 = vmatprep.subr.bf16.mxu0 0
      %1279 = vmatpush1.bf16.msra.mxu0 %v1225
      %1280 = vmatprep.subr.bf16.mxu0 0
      %1281 = vmatpush1.bf16.msra.mxu0 %v1224
      %1282 = vmatprep.subr.bf16.mxu0 0
      %1283 = vmatpush1.bf16.msra.mxu0 %v1223
      %1284 = vmatprep.subr.bf16.mxu0 0
      %1285 = vmatpush1.bf16.msra.mxu0 %v1222
      %1286 = vmatprep.subr.bf16.mxu0 0
      %1287 = vmatpush2.bf16.msra.mxu0 %v1237
      %1288 = vmatprep.subr.bf16.mxu0 0
      %1289 = vmatpush2.bf16.msra.mxu0 %v1236
      %1290 = vmatprep.subr.bf16.mxu0 0
      %1291 = vmatpush2.bf16.msra.mxu0 %v1235
      %1292 = vmatprep.subr.bf16.mxu0 0
      %1293 = vmatpush2.bf16.msra.mxu0 %v1234
      %1294 = vmatprep.subr.bf16.mxu0 0
      %1295 = vmatpush2.bf16.msra.mxu0 %v1233
      %1296 = vmatprep.subr.bf16.mxu0 0
      %1297 = vmatpush2.bf16.msra.mxu0 %v1232
      %1298 = vmatprep.subr.bf16.mxu0 0
      %1299 = vmatpush2.bf16.msra.mxu0 %v1231
      %1300 = vmatprep.subr.bf16.mxu0 0
      %1301 = vmatpush2.bf16.msra.mxu0 %v1230
      %1302 = vmatprep.mubr.bf16.mxu0 %v465
      %1303 = vmatmul.mubr.bf16.gmra.mxu0 %v393
      %v1304 = vpop.f32.mrf.mxu0
      %v1305 = vadd.f32 %v1048, %v1304
      %v1306 = vpop.f32.mrf.mxu0
      %v1307 = vpop.f32.mrf.mxu0
      %v1308 = vadd.f32 %v1051, %v1307
      %v1309 = vpop.f32.mrf.mxu0
      %1310 = vmatprep.mubr.bf16.mxu0 %v477
      %1311 = vmatmul.mubr.bf16.gmra.mxu0 %v394
      %v1312 = vpop.f32.mrf.mxu0
      %v1313 = vadd.f32 %v1056, %v1312
      %v1314 = vpop.f32.mrf.mxu0
      %v1315 = vpop.f32.mrf.mxu0
      %v1316 = vadd.f32 %v1059, %v1315
      %v1317 = vpop.f32.mrf.mxu0
      %1318 = vmatprep.mubr.bf16.mxu0 %v489
      %1319 = vmatmul.mubr.bf16.gmra.mxu0 %v395
      %v1320 = vpop.f32.mrf.mxu0
      %v1321 = vadd.f32 %v1064, %v1320
      %v1322 = vpop.f32.mrf.mxu0
      %v1323 = vpop.f32.mrf.mxu0
      %v1324 = vadd.f32 %v1067, %v1323
      %v1325 = vpop.f32.mrf.mxu0
      %1326 = vmatprep.mubr.bf16.mxu0 %v501
      %1327 = vmatmul.mubr.bf16.gmra.mxu0 %v396
      %v1328 = vpop.f32.mrf.mxu0
      %v1329 = vadd.f32 %v1072, %v1328
      %v1330 = vpop.f32.mrf.mxu0
      %v1331 = vpop.f32.mrf.mxu0
      %v1332 = vadd.f32 %v1075, %v1331
      %v1333 = vpop.f32.mrf.mxu0
      %1334 = vmatprep.mubr.bf16.mxu0 %v513
      %1335 = vmatmul.mubr.bf16.gmra.mxu0 %v397
      %v1336 = vpop.f32.mrf.mxu0
      %v1337 = vadd.f32 %v1080, %v1336
      %v1338 = vpop.f32.mrf.mxu0
      %v1339 = vpop.f32.mrf.mxu0
      %v1340 = vadd.f32 %v1083, %v1339
      %v1341 = vpop.f32.mrf.mxu0
      %1342 = vmatprep.mubr.bf16.mxu0 %v525
      %1343 = vmatmul.mubr.bf16.gmra.mxu0 %v398
      %v1344 = vpop.f32.mrf.mxu0
      %v1345 = vadd.f32 %v1088, %v1344
      %v1346 = vpop.f32.mrf.mxu0
      %v1347 = vpop.f32.mrf.mxu0
      %v1348 = vadd.f32 %v1091, %v1347
      %v1349 = vpop.f32.mrf.mxu0
      %1350 = vmatprep.mubr.bf16.mxu0 %v537
      %1351 = vmatmul.mubr.bf16.gmra.mxu0 %v399
      %v1352 = vpop.f32.mrf.mxu0
      %v1353 = vadd.f32 %v1096, %v1352
      %v1354 = vpop.f32.mrf.mxu0
      %v1355 = vpop.f32.mrf.mxu0
      %v1356 = vadd.f32 %v1099, %v1355
      %v1357 = vpop.f32.mrf.mxu0
      %1358 = vmatprep.mubr.bf16.mxu0 %v549
      %1359 = vmatmul.mubr.bf16.gmra.mxu0 %v400
      %v1360 = vpop.f32.mrf.mxu0
      %v1361 = vadd.f32 %v1104, %v1360
      %v1362 = vpop.f32.mrf.mxu0
      %v1363 = vpop.f32.mrf.mxu0
      %v1364 = vadd.f32 %v1107, %v1363
      %v1365 = vpop.f32.mrf.mxu0
      %1366 = vmatprep.mubr.bf16.mxu0 %v561
      %1367 = vmatmul.mubr.bf16.gmra.mxu0 %v401
      %v1368 = vpop.f32.mrf.mxu0
      %v1369 = vadd.f32 %v1112, %v1368
      %v1370 = vpop.f32.mrf.mxu0
      %v1371 = vpop.f32.mrf.mxu0
      %v1372 = vadd.f32 %v1115, %v1371
      %v1373 = vpop.f32.mrf.mxu0
      %1374 = vmatprep.mubr.bf16.mxu0 %v573
      %1375 = vmatmul.mubr.bf16.gmra.mxu0 %v402
      %v1376 = vpop.f32.mrf.mxu0
      %v1377 = vadd.f32 %v1120, %v1376
      %v1378 = vpop.f32.mrf.mxu0
      %v1379 = vpop.f32.mrf.mxu0
      %v1380 = vadd.f32 %v1123, %v1379
      %v1381 = vpop.f32.mrf.mxu0
      %1382 = vdwg.mxu0
      %1383 = vmatprep.subr.bf16.mxu0 0
      %1384 = vmatpush1.bf16.msra.mxu0 %v1245
      %1385 = vmatprep.subr.bf16.mxu0 0
      %1386 = vmatpush1.bf16.msra.mxu0 %v1244
      %1387 = vmatprep.subr.bf16.mxu0 0
      %1388 = vmatpush1.bf16.msra.mxu0 %v1243
      %1389 = vmatprep.subr.bf16.mxu0 0
      %1390 = vmatpush1.bf16.msra.mxu0 %v1242
      %1391 = vmatprep.subr.bf16.mxu0 0
      %1392 = vmatpush1.bf16.msra.mxu0 %v1241
      %1393 = vmatprep.subr.bf16.mxu0 0
      %1394 = vmatpush1.bf16.msra.mxu0 %v1240
      %1395 = vmatprep.subr.bf16.mxu0 0
      %1396 = vmatpush1.bf16.msra.mxu0 %v1239
      %1397 = vmatprep.subr.bf16.mxu0 0
      %1398 = vmatpush1.bf16.msra.mxu0 %v1238
      %1399 = vmatprep.subr.bf16.mxu0 0
      %1400 = vmatpush2.bf16.msra.mxu0 0
      %1401 = vmatprep.subr.bf16.mxu0 0
      %1402 = vmatpush2.bf16.msra.mxu0 0
      %1403 = vmatprep.subr.bf16.mxu0 0
      %1404 = vmatpush2.bf16.msra.mxu0 0
      %1405 = vmatprep.subr.bf16.mxu0 0
      %1406 = vmatpush2.bf16.msra.mxu0 0
      %1407 = vmatprep.subr.bf16.mxu0 0
      %1408 = vmatpush2.bf16.msra.mxu0 0
      %1409 = vmatprep.subr.bf16.mxu0 0
      %1410 = vmatpush2.bf16.msra.mxu0 0
      %1411 = vmatprep.subr.bf16.mxu0 0
      %1412 = vmatpush2.bf16.msra.mxu0 0
      %1413 = vmatprep.subr.bf16.mxu0 0
      %1414 = vmatpush2.bf16.msra.mxu0 0
      %1415 = vmatprep.mubr.bf16.mxu0 0
      %1416 = vmatmul.mubr.bf16.gmra.mxu0 %v613
      %v1417 = vpop.f32.mrf.mxu0
      %v1418 = vadd.f32 %v1305, %v1417
      %v1419 = vpop.f32.mrf.mxu0
      %v1420 = vpop.f32.mrf.mxu0
      %v1421 = vadd.f32 %v1308, %v1420
      %v1422 = vpop.f32.mrf.mxu0
      %1423 = vmatprep.mubr.bf16.mxu0 0
      %1424 = vmatmul.mubr.bf16.gmra.mxu0 %v616
      %v1425 = vpop.f32.mrf.mxu0
      %v1426 = vadd.f32 %v1313, %v1425
      %v1427 = vpop.f32.mrf.mxu0
      %v1428 = vpop.f32.mrf.mxu0
      %v1429 = vadd.f32 %v1316, %v1428
      %v1430 = vpop.f32.mrf.mxu0
      %1431 = vmatprep.mubr.bf16.mxu0 0
      %1432 = vmatmul.mubr.bf16.gmra.mxu0 %v619
      %v1433 = vpop.f32.mrf.mxu0
      %v1434 = vadd.f32 %v1321, %v1433
      %v1435 = vpop.f32.mrf.mxu0
      %v1436 = vpop.f32.mrf.mxu0
      %v1437 = vadd.f32 %v1324, %v1436
      %v1438 = vpop.f32.mrf.mxu0
      %1439 = vmatprep.mubr.bf16.mxu0 0
      %1440 = vmatmul.mubr.bf16.gmra.mxu0 %v622
      %v1441 = vpop.f32.mrf.mxu0
      %v1442 = vadd.f32 %v1329, %v1441
      %v1443 = vpop.f32.mrf.mxu0
      %v1444 = vpop.f32.mrf.mxu0
      %v1445 = vadd.f32 %v1332, %v1444
      %v1446 = vpop.f32.mrf.mxu0
      %1447 = vmatprep.mubr.bf16.mxu0 0
      %1448 = vmatmul.mubr.bf16.gmra.mxu0 %v625
      %v1449 = vpop.f32.mrf.mxu0
      %v1450 = vadd.f32 %v1337, %v1449
      %v1451 = vpop.f32.mrf.mxu0
      %v1452 = vpop.f32.mrf.mxu0
      %v1453 = vadd.f32 %v1340, %v1452
      %v1454 = vpop.f32.mrf.mxu0
      %1455 = vmatprep.mubr.bf16.mxu0 0
      %1456 = vmatmul.mubr.bf16.gmra.mxu0 %v628
      %v1457 = vpop.f32.mrf.mxu0
      %v1458 = vadd.f32 %v1345, %v1457
      %v1459 = vpop.f32.mrf.mxu0
      %v1460 = vpop.f32.mrf.mxu0
      %v1461 = vadd.f32 %v1348, %v1460
      %v1462 = vpop.f32.mrf.mxu0
      %1463 = vmatprep.mubr.bf16.mxu0 0
      %1464 = vmatmul.mubr.bf16.gmra.mxu0 %v631
      %v1465 = vpop.f32.mrf.mxu0
      %v1466 = vadd.f32 %v1353, %v1465
      %v1467 = vpop.f32.mrf.mxu0
      %v1468 = vpop.f32.mrf.mxu0
      %v1469 = vadd.f32 %v1356, %v1468
      %v1470 = vpop.f32.mrf.mxu0
      %1471 = vmatprep.mubr.bf16.mxu0 0
      %1472 = vmatmul.mubr.bf16.gmra.mxu0 %v634
      %v1473 = vpop.f32.mrf.mxu0
      %v1474 = vadd.f32 %v1361, %v1473
      %v1475 = vpop.f32.mrf.mxu0
      %v1476 = vpop.f32.mrf.mxu0
      %v1477 = vadd.f32 %v1364, %v1476
      %v1478 = vpop.f32.mrf.mxu0
      %1479 = vmatprep.mubr.bf16.mxu0 0
      %1480 = vmatmul.mubr.bf16.gmra.mxu0 %v637
      %v1481 = vpop.f32.mrf.mxu0
      %v1482 = vadd.f32 %v1369, %v1481
      %v1483 = vpop.f32.mrf.mxu0
      %v1484 = vpop.f32.mrf.mxu0
      %v1485 = vadd.f32 %v1372, %v1484
      %v1486 = vpop.f32.mrf.mxu0
      %1487 = vmatprep.mubr.bf16.mxu0 0
      %1488 = vmatmul.mubr.bf16.gmra.mxu0 %v640
      %v1489 = vpop.f32.mrf.mxu0
      %v1490 = vadd.f32 %v1377, %v1489
      %v1491 = vpop.f32.mrf.mxu0
      %v1492 = vpop.f32.mrf.mxu0
      %v1493 = vadd.f32 %v1380, %v1492
      %v1494 = vpop.f32.mrf.mxu0
      %1495 = vdwg.mxu0
      %s1496 = scalar_lea.vmem %s1, 384
      %v1497 = vld [vmem:[%s1496] sm:$0xf]
      %v1498 = vld [vmem:[%s1496 + $0x4] sm:$0xf]
      %v1499 = vld [vmem:[%s1496 + $0x8] sm:$0xf]
      %v1500 = vld [vmem:[%s1496 + $0xc] sm:$0xf]
      %v1501 = vld [vmem:[%s1496 + $0x10] sm:$0xf]
      %v1502 = vld [vmem:[%s1496 + $0x14] sm:$0xf]
      %v1503 = vld [vmem:[%s1496 + $0x18] sm:$0xf]
      %v1504 = vld [vmem:[%s1496 + $0x1c] sm:$0xf]
      %v1505 = vld [vmem:[%s1496 + $0x20] sm:$0xf]
      %v1506 = vld [vmem:[%s1496 + $0x24] sm:$0xf]
      %v1507 = vld [vmem:[%s1496 + $0x28] sm:$0xf]
      %v1508 = vld [vmem:[%s1496 + $0x2c] sm:$0xf]
      %v1509 = vld [vmem:[%s1496 + $0x30] sm:$0xf]
      %v1510 = vld [vmem:[%s1496 + $0x34] sm:$0xf]
      %v1511 = vld [vmem:[%s1496 + $0x38] sm:$0xf]
      %v1512 = vld [vmem:[%s1496 + $0x3c] sm:$0xf]
      %v1513 = vld [vmem:[%s1496 + $0x40] sm:$0xf]
      %v1514 = vld [vmem:[%s1496 + $0x44] sm:$0xf]
      %v1515 = vld [vmem:[%s1496 + $0x48] sm:$0xf]
      %v1516 = vld [vmem:[%s1496 + $0x4c] sm:$0xf]
      %v1517 = vld [vmem:[%s1496 + $0x50] sm:$0xf]
      %v1518 = vld [vmem:[%s1496 + $0x54] sm:$0xf]
      %v1519 = vld [vmem:[%s1496 + $0x58] sm:$0xf]
      %v1520 = vld [vmem:[%s1496 + $0x5c] sm:$0xf]
      %v1521 = vld [vmem:[%s1496 + $0x60] sm:$0xf]
      %v1522 = vld [vmem:[%s1496 + $0x64] sm:$0xf]
      %v1523 = vld [vmem:[%s1496 + $0x68] sm:$0xf]
      %v1524 = vld [vmem:[%s1496 + $0x6c] sm:$0xf]
      %v1525 = vld [vmem:[%s1496 + $0x70] sm:$0xf]
      %v1526 = vld [vmem:[%s1496 + $0x74] sm:$0xf]
      %v1527 = vld [vmem:[%s1496 + $0x78] sm:$0xf]
      %v1528 = vld [vmem:[%s1496 + $0x7c] sm:$0xf]
      %v1529 = vld [vmem:[%s1496 + $0x80] sm:$0xf]
      %v1530 = vld [vmem:[%s1496 + $0x84] sm:$0xf]
      %v1531 = vld [vmem:[%s1496 + $0x88] sm:$0xf]
      %v1532 = vld [vmem:[%s1496 + $0x8c] sm:$0xf]
      %v1533 = vld [vmem:[%s1496 + $0x90] sm:$0xf]
      %v1534 = vld [vmem:[%s1496 + $0x94] sm:$0xf]
      %v1535 = vld [vmem:[%s1496 + $0x98] sm:$0xf]
      %v1536 = vld [vmem:[%s1496 + $0x9c] sm:$0xf]
      %v1537 = vld [vmem:[%s1496 + $0xa0] sm:$0xf]
      %v1538 = vld [vmem:[%s1496 + $0xa4] sm:$0xf]
      %v1539 = vld [vmem:[%s1496 + $0xa8] sm:$0xf]
      %v1540 = vld [vmem:[%s1496 + $0xac] sm:$0xf]
      %v1541 = vld [vmem:[%s1496 + $0xb0] sm:$0xf]
      %v1542 = vld [vmem:[%s1496 + $0xb4] sm:$0xf]
      %v1543 = vld [vmem:[%s1496 + $0xb8] sm:$0xf]
      %v1544 = vld [vmem:[%s1496 + $0xbc] sm:$0xf]
      %v1593 = vunpack.c.l.b16 %v1497
      %v1594 = vunpack.c.l.b16 %v1498
      %v1595 = vunpack.c.l.b16 %v1499
      %v1596 = vunpack.c.l.b16 %v1500
      %v1597 = vunpack.c.l.b16 %v1501
      %v1598 = vunpack.c.l.b16 %v1502
      %v1599 = vunpack.c.l.b16 %v1503
      %v1600 = vunpack.c.l.b16 %v1504
      %v1601 = vunpack.c.l.b16 %v1505
      %v1602 = vunpack.c.l.b16 %v1506
      %v1603 = vunpack.c.l.b16 %v1507
      %v1604 = vunpack.c.l.b16 %v1508
      %v1605 = vunpack.c.l.b16 %v1509
      %v1606 = vunpack.c.l.b16 %v1510
      %v1607 = vunpack.c.l.b16 %v1511
      %v1608 = vunpack.c.l.b16 %v1512
      %v1609 = vunpack.c.l.b16 %v1513
      %v1610 = vunpack.c.l.b16 %v1514
      %v1611 = vunpack.c.l.b16 %v1515
      %v1612 = vunpack.c.l.b16 %v1516
      %v1613 = vunpack.c.l.b16 %v1517
      %v1614 = vunpack.c.l.b16 %v1518
      %v1615 = vunpack.c.l.b16 %v1519
      %v1616 = vunpack.c.l.b16 %v1520
      %v1617 = vunpack.c.l.b16 %v1521
      %v1618 = vunpack.c.l.b16 %v1522
      %v1619 = vunpack.c.l.b16 %v1523
      %v1620 = vunpack.c.l.b16 %v1524
      %v1621 = vunpack.c.l.b16 %v1525
      %v1622 = vunpack.c.l.b16 %v1526
      %v1623 = vunpack.c.l.b16 %v1527
      %v1624 = vunpack.c.l.b16 %v1528
      %v1625 = vunpack.c.l.b16 %v1529
      %v1626 = vunpack.c.l.b16 %v1530
      %v1627 = vunpack.c.l.b16 %v1531
      %v1628 = vunpack.c.l.b16 %v1532
      %v1629 = vunpack.c.l.b16 %v1533
      %v1630 = vunpack.c.l.b16 %v1534
      %v1631 = vunpack.c.l.b16 %v1535
      %v1632 = vunpack.c.l.b16 %v1536
      %v1633 = vunpack.c.l.b16 %v1537
      %v1634 = vunpack.c.l.b16 %v1538
      %v1635 = vunpack.c.l.b16 %v1539
      %v1636 = vunpack.c.l.b16 %v1540
      %v1637 = vunpack.c.l.b16 %v1541
      %v1638 = vunpack.c.l.b16 %v1542
      %v1639 = vunpack.c.l.b16 %v1543
      %v1640 = vunpack.c.l.b16 %v1544
      %v1641 = vpack.c.b16 %v1594, %v1593
      %v1642 = vpack.c.b16 %v1596, %v1595
      %v1643 = vpack.c.b16 %v1598, %v1597
      %v1644 = vpack.c.b16 %v1600, %v1599
      %v1645 = vpack.c.b16 %v1602, %v1601
      %v1646 = vpack.c.b16 %v1604, %v1603
      %v1647 = vpack.c.b16 %v1606, %v1605
      %v1648 = vpack.c.b16 %v1608, %v1607
      %v1649 = vpack.c.b16 %v1610, %v1609
      %v1650 = vpack.c.b16 %v1612, %v1611
      %v1651 = vpack.c.b16 %v1614, %v1613
      %v1652 = vpack.c.b16 %v1616, %v1615
      %v1653 = vpack.c.b16 %v1618, %v1617
      %v1654 = vpack.c.b16 %v1620, %v1619
      %v1655 = vpack.c.b16 %v1622, %v1621
      %v1656 = vpack.c.b16 %v1624, %v1623
      %v1657 = vpack.c.b16 %v1626, %v1625
      %v1658 = vpack.c.b16 %v1628, %v1627
      %v1659 = vpack.c.b16 %v1630, %v1629
      %v1660 = vpack.c.b16 %v1632, %v1631
      %v1661 = vpack.c.b16 %v1634, %v1633
      %v1662 = vpack.c.b16 %v1636, %v1635
      %v1663 = vpack.c.b16 %v1638, %v1637
      %v1664 = vpack.c.b16 %v1640, %v1639
      %1689 = vmatprep.subr.bf16.mxu0 0
      %1690 = vmatpush1.bf16.msra.mxu0 %v1648
      %1691 = vmatprep.subr.bf16.mxu0 0
      %1692 = vmatpush1.bf16.msra.mxu0 %v1647
      %1693 = vmatprep.subr.bf16.mxu0 0
      %1694 = vmatpush1.bf16.msra.mxu0 %v1646
      %1695 = vmatprep.subr.bf16.mxu0 0
      %1696 = vmatpush1.bf16.msra.mxu0 %v1645
      %1697 = vmatprep.subr.bf16.mxu0 0
      %1698 = vmatpush1.bf16.msra.mxu0 %v1644
      %1699 = vmatprep.subr.bf16.mxu0 0
      %1700 = vmatpush1.bf16.msra.mxu0 %v1643
      %1701 = vmatprep.subr.bf16.mxu0 0
      %1702 = vmatpush1.bf16.msra.mxu0 %v1642
      %1703 = vmatprep.subr.bf16.mxu0 0
      %1704 = vmatpush1.bf16.msra.mxu0 %v1641
      %1705 = vmatprep.subr.bf16.mxu0 0
      %1706 = vmatpush2.bf16.msra.mxu0 %v1656
      %1707 = vmatprep.subr.bf16.mxu0 0
      %1708 = vmatpush2.bf16.msra.mxu0 %v1655
      %1709 = vmatprep.subr.bf16.mxu0 0
      %1710 = vmatpush2.bf16.msra.mxu0 %v1654
      %1711 = vmatprep.subr.bf16.mxu0 0
      %1712 = vmatpush2.bf16.msra.mxu0 %v1653
      %1713 = vmatprep.subr.bf16.mxu0 0
      %1714 = vmatpush2.bf16.msra.mxu0 %v1652
      %1715 = vmatprep.subr.bf16.mxu0 0
      %1716 = vmatpush2.bf16.msra.mxu0 %v1651
      %1717 = vmatprep.subr.bf16.mxu0 0
      %1718 = vmatpush2.bf16.msra.mxu0 %v1650
      %1719 = vmatprep.subr.bf16.mxu0 0
      %1720 = vmatpush2.bf16.msra.mxu0 %v1649
      %1721 = vmatprep.mubr.bf16.mxu0 %v489
      %1722 = vmatmul.mubr.bf16.gmra.mxu0 %v395
      %v1723 = vpop.f32.mrf.mxu0
      %v1724 = vadd.f32 0.0, %v1723
      %v1725 = vpop.f32.mrf.mxu0
      %v1726 = vpop.f32.mrf.mxu0
      %v1727 = vadd.f32 0.0, %v1726
      %v1728 = vpop.f32.mrf.mxu0
      %1729 = vmatprep.mubr.bf16.mxu0 %v501
      %1730 = vmatmul.mubr.bf16.gmra.mxu0 %v396
      %v1731 = vpop.f32.mrf.mxu0
      %v1732 = vadd.f32 0.0, %v1731
      %v1733 = vpop.f32.mrf.mxu0
      %v1734 = vpop.f32.mrf.mxu0
      %v1735 = vadd.f32 0.0, %v1734
      %v1736 = vpop.f32.mrf.mxu0
      %1737 = vmatprep.mubr.bf16.mxu0 %v513
      %1738 = vmatmul.mubr.bf16.gmra.mxu0 %v397
      %v1739 = vpop.f32.mrf.mxu0
      %v1740 = vadd.f32 0.0, %v1739
      %v1741 = vpop.f32.mrf.mxu0
      %v1742 = vpop.f32.mrf.mxu0
      %v1743 = vadd.f32 0.0, %v1742
      %v1744 = vpop.f32.mrf.mxu0
      %1745 = vmatprep.mubr.bf16.mxu0 %v525
      %1746 = vmatmul.mubr.bf16.gmra.mxu0 %v398
      %v1747 = vpop.f32.mrf.mxu0
      %v1748 = vadd.f32 0.0, %v1747
      %v1749 = vpop.f32.mrf.mxu0
      %v1750 = vpop.f32.mrf.mxu0
      %v1751 = vadd.f32 0.0, %v1750
      %v1752 = vpop.f32.mrf.mxu0
      %1753 = vmatprep.mubr.bf16.mxu0 %v537
      %1754 = vmatmul.mubr.bf16.gmra.mxu0 %v399
      %v1755 = vpop.f32.mrf.mxu0
      %v1756 = vadd.f32 0.0, %v1755
      %v1757 = vpop.f32.mrf.mxu0
      %v1758 = vpop.f32.mrf.mxu0
      %v1759 = vadd.f32 0.0, %v1758
      %v1760 = vpop.f32.mrf.mxu0
      %1761 = vmatprep.mubr.bf16.mxu0 %v549
      %1762 = vmatmul.mubr.bf16.gmra.mxu0 %v400
      %v1763 = vpop.f32.mrf.mxu0
      %v1764 = vadd.f32 0.0, %v1763
      %v1765 = vpop.f32.mrf.mxu0
      %v1766 = vpop.f32.mrf.mxu0
      %v1767 = vadd.f32 0.0, %v1766
      %v1768 = vpop.f32.mrf.mxu0
      %1769 = vmatprep.mubr.bf16.mxu0 %v561
      %1770 = vmatmul.mubr.bf16.gmra.mxu0 %v401
      %v1771 = vpop.f32.mrf.mxu0
      %v1772 = vadd.f32 0.0, %v1771
      %v1773 = vpop.f32.mrf.mxu0
      %v1774 = vpop.f32.mrf.mxu0
      %v1775 = vadd.f32 0.0, %v1774
      %v1776 = vpop.f32.mrf.mxu0
      %1777 = vmatprep.mubr.bf16.mxu0 %v573
      %1778 = vmatmul.mubr.bf16.gmra.mxu0 %v402
      %v1779 = vpop.f32.mrf.mxu0
      %v1780 = vadd.f32 0.0, %v1779
      %v1781 = vpop.f32.mrf.mxu0
      %v1782 = vpop.f32.mrf.mxu0
      %v1783 = vadd.f32 0.0, %v1782
      %v1784 = vpop.f32.mrf.mxu0
      %1785 = vmatprep.mubr.bf16.mxu0 %v585
      %1786 = vmatmul.mubr.bf16.gmra.mxu0 %v403
      %v1787 = vpop.f32.mrf.mxu0
      %v1788 = vadd.f32 0.0, %v1787
      %v1789 = vpop.f32.mrf.mxu0
      %v1790 = vpop.f32.mrf.mxu0
      %v1791 = vadd.f32 0.0, %v1790
      %v1792 = vpop.f32.mrf.mxu0
      %1793 = vmatprep.mubr.bf16.mxu0 %v597
      %1794 = vmatmul.mubr.bf16.gmra.mxu0 %v404
      %v1795 = vpop.f32.mrf.mxu0
      %v1796 = vadd.f32 0.0, %v1795
      %v1797 = vpop.f32.mrf.mxu0
      %v1798 = vpop.f32.mrf.mxu0
      %v1799 = vadd.f32 0.0, %v1798
      %v1800 = vpop.f32.mrf.mxu0
      %1801 = vdwg.mxu0
      %1802 = vmatprep.subr.bf16.mxu0 0
      %1803 = vmatpush1.bf16.msra.mxu0 %v1664
      %1804 = vmatprep.subr.bf16.mxu0 0
      %1805 = vmatpush1.bf16.msra.mxu0 %v1663
      %1806 = vmatprep.subr.bf16.mxu0 0
      %1807 = vmatpush1.bf16.msra.mxu0 %v1662
      %1808 = vmatprep.subr.bf16.mxu0 0
      %1809 = vmatpush1.bf16.msra.mxu0 %v1661
      %1810 = vmatprep.subr.bf16.mxu0 0
      %1811 = vmatpush1.bf16.msra.mxu0 %v1660
      %1812 = vmatprep.subr.bf16.mxu0 0
      %1813 = vmatpush1.bf16.msra.mxu0 %v1659
      %1814 = vmatprep.subr.bf16.mxu0 0
      %1815 = vmatpush1.bf16.msra.mxu0 %v1658
      %1816 = vmatprep.subr.bf16.mxu0 0
      %1817 = vmatpush1.bf16.msra.mxu0 %v1657
      %1818 = vmatprep.subr.bf16.mxu0 0
      %1819 = vmatpush2.bf16.msra.mxu0 0
      %1820 = vmatprep.subr.bf16.mxu0 0
      %1821 = vmatpush2.bf16.msra.mxu0 0
      %1822 = vmatprep.subr.bf16.mxu0 0
      %1823 = vmatpush2.bf16.msra.mxu0 0
      %1824 = vmatprep.subr.bf16.mxu0 0
      %1825 = vmatpush2.bf16.msra.mxu0 0
      %1826 = vmatprep.subr.bf16.mxu0 0
      %1827 = vmatpush2.bf16.msra.mxu0 0
      %1828 = vmatprep.subr.bf16.mxu0 0
      %1829 = vmatpush2.bf16.msra.mxu0 0
      %1830 = vmatprep.subr.bf16.mxu0 0
      %1831 = vmatpush2.bf16.msra.mxu0 0
      %1832 = vmatprep.subr.bf16.mxu0 0
      %1833 = vmatpush2.bf16.msra.mxu0 0
      %1834 = vmatprep.mubr.bf16.mxu0 0
      %1835 = vmatmul.mubr.bf16.gmra.mxu0 %v619
      %v1836 = vpop.f32.mrf.mxu0
      %v1837 = vadd.f32 %v1724, %v1836
      %v1838 = vpop.f32.mrf.mxu0
      %v1839 = vpop.f32.mrf.mxu0
      %v1840 = vadd.f32 %v1727, %v1839
      %v1841 = vpop.f32.mrf.mxu0
      %1842 = vmatprep.mubr.bf16.mxu0 0
      %1843 = vmatmul.mubr.bf16.gmra.mxu0 %v622
      %v1844 = vpop.f32.mrf.mxu0
      %v1845 = vadd.f32 %v1732, %v1844
      %v1846 = vpop.f32.mrf.mxu0
      %v1847 = vpop.f32.mrf.mxu0
      %v1848 = vadd.f32 %v1735, %v1847
      %v1849 = vpop.f32.mrf.mxu0
      %1850 = vmatprep.mubr.bf16.mxu0 0
      %1851 = vmatmul.mubr.bf16.gmra.mxu0 %v625
      %v1852 = vpop.f32.mrf.mxu0
      %v1853 = vadd.f32 %v1740, %v1852
      %v1854 = vpop.f32.mrf.mxu0
      %v1855 = vpop.f32.mrf.mxu0
      %v1856 = vadd.f32 %v1743, %v1855
      %v1857 = vpop.f32.mrf.mxu0
      %1858 = vmatprep.mubr.bf16.mxu0 0
      %1859 = vmatmul.mubr.bf16.gmra.mxu0 %v628
      %v1860 = vpop.f32.mrf.mxu0
      %v1861 = vadd.f32 %v1748, %v1860
      %v1862 = vpop.f32.mrf.mxu0
      %v1863 = vpop.f32.mrf.mxu0
      %v1864 = vadd.f32 %v1751, %v1863
      %v1865 = vpop.f32.mrf.mxu0
      %1866 = vmatprep.mubr.bf16.mxu0 0
      %1867 = vmatmul.mubr.bf16.gmra.mxu0 %v631
      %v1868 = vpop.f32.mrf.mxu0
      %v1869 = vadd.f32 %v1756, %v1868
      %v1870 = vpop.f32.mrf.mxu0
      %v1871 = vpop.f32.mrf.mxu0
      %v1872 = vadd.f32 %v1759, %v1871
      %v1873 = vpop.f32.mrf.mxu0
      %1874 = vmatprep.mubr.bf16.mxu0 0
      %1875 = vmatmul.mubr.bf16.gmra.mxu0 %v634
      %v1876 = vpop.f32.mrf.mxu0
      %v1877 = vadd.f32 %v1764, %v1876
      %v1878 = vpop.f32.mrf.mxu0
      %v1879 = vpop.f32.mrf.mxu0
      %v1880 = vadd.f32 %v1767, %v1879
      %v1881 = vpop.f32.mrf.mxu0
      %1882 = vmatprep.mubr.bf16.mxu0 0
      %1883 = vmatmul.mubr.bf16.gmra.mxu0 %v637
      %v1884 = vpop.f32.mrf.mxu0
      %v1885 = vadd.f32 %v1772, %v1884
      %v1886 = vpop.f32.mrf.mxu0
      %v1887 = vpop.f32.mrf.mxu0
      %v1888 = vadd.f32 %v1775, %v1887
      %v1889 = vpop.f32.mrf.mxu0
      %1890 = vmatprep.mubr.bf16.mxu0 0
      %1891 = vmatmul.mubr.bf16.gmra.mxu0 %v640
      %v1892 = vpop.f32.mrf.mxu0
      %v1893 = vadd.f32 %v1780, %v1892
      %v1894 = vpop.f32.mrf.mxu0
      %v1895 = vpop.f32.mrf.mxu0
      %v1896 = vadd.f32 %v1783, %v1895
      %v1897 = vpop.f32.mrf.mxu0
      %1898 = vmatprep.mubr.bf16.mxu0 0
      %1899 = vmatmul.mubr.bf16.gmra.mxu0 %v643
      %v1900 = vpop.f32.mrf.mxu0
      %v1901 = vadd.f32 %v1788, %v1900
      %v1902 = vpop.f32.mrf.mxu0
      %v1903 = vpop.f32.mrf.mxu0
      %v1904 = vadd.f32 %v1791, %v1903
      %v1905 = vpop.f32.mrf.mxu0
      %1906 = vmatprep.mubr.bf16.mxu0 0
      %1907 = vmatmul.mubr.bf16.gmra.mxu0 %v646
      %v1908 = vpop.f32.mrf.mxu0
      %v1909 = vadd.f32 %v1796, %v1908
      %v1910 = vpop.f32.mrf.mxu0
      %v1911 = vpop.f32.mrf.mxu0
      %v1912 = vadd.f32 %v1799, %v1911
      %v1913 = vpop.f32.mrf.mxu0
      %1914 = vdwg.mxu0
      %v1915 = vadd.f32 %v1418, %v1837
      %v1916 = vadd.f32 %v1421, %v1840
      %v1917 = vadd.f32 %v1426, %v1845
      %v1918 = vadd.f32 %v1429, %v1848
      %v1919 = vadd.f32 %v1434, %v1853
      %v1920 = vadd.f32 %v1437, %v1856
      %v1921 = vadd.f32 %v1442, %v1861
      %v1922 = vadd.f32 %v1445, %v1864
      %v1923 = vadd.f32 %v1450, %v1869
      %v1924 = vadd.f32 %v1453, %v1872
      %v1925 = vadd.f32 %v1458, %v1877
      %v1926 = vadd.f32 %v1461, %v1880
      %v1927 = vadd.f32 %v1466, %v1885
      %v1928 = vadd.f32 %v1469, %v1888
      %v1929 = vadd.f32 %v1474, %v1893
      %v1930 = vadd.f32 %v1477, %v1896
      %v1931 = vadd.f32 %v1482, %v1901
      %v1932 = vadd.f32 %v1485, %v1904
      %v1933 = vadd.f32 %v1490, %v1909
      %v1934 = vadd.f32 %v1493, %v1912
      %v1935 = vld [vmem:[%s2] sm:$0x1]
      %v1937 = vlaneseq
      %v1938 = vshrl.u32 %v1937, 7
      %v1939 = vsub.s32 0, %v1938
      %v1940 = vrot.slane %v1935, %v1939
      %v1942 = vmul.f32 %v1915, %v1940
      %v1943 = vmul.f32 %v1916, %v1940
      %v1944 = vmul.f32 %v1917, %v1940
      %v1945 = vmul.f32 %v1918, %v1940
      %v1946 = vmul.f32 %v1919, %v1940
      %v1947 = vmul.f32 %v1920, %v1940
      %v1948 = vmul.f32 %v1921, %v1940
      %v1949 = vmul.f32 %v1922, %v1940
      %v1950 = vmul.f32 %v1923, %v1940
      %v1951 = vmul.f32 %v1924, %v1940
      %v1952 = vmul.f32 %v1925, %v1940
      %v1953 = vmul.f32 %v1926, %v1940
      %v1954 = vmul.f32 %v1927, %v1940
      %v1955 = vmul.f32 %v1928, %v1940
      %v1956 = vmul.f32 %v1929, %v1940
      %v1957 = vmul.f32 %v1930, %v1940
      %v1958 = vmul.f32 %v1931, %v1940
      %v1959 = vmul.f32 %v1932, %v1940
      %v1960 = vmul.f32 %v1933, %v1940
      %v1961 = vmul.f32 %v1934, %v1940
      %v1962 = vld [vmem:[%s3] sm:$0x1]
      %v1964 = vlaneseq
      %v1965 = vshrl.u32 %v1964, 7
      %v1966 = vsub.s32 0, %v1965
      %v1967 = vrot.slane %v1962, %v1966
      %v1969 = vadd.f32 %v1942, %v1967
      %v1970 = vadd.f32 %v1943, %v1967
      %v1971 = vadd.f32 %v1944, %v1967
      %v1972 = vadd.f32 %v1945, %v1967
      %v1973 = vadd.f32 %v1946, %v1967
      %v1974 = vadd.f32 %v1947, %v1967
      %v1975 = vadd.f32 %v1948, %v1967
      %v1976 = vadd.f32 %v1949, %v1967
      %v1977 = vadd.f32 %v1950, %v1967
      %v1978 = vadd.f32 %v1951, %v1967
      %v1979 = vadd.f32 %v1952, %v1967
      %v1980 = vadd.f32 %v1953, %v1967
      %v1981 = vadd.f32 %v1954, %v1967
      %v1982 = vadd.f32 %v1955, %v1967
      %v1983 = vadd.f32 %v1956, %v1967
      %v1984 = vadd.f32 %v1957, %v1967
      %v1985 = vadd.f32 %v1958, %v1967
      %v1986 = vadd.f32 %v1959, %v1967
      %v1987 = vadd.f32 %v1960, %v1967
      %v1988 = vadd.f32 %v1961, %v1967
      %v1989 = vmax.f32 %v1969, 0.0
      %v1990 = vmax.f32 %v1970, 0.0
      %v1991 = vmax.f32 %v1971, 0.0
      %v1992 = vmax.f32 %v1972, 0.0
      %v1993 = vmax.f32 %v1973, 0.0
      %v1994 = vmax.f32 %v1974, 0.0
      %v1995 = vmax.f32 %v1975, 0.0
      %v1996 = vmax.f32 %v1976, 0.0
      %v1997 = vmax.f32 %v1977, 0.0
      %v1998 = vmax.f32 %v1978, 0.0
      %v1999 = vmax.f32 %v1979, 0.0
      %v2000 = vmax.f32 %v1980, 0.0
      %v2001 = vmax.f32 %v1981, 0.0
      %v2002 = vmax.f32 %v1982, 0.0
      %v2003 = vmax.f32 %v1983, 0.0
      %v2004 = vmax.f32 %v1984, 0.0
      %v2005 = vmax.f32 %v1985, 0.0
      %v2006 = vmax.f32 %v1986, 0.0
      %v2007 = vmax.f32 %v1987, 0.0
      %v2008 = vmax.f32 %v1988, 0.0
      %v2009 = vpack.c.bf16 %v1990, %v1989
      %v2010 = vpack.c.bf16 %v1992, %v1991
      %v2011 = vpack.c.bf16 %v1994, %v1993
      %v2012 = vpack.c.bf16 %v1996, %v1995
      %v2013 = vpack.c.bf16 %v1998, %v1997
      %v2014 = vpack.c.bf16 %v2000, %v1999
      %v2015 = vpack.c.bf16 %v2002, %v2001
      %v2016 = vpack.c.bf16 %v2004, %v2003
      %v2017 = vpack.c.bf16 %v2006, %v2005
      %v2018 = vpack.c.bf16 %v2008, %v2007
      %v2029 = vunpack.c.l.b16 %v2009
      %v2030 = vunpack.c.h.b16 %v2009
      %v2031 = vunpack.c.l.b16 %v2010
      %v2032 = vunpack.c.h.b16 %v2010
      %v2033 = vunpack.c.l.b16 %v2011
      %v2034 = vunpack.c.h.b16 %v2011
      %v2035 = vunpack.c.l.b16 %v2012
      %v2036 = vunpack.c.h.b16 %v2012
      %v2037 = vunpack.c.l.b16 %v2013
      %v2038 = vunpack.c.h.b16 %v2013
      %v2039 = vunpack.c.l.b16 %v2014
      %v2040 = vunpack.c.h.b16 %v2014
      %v2041 = vunpack.c.l.b16 %v2015
      %v2042 = vunpack.c.h.b16 %v2015
      %v2043 = vunpack.c.l.b16 %v2016
      %v2044 = vunpack.c.h.b16 %v2016
      %v2045 = vunpack.c.l.b16 %v2017
      %v2046 = vunpack.c.h.b16 %v2017
      %v2047 = vunpack.c.l.b16 %v2018
      %v2048 = vunpack.c.h.b16 %v2018
      %v2049 = vpack.c.b16 %v2029, %v2029
      %v2050 = vpack.c.b16 %v2030, %v2030
      %v2051 = vpack.c.b16 %v2031, %v2031
      %v2052 = vpack.c.b16 %v2032, %v2032
      %v2053 = vpack.c.b16 %v2033, %v2033
      %v2054 = vpack.c.b16 %v2034, %v2034
      %v2055 = vpack.c.b16 %v2035, %v2035
      %v2056 = vpack.c.b16 %v2036, %v2036
      %v2057 = vpack.c.b16 %v2037, %v2037
      %v2058 = vpack.c.b16 %v2038, %v2038
      %v2059 = vpack.c.b16 %v2039, %v2039
      %v2060 = vpack.c.b16 %v2040, %v2040
      %v2061 = vpack.c.b16 %v2041, %v2041
      %v2062 = vpack.c.b16 %v2042, %v2042
      %v2063 = vpack.c.b16 %v2043, %v2043
      %v2064 = vpack.c.b16 %v2044, %v2044
      %v2065 = vpack.c.b16 %v2045, %v2045
      %v2066 = vpack.c.b16 %v2046, %v2046
      %v2067 = vpack.c.b16 %v2047, %v2047
      %v2068 = vpack.c.b16 %v2048, %v2048
      %vm2069 = vsmask.f32 256
      %vm2070 = vsmask.f32 4368
      %vm2071 = vmor %vm2069, %vm2070
      %v2073 = vshrl.u32 %v2049, 16
      %v2075 = vrot.slane %v2073, 7
      %v2076 = vshll.u32 %v2049, 16
      %v2078 = vor.u32 %v2075, %v2076
      %v2079 = vrot.slane %v2075, 4
      %v2081 = vshrl.u32 %v2050, 16
      %v2083 = vrot.slane %v2081, 7
      %v2084 = vshll.u32 %v2050, 16
      %v2086 = vor.u32 %v2083, %v2084
      %v2087 = vsel %vm2071, %v2079, %v2086
      %v2088 = vrot.slane %v2083, 4
      %v2090 = vshrl.u32 %v2051, 16
      %v2092 = vrot.slane %v2090, 7
      %v2093 = vshll.u32 %v2051, 16
      %v2095 = vor.u32 %v2092, %v2093
      %v2096 = vrot.slane %v2092, 4
      %v2098 = vshrl.u32 %v2052, 16
      %v2100 = vrot.slane %v2098, 7
      %v2101 = vshll.u32 %v2052, 16
      %v2103 = vor.u32 %v2100, %v2101
      %v2104 = vsel %vm2071, %v2096, %v2103
      %v2105 = vrot.slane %v2100, 4
      %v2107 = vshrl.u32 %v2053, 16
      %v2109 = vrot.slane %v2107, 7
      %v2110 = vshll.u32 %v2053, 16
      %v2112 = vor.u32 %v2109, %v2110
      %v2113 = vrot.slane %v2109, 4
      %v2115 = vshrl.u32 %v2054, 16
      %v2117 = vrot.slane %v2115, 7
      %v2118 = vshll.u32 %v2054, 16
      %v2120 = vor.u32 %v2117, %v2118
      %v2121 = vsel %vm2071, %v2113, %v2120
      %v2122 = vrot.slane %v2117, 4
      %v2124 = vshrl.u32 %v2055, 16
      %v2126 = vrot.slane %v2124, 7
      %v2127 = vshll.u32 %v2055, 16
      %v2129 = vor.u32 %v2126, %v2127
      %v2130 = vrot.slane %v2126, 4
      %v2132 = vshrl.u32 %v2056, 16
      %v2134 = vrot.slane %v2132, 7
      %v2135 = vshll.u32 %v2056, 16
      %v2137 = vor.u32 %v2134, %v2135
      %v2138 = vsel %vm2071, %v2130, %v2137
      %v2139 = vrot.slane %v2134, 4
      %v2141 = vshrl.u32 %v2057, 16
      %v2143 = vrot.slane %v2141, 7
      %v2144 = vshll.u32 %v2057, 16
      %v2146 = vor.u32 %v2143, %v2144
      %v2147 = vrot.slane %v2143, 4
      %v2149 = vshrl.u32 %v2058, 16
      %v2151 = vrot.slane %v2149, 7
      %v2152 = vshll.u32 %v2058, 16
      %v2154 = vor.u32 %v2151, %v2152
      %v2155 = vsel %vm2071, %v2147, %v2154
      %v2156 = vrot.slane %v2151, 4
      %v2158 = vshrl.u32 %v2059, 16
      %v2160 = vrot.slane %v2158, 7
      %v2161 = vshll.u32 %v2059, 16
      %v2163 = vor.u32 %v2160, %v2161
      %v2164 = vrot.slane %v2160, 4
      %v2166 = vshrl.u32 %v2060, 16
      %v2168 = vrot.slane %v2166, 7
      %v2169 = vshll.u32 %v2060, 16
      %v2171 = vor.u32 %v2168, %v2169
      %v2172 = vsel %vm2071, %v2164, %v2171
      %v2173 = vrot.slane %v2168, 4
      %v2175 = vshrl.u32 %v2061, 16
      %v2177 = vrot.slane %v2175, 7
      %v2178 = vshll.u32 %v2061, 16
      %v2180 = vor.u32 %v2177, %v2178
      %v2181 = vrot.slane %v2177, 4
      %v2183 = vshrl.u32 %v2062, 16
      %v2185 = vrot.slane %v2183, 7
      %v2186 = vshll.u32 %v2062, 16
      %v2188 = vor.u32 %v2185, %v2186
      %v2189 = vsel %vm2071, %v2181, %v2188
      %v2190 = vrot.slane %v2185, 4
      %v2192 = vshrl.u32 %v2063, 16
      %v2194 = vrot.slane %v2192, 7
      %v2195 = vshll.u32 %v2063, 16
      %v2197 = vor.u32 %v2194, %v2195
      %v2198 = vrot.slane %v2194, 4
      %v2200 = vshrl.u32 %v2064, 16
      %v2202 = vrot.slane %v2200, 7
      %v2203 = vshll.u32 %v2064, 16
      %v2205 = vor.u32 %v2202, %v2203
      %v2206 = vsel %vm2071, %v2198, %v2205
      %v2207 = vrot.slane %v2202, 4
      %v2209 = vshrl.u32 %v2065, 16
      %v2211 = vrot.slane %v2209, 7
      %v2212 = vshll.u32 %v2065, 16
      %v2214 = vor.u32 %v2211, %v2212
      %v2215 = vrot.slane %v2211, 4
      %v2217 = vshrl.u32 %v2066, 16
      %v2219 = vrot.slane %v2217, 7
      %v2220 = vshll.u32 %v2066, 16
      %v2222 = vor.u32 %v2219, %v2220
      %v2223 = vsel %vm2071, %v2215, %v2222
      %v2224 = vrot.slane %v2219, 4
      %v2226 = vshrl.u32 %v2067, 16
      %v2228 = vrot.slane %v2226, 7
      %v2229 = vshll.u32 %v2067, 16
      %v2231 = vor.u32 %v2228, %v2229
      %v2232 = vrot.slane %v2228, 4
      %v2234 = vshrl.u32 %v2068, 16
      %v2236 = vrot.slane %v2234, 7
      %v2237 = vshll.u32 %v2068, 16
      %v2239 = vor.u32 %v2236, %v2237
      %v2240 = vsel %vm2071, %v2232, %v2239
      %v2241 = vrot.slane %v2236, 4
      %vm2272 = vcmask 1043456
      %vm2273 = vsmask.f32 7938
      %vm2274 = vmand %vm2272, %vm2273
      %v2275 = vld [vmem:[#allocation2] sm:$0xf]
      %v2276 = vsel %vm2274, %v2078, %v2275
      %2277 = vst [vmem:[#allocation2] sm:$0xf] %v2276
      %2278 = vst [vmem:[#allocation2 + $0x4] sm:$0xf] %v2087
      %vm2279 = vcmask 1040384
      %vm2280 = vmand %vm2279, %vm2069
      %v2281 = vld [vmem:[#allocation2 + $0x8] sm:$0x1]
      %v2282 = vsel %vm2280, %v2088, %v2281
      %2283 = vst [vmem:[#allocation2 + $0x8] sm:$0x1] %v2282
      %v2284 = vld [vmem:[#allocation2 + $0xc] sm:$0xf]
      %v2285 = vsel %vm2274, %v2095, %v2284
      %2286 = vst [vmem:[#allocation2 + $0xc] sm:$0xf] %v2285
      %2287 = vst [vmem:[#allocation2 + $0x10] sm:$0xf] %v2104
      %v2288 = vld [vmem:[#allocation2 + $0x14] sm:$0x1]
      %v2289 = vsel %vm2280, %v2105, %v2288
      %2290 = vst [vmem:[#allocation2 + $0x14] sm:$0x1] %v2289
      %v2291 = vld [vmem:[#allocation2 + $0x18] sm:$0xf]
      %v2292 = vsel %vm2274, %v2112, %v2291
      %2293 = vst [vmem:[#allocation2 + $0x18] sm:$0xf] %v2292
      %2294 = vst [vmem:[#allocation2 + $0x1c] sm:$0xf] %v2121
      %v2295 = vld [vmem:[#allocation2 + $0x20] sm:$0x1]
      %v2296 = vsel %vm2280, %v2122, %v2295
      %2297 = vst [vmem:[#allocation2 + $0x20] sm:$0x1] %v2296
      %v2298 = vld [vmem:[#allocation2 + $0x24] sm:$0xf]
      %v2299 = vsel %vm2274, %v2129, %v2298
      %2300 = vst [vmem:[#allocation2 + $0x24] sm:$0xf] %v2299
      %2301 = vst [vmem:[#allocation2 + $0x28] sm:$0xf] %v2138
      %v2302 = vld [vmem:[#allocation2 + $0x2c] sm:$0x1]
      %v2303 = vsel %vm2280, %v2139, %v2302
      %2304 = vst [vmem:[#allocation2 + $0x2c] sm:$0x1] %v2303
      %v2305 = vld [vmem:[#allocation2 + $0x30] sm:$0xf]
      %v2306 = vsel %vm2274, %v2146, %v2305
      %2307 = vst [vmem:[#allocation2 + $0x30] sm:$0xf] %v2306
      %2308 = vst [vmem:[#allocation2 + $0x34] sm:$0xf] %v2155
      %v2309 = vld [vmem:[#allocation2 + $0x38] sm:$0x1]
      %v2310 = vsel %vm2280, %v2156, %v2309
      %2311 = vst [vmem:[#allocation2 + $0x38] sm:$0x1] %v2310
      %v2312 = vld [vmem:[#allocation2 + $0x3c] sm:$0xf]
      %v2313 = vsel %vm2274, %v2163, %v2312
      %2314 = vst [vmem:[#allocation2 + $0x3c] sm:$0xf] %v2313
      %2315 = vst [vmem:[#allocation2 + $0x40] sm:$0xf] %v2172
      %v2316 = vld [vmem:[#allocation2 + $0x44] sm:$0x1]
      %v2317 = vsel %vm2280, %v2173, %v2316
      %2318 = vst [vmem:[#allocation2 + $0x44] sm:$0x1] %v2317
      %v2319 = vld [vmem:[#allocation2 + $0x48] sm:$0xf]
      %v2320 = vsel %vm2274, %v2180, %v2319
      %2321 = vst [vmem:[#allocation2 + $0x48] sm:$0xf] %v2320
      %2322 = vst [vmem:[#allocation2 + $0x4c] sm:$0xf] %v2189
      %v2323 = vld [vmem:[#allocation2 + $0x50] sm:$0x1]
      %v2324 = vsel %vm2280, %v2190, %v2323
      %2325 = vst [vmem:[#allocation2 + $0x50] sm:$0x1] %v2324
      %v2326 = vld [vmem:[#allocation2 + $0x54] sm:$0xf]
      %v2327 = vsel %vm2274, %v2197, %v2326
      %2328 = vst [vmem:[#allocation2 + $0x54] sm:$0xf] %v2327
      %2329 = vst [vmem:[#allocation2 + $0x58] sm:$0xf] %v2206
      %v2330 = vld [vmem:[#allocation2 + $0x5c] sm:$0x1]
      %v2331 = vsel %vm2280, %v2207, %v2330
      %2332 = vst [vmem:[#allocation2 + $0x5c] sm:$0x1] %v2331
      %v2333 = vld [vmem:[#allocation2 + $0x60] sm:$0xf]
      %v2334 = vsel %vm2274, %v2214, %v2333
      %2335 = vst [vmem:[#allocation2 + $0x60] sm:$0xf] %v2334
      %2336 = vst [vmem:[#allocation2 + $0x64] sm:$0xf] %v2223
      %v2337 = vld [vmem:[#allocation2 + $0x68] sm:$0x1]
      %v2338 = vsel %vm2280, %v2224, %v2337
      %2339 = vst [vmem:[#allocation2 + $0x68] sm:$0x1] %v2338
      %v2340 = vld [vmem:[#allocation2 + $0x6c] sm:$0xf]
      %v2341 = vsel %vm2274, %v2231, %v2340
      %2342 = vst [vmem:[#allocation2 + $0x6c] sm:$0xf] %v2341
      %2343 = vst [vmem:[#allocation2 + $0x70] sm:$0xf] %v2240
      %v2344 = vld [vmem:[#allocation2 + $0x74] sm:$0x1]
      %v2345 = vsel %vm2280, %v2241, %v2344
      %2346 = vst [vmem:[#allocation2 + $0x74] sm:$0x1] %v2345
      %v2347 = vld [vmem:[#allocation2] sm:$0x1]
      %v2348 = vsel %vm2280, 0, %v2347
      %2349 = vst [vmem:[#allocation2] sm:$0x1] %v2348
      %v2350 = vld [vmem:[#allocation2 + $0xc] sm:$0x1]
      %v2351 = vsel %vm2280, 0, %v2350
      %2352 = vst [vmem:[#allocation2 + $0xc] sm:$0x1] %v2351
      %v2353 = vld [vmem:[#allocation2 + $0x18] sm:$0x1]
      %v2354 = vsel %vm2280, 0, %v2353
      %2355 = vst [vmem:[#allocation2 + $0x18] sm:$0x1] %v2354
      %v2356 = vld [vmem:[#allocation2 + $0x24] sm:$0x1]
      %v2357 = vsel %vm2280, 0, %v2356
      %2358 = vst [vmem:[#allocation2 + $0x24] sm:$0x1] %v2357
      %v2359 = vld [vmem:[#allocation2 + $0x30] sm:$0x1]
      %v2360 = vsel %vm2280, 0, %v2359
      %2361 = vst [vmem:[#allocation2 + $0x30] sm:$0x1] %v2360
      %v2362 = vld [vmem:[#allocation2 + $0x3c] sm:$0x1]
      %v2363 = vsel %vm2280, 0, %v2362
      %2364 = vst [vmem:[#allocation2 + $0x3c] sm:$0x1] %v2363
      %v2365 = vld [vmem:[#allocation2 + $0x48] sm:$0x1]
      %v2366 = vsel %vm2280, 0, %v2365
      %2367 = vst [vmem:[#allocation2 + $0x48] sm:$0x1] %v2366
      %v2368 = vld [vmem:[#allocation2 + $0x54] sm:$0x1]
      %v2369 = vsel %vm2280, 0, %v2368
      %2370 = vst [vmem:[#allocation2 + $0x54] sm:$0x1] %v2369
      %v2371 = vld [vmem:[#allocation2 + $0x60] sm:$0x1]
      %v2372 = vsel %vm2280, 0, %v2371
      %2373 = vst [vmem:[#allocation2 + $0x60] sm:$0x1] %v2372
      %v2374 = vld [vmem:[#allocation2 + $0x6c] sm:$0x1]
      %v2375 = vsel %vm2280, 0, %v2374
      %2376 = vst [vmem:[#allocation2 + $0x6c] sm:$0x1] %v2375
      %vm2377 = vmand %vm2279, %vm2273
      %v2378 = vld [vmem:[#allocation2 + $0x8] sm:$0x1]
      %v2379 = vsel %vm2377, 0, %v2378
      %2380 = vst [vmem:[#allocation2 + $0x8] sm:$0x1] %v2379
      %v2381 = vld [vmem:[#allocation2 + $0x14] sm:$0x1]
      %v2382 = vsel %vm2377, 0, %v2381
      %2383 = vst [vmem:[#allocation2 + $0x14] sm:$0x1] %v2382
      %v2384 = vld [vmem:[#allocation2 + $0x20] sm:$0x1]
      %v2385 = vsel %vm2377, 0, %v2384
      %2386 = vst [vmem:[#allocation2 + $0x20] sm:$0x1] %v2385
      %v2387 = vld [vmem:[#allocation2 + $0x2c] sm:$0x1]
      %v2388 = vsel %vm2377, 0, %v2387
      %2389 = vst [vmem:[#allocation2 + $0x2c] sm:$0x1] %v2388
      %v2390 = vld [vmem:[#allocation2 + $0x38] sm:$0x1]
      %v2391 = vsel %vm2377, 0, %v2390
      %2392 = vst [vmem:[#allocation2 + $0x38] sm:$0x1] %v2391
      %v2393 = vld [vmem:[#allocation2 + $0x44] sm:$0x1]
      %v2394 = vsel %vm2377, 0, %v2393
      %2395 = vst [vmem:[#allocation2 + $0x44] sm:$0x1] %v2394
      %v2396 = vld [vmem:[#allocation2 + $0x50] sm:$0x1]
      %v2397 = vsel %vm2377, 0, %v2396
      %2398 = vst [vmem:[#allocation2 + $0x50] sm:$0x1] %v2397
      %v2399 = vld [vmem:[#allocation2 + $0x5c] sm:$0x1]
      %v2400 = vsel %vm2377, 0, %v2399
      %2401 = vst [vmem:[#allocation2 + $0x5c] sm:$0x1] %v2400
      %v2402 = vld [vmem:[#allocation2 + $0x68] sm:$0x1]
      %v2403 = vsel %vm2377, 0, %v2402
      %2404 = vst [vmem:[#allocation2 + $0x68] sm:$0x1] %v2403
      %v2405 = vld [vmem:[#allocation2 + $0x74] sm:$0x1]
      %v2406 = vsel %vm2377, 0, %v2405
      %2407 = vst [vmem:[#allocation2 + $0x74] sm:$0x1] %v2406
      %p2408 = scmp.eq.s32.totalorder %s23, 0
      // Predicated region
      $region49: #{basic_block_forward.1} parent=47 // pred_check
        %p2409 = pneg %p2408
      $region50: #{basic_block_forward.1} parent=47 // pred_check_branch
        %2411 = sbr.rel (%p2409) target = $region52
      $region51: #{basic_block_forward.1} parent=47 // pred_region
        %2412 = vst [vmem:[#allocation2] sm:$0xf] 0
        %2413 = vst [vmem:[#allocation2 + $0x4] sm:$0xf] 0
        %2414 = vst [vmem:[#allocation2 + $0x8] sm:$0x1] 0
      $region52: #{basic_block_forward.1} parent=47 // pred_fallthru
        _
      %p2415 = scmp.eq.s32.totalorder %s23, 1
      // Predicated region
      $region53: #{basic_block_forward.1} parent=47 // pred_check
        %p2416 = pneg %p2415
      $region54: #{basic_block_forward.1} parent=47 // pred_check_branch
        %2418 = sbr.rel (%p2416) target = $region56
      $region55: #{basic_block_forward.1} parent=47 // pred_region
        %s2419 = scalar_lea.vmem [#allocation2], 108
        %2420 = vst [vmem:[%s2419] sm:$0xf] 0
        %2421 = vst [vmem:[%s2419 + $0x4] sm:$0xf] 0
        %2422 = vst [vmem:[%s2419 + $0x8] sm:$0x1] 0
      $region56: #{basic_block_forward.1} parent=47 // pred_fallthru
        _
      %v2423 = vld [vmem:[#allocation2] sm:$0xf]
      %v2424 = vld [vmem:[#allocation2 + $0x4] sm:$0xf]
      %v2425 = vld [vmem:[#allocation2 + $0x8] sm:$0x1]
      %v2426 = vld [vmem:[#allocation2 + $0xc] sm:$0xf]
      %v2427 = vld [vmem:[#allocation2 + $0x10] sm:$0xf]
      %v2428 = vld [vmem:[#allocation2 + $0x14] sm:$0x1]
      %v2429 = vld [vmem:[#allocation2 + $0x18] sm:$0xf]
      %v2430 = vld [vmem:[#allocation2 + $0x1c] sm:$0xf]
      %v2431 = vld [vmem:[#allocation2 + $0x20] sm:$0x1]
      %v2432 = vld [vmem:[#allocation2 + $0x24] sm:$0xf]
      %v2433 = vld [vmem:[#allocation2 + $0x28] sm:$0xf]
      %v2434 = vld [vmem:[#allocation2 + $0x2c] sm:$0x1]
      %v2435 = vld [vmem:[#allocation2 + $0x30] sm:$0xf]
      %v2436 = vld [vmem:[#allocation2 + $0x34] sm:$0xf]
      %v2437 = vld [vmem:[#allocation2 + $0x38] sm:$0x1]
      %v2438 = vld [vmem:[#allocation2 + $0x3c] sm:$0xf]
      %v2439 = vld [vmem:[#allocation2 + $0x40] sm:$0xf]
      %v2440 = vld [vmem:[#allocation2 + $0x44] sm:$0x1]
      %v2441 = vld [vmem:[#allocation2 + $0x48] sm:$0xf]
      %v2442 = vld [vmem:[#allocation2 + $0x4c] sm:$0xf]
      %v2443 = vld [vmem:[#allocation2 + $0x50] sm:$0x1]
      %v2444 = vld [vmem:[#allocation2 + $0x54] sm:$0xf]
      %v2445 = vld [vmem:[#allocation2 + $0x58] sm:$0xf]
      %v2446 = vld [vmem:[#allocation2 + $0x5c] sm:$0x1]
      %v2447 = vld [vmem:[#allocation2 + $0x60] sm:$0xf]
      %v2448 = vld [vmem:[#allocation2 + $0x64] sm:$0xf]
      %v2449 = vld [vmem:[#allocation2 + $0x68] sm:$0x1]
      %v2450 = vld [vmem:[#allocation2 + $0x6c] sm:$0xf]
      %v2451 = vld [vmem:[#allocation2 + $0x70] sm:$0xf]
      %v2452 = vld [vmem:[#allocation2 + $0x74] sm:$0x1]
      %v2473 = vunpack.c.l.b16 %v2423
      %v2474 = vunpack.c.l.b16 %v2424
      %v2475 = vunpack.c.l.b16 %v2426
      %v2476 = vunpack.c.l.b16 %v2427
      %v2477 = vunpack.c.l.b16 %v2429
      %v2478 = vunpack.c.l.b16 %v2430
      %v2479 = vunpack.c.l.b16 %v2432
      %v2480 = vunpack.c.l.b16 %v2433
      %v2481 = vunpack.c.l.b16 %v2435
      %v2482 = vunpack.c.l.b16 %v2436
      %v2483 = vunpack.c.l.b16 %v2438
      %v2484 = vunpack.c.l.b16 %v2439
      %v2485 = vunpack.c.l.b16 %v2441
      %v2486 = vunpack.c.l.b16 %v2442
      %v2487 = vunpack.c.l.b16 %v2444
      %v2488 = vunpack.c.l.b16 %v2445
      %v2489 = vunpack.c.l.b16 %v2447
      %v2490 = vunpack.c.l.b16 %v2448
      %v2491 = vunpack.c.l.b16 %v2450
      %v2492 = vunpack.c.l.b16 %v2451
      %v2493 = vpack.c.b16 %v2474, %v2473
      %v2494 = vpack.c.b16 %v2476, %v2475
      %v2495 = vpack.c.b16 %v2478, %v2477
      %v2496 = vpack.c.b16 %v2480, %v2479
      %v2497 = vpack.c.b16 %v2482, %v2481
      %v2498 = vpack.c.b16 %v2484, %v2483
      %v2499 = vpack.c.b16 %v2486, %v2485
      %v2500 = vpack.c.b16 %v2488, %v2487
      %v2501 = vpack.c.b16 %v2490, %v2489
      %v2502 = vpack.c.b16 %v2492, %v2491
      %v2523 = vunpack.c.l.b16 %v2425
      %v2524 = vunpack.c.l.b16 %v2428
      %v2525 = vunpack.c.l.b16 %v2431
      %v2526 = vunpack.c.l.b16 %v2434
      %v2527 = vunpack.c.l.b16 %v2437
      %v2528 = vunpack.c.l.b16 %v2440
      %v2529 = vunpack.c.l.b16 %v2443
      %v2530 = vunpack.c.l.b16 %v2446
      %v2531 = vunpack.c.l.b16 %v2449
      %v2532 = vunpack.c.l.b16 %v2452
      %v2533 = vpack.c.b16 %v2523, %v2523
      %v2534 = vpack.c.b16 %v2524, %v2524
      %v2535 = vpack.c.b16 %v2525, %v2525
      %v2536 = vpack.c.b16 %v2526, %v2526
      %v2537 = vpack.c.b16 %v2527, %v2527
      %v2538 = vpack.c.b16 %v2528, %v2528
      %v2539 = vpack.c.b16 %v2529, %v2529
      %v2540 = vpack.c.b16 %v2530, %v2530
      %v2541 = vpack.c.b16 %v2531, %v2531
      %v2542 = vpack.c.b16 %v2532, %v2532
      %v2544 = vshrl.u32 %v2493, 16
      %v2546 = vshll.u32 %v2493, 16
      %v2548 = vrot.slane %v2546, 1
      %v2549 = vor.u32 %v2544, %v2548
      %v2551 = vshll.u32 %v2533, 16
      %v2553 = vrot.slane %v2551, 1
      %v2554 = vsel %vm453, %v2549, %v2553
      %v2556 = vshrl.u32 %v2494, 16
      %v2558 = vshll.u32 %v2494, 16
      %v2560 = vrot.slane %v2558, 1
      %v2561 = vor.u32 %v2556, %v2560
      %v2563 = vshll.u32 %v2534, 16
      %v2565 = vrot.slane %v2563, 1
      %v2566 = vsel %vm453, %v2561, %v2565
      %v2568 = vshrl.u32 %v2495, 16
      %v2570 = vshll.u32 %v2495, 16
      %v2572 = vrot.slane %v2570, 1
      %v2573 = vor.u32 %v2568, %v2572
      %v2575 = vshll.u32 %v2535, 16
      %v2577 = vrot.slane %v2575, 1
      %v2578 = vsel %vm453, %v2573, %v2577
      %v2580 = vshrl.u32 %v2496, 16
      %v2582 = vshll.u32 %v2496, 16
      %v2584 = vrot.slane %v2582, 1
      %v2585 = vor.u32 %v2580, %v2584
      %v2587 = vshll.u32 %v2536, 16
      %v2589 = vrot.slane %v2587, 1
      %v2590 = vsel %vm453, %v2585, %v2589
      %v2592 = vshrl.u32 %v2497, 16
      %v2594 = vshll.u32 %v2497, 16
      %v2596 = vrot.slane %v2594, 1
      %v2597 = vor.u32 %v2592, %v2596
      %v2599 = vshll.u32 %v2537, 16
      %v2601 = vrot.slane %v2599, 1
      %v2602 = vsel %vm453, %v2597, %v2601
      %v2604 = vshrl.u32 %v2498, 16
      %v2606 = vshll.u32 %v2498, 16
      %v2608 = vrot.slane %v2606, 1
      %v2609 = vor.u32 %v2604, %v2608
      %v2611 = vshll.u32 %v2538, 16
      %v2613 = vrot.slane %v2611, 1
      %v2614 = vsel %vm453, %v2609, %v2613
      %v2616 = vshrl.u32 %v2499, 16
      %v2618 = vshll.u32 %v2499, 16
      %v2620 = vrot.slane %v2618, 1
      %v2621 = vor.u32 %v2616, %v2620
      %v2623 = vshll.u32 %v2539, 16
      %v2625 = vrot.slane %v2623, 1
      %v2626 = vsel %vm453, %v2621, %v2625
      %v2628 = vshrl.u32 %v2500, 16
      %v2630 = vshll.u32 %v2500, 16
      %v2632 = vrot.slane %v2630, 1
      %v2633 = vor.u32 %v2628, %v2632
      %v2635 = vshll.u32 %v2540, 16
      %v2637 = vrot.slane %v2635, 1
      %v2638 = vsel %vm453, %v2633, %v2637
      %v2640 = vshrl.u32 %v2501, 16
      %v2642 = vshll.u32 %v2501, 16
      %v2644 = vrot.slane %v2642, 1
      %v2645 = vor.u32 %v2640, %v2644
      %v2647 = vshll.u32 %v2541, 16
      %v2649 = vrot.slane %v2647, 1
      %v2650 = vsel %vm453, %v2645, %v2649
      %v2652 = vshrl.u32 %v2502, 16
      %v2654 = vshll.u32 %v2502, 16
      %v2656 = vrot.slane %v2654, 1
      %v2657 = vor.u32 %v2652, %v2656
      %v2659 = vshll.u32 %v2542, 16
      %v2661 = vrot.slane %v2659, 1
      %v2662 = vsel %vm453, %v2657, %v2661
      %v2673 = vrot.slane %v2493, 1
      %v2674 = vrot.slane %v2533, 1
      %v2675 = vsel %vm610, %v2673, %v2674
      %v2676 = vrot.slane %v2494, 1
      %v2677 = vrot.slane %v2534, 1
      %v2678 = vsel %vm610, %v2676, %v2677
      %v2679 = vrot.slane %v2495, 1
      %v2680 = vrot.slane %v2535, 1
      %v2681 = vsel %vm610, %v2679, %v2680
      %v2682 = vrot.slane %v2496, 1
      %v2683 = vrot.slane %v2536, 1
      %v2684 = vsel %vm610, %v2682, %v2683
      %v2685 = vrot.slane %v2497, 1
      %v2686 = vrot.slane %v2537, 1
      %v2687 = vsel %vm610, %v2685, %v2686
      %v2688 = vrot.slane %v2498, 1
      %v2689 = vrot.slane %v2538, 1
      %v2690 = vsel %vm610, %v2688, %v2689
      %v2691 = vrot.slane %v2499, 1
      %v2692 = vrot.slane %v2539, 1
      %v2693 = vsel %vm610, %v2691, %v2692
      %v2694 = vrot.slane %v2500, 1
      %v2695 = vrot.slane %v2540, 1
      %v2696 = vsel %vm610, %v2694, %v2695
      %v2697 = vrot.slane %v2501, 1
      %v2698 = vrot.slane %v2541, 1
      %v2699 = vsel %vm610, %v2697, %v2698
      %v2700 = vrot.slane %v2502, 1
      %v2701 = vrot.slane %v2542, 1
      %v2702 = vsel %vm610, %v2700, %v2701
      %v2713 = vld [vmem:[%s4] sm:$0xf]
      %v2714 = vld [vmem:[%s4 + $0x4] sm:$0xf]
      %v2715 = vld [vmem:[%s4 + $0x8] sm:$0xf]
      %v2716 = vld [vmem:[%s4 + $0xc] sm:$0xf]
      %v2717 = vld [vmem:[%s4 + $0x10] sm:$0xf]
      %v2718 = vld [vmem:[%s4 + $0x14] sm:$0xf]
      %v2719 = vld [vmem:[%s4 + $0x18] sm:$0xf]
      %v2720 = vld [vmem:[%s4 + $0x1c] sm:$0xf]
      %v2721 = vld [vmem:[%s4 + $0x20] sm:$0xf]
      %v2722 = vld [vmem:[%s4 + $0x24] sm:$0xf]
      %v2723 = vld [vmem:[%s4 + $0x28] sm:$0xf]
      %v2724 = vld [vmem:[%s4 + $0x2c] sm:$0xf]
      %v2725 = vld [vmem:[%s4 + $0x30] sm:$0xf]
      %v2726 = vld [vmem:[%s4 + $0x34] sm:$0xf]
      %v2727 = vld [vmem:[%s4 + $0x38] sm:$0xf]
      %v2728 = vld [vmem:[%s4 + $0x3c] sm:$0xf]
      %v2729 = vld [vmem:[%s4 + $0x40] sm:$0xf]
      %v2730 = vld [vmem:[%s4 + $0x44] sm:$0xf]
      %v2731 = vld [vmem:[%s4 + $0x48] sm:$0xf]
      %v2732 = vld [vmem:[%s4 + $0x4c] sm:$0xf]
      %v2733 = vld [vmem:[%s4 + $0x50] sm:$0xf]
      %v2734 = vld [vmem:[%s4 + $0x54] sm:$0xf]
      %v2735 = vld [vmem:[%s4 + $0x58] sm:$0xf]
      %v2736 = vld [vmem:[%s4 + $0x5c] sm:$0xf]
      %v2737 = vld [vmem:[%s4 + $0x60] sm:$0xf]
      %v2738 = vld [vmem:[%s4 + $0x64] sm:$0xf]
      %v2739 = vld [vmem:[%s4 + $0x68] sm:$0xf]
      %v2740 = vld [vmem:[%s4 + $0x6c] sm:$0xf]
      %v2741 = vld [vmem:[%s4 + $0x70] sm:$0xf]
      %v2742 = vld [vmem:[%s4 + $0x74] sm:$0xf]
      %v2743 = vld [vmem:[%s4 + $0x78] sm:$0xf]
      %v2744 = vld [vmem:[%s4 + $0x7c] sm:$0xf]
      %v2745 = vld [vmem:[%s4 + $0x80] sm:$0xf]
      %v2746 = vld [vmem:[%s4 + $0x84] sm:$0xf]
      %v2747 = vld [vmem:[%s4 + $0x88] sm:$0xf]
      %v2748 = vld [vmem:[%s4 + $0x8c] sm:$0xf]
      %v2749 = vld [vmem:[%s4 + $0x90] sm:$0xf]
      %v2750 = vld [vmem:[%s4 + $0x94] sm:$0xf]
      %v2751 = vld [vmem:[%s4 + $0x98] sm:$0xf]
      %v2752 = vld [vmem:[%s4 + $0x9c] sm:$0xf]
      %v2753 = vld [vmem:[%s4 + $0xa0] sm:$0xf]
      %v2754 = vld [vmem:[%s4 + $0xa4] sm:$0xf]
      %v2755 = vld [vmem:[%s4 + $0xa8] sm:$0xf]
      %v2756 = vld [vmem:[%s4 + $0xac] sm:$0xf]
      %v2757 = vld [vmem:[%s4 + $0xb0] sm:$0xf]
      %v2758 = vld [vmem:[%s4 + $0xb4] sm:$0xf]
      %v2759 = vld [vmem:[%s4 + $0xb8] sm:$0xf]
      %v2760 = vld [vmem:[%s4 + $0xbc] sm:$0xf]
      %s2761 = scalar_lea.vmem %s4, 192
      %v2762 = vld [vmem:[%s2761] sm:$0xf]
      %v2763 = vld [vmem:[%s2761 + $0x4] sm:$0xf]
      %v2764 = vld [vmem:[%s2761 + $0x8] sm:$0xf]
      %v2765 = vld [vmem:[%s2761 + $0xc] sm:$0xf]
      %v2766 = vld [vmem:[%s2761 + $0x10] sm:$0xf]
      %v2767 = vld [vmem:[%s2761 + $0x14] sm:$0xf]
      %v2768 = vld [vmem:[%s2761 + $0x18] sm:$0xf]
      %v2769 = vld [vmem:[%s2761 + $0x1c] sm:$0xf]
      %v2770 = vld [vmem:[%s2761 + $0x20] sm:$0xf]
      %v2771 = vld [vmem:[%s2761 + $0x24] sm:$0xf]
      %v2772 = vld [vmem:[%s2761 + $0x28] sm:$0xf]
      %v2773 = vld [vmem:[%s2761 + $0x2c] sm:$0xf]
      %v2774 = vld [vmem:[%s2761 + $0x30] sm:$0xf]
      %v2775 = vld [vmem:[%s2761 + $0x34] sm:$0xf]
      %v2776 = vld [vmem:[%s2761 + $0x38] sm:$0xf]
      %v2777 = vld [vmem:[%s2761 + $0x3c] sm:$0xf]
      %v2778 = vld [vmem:[%s2761 + $0x40] sm:$0xf]
      %v2779 = vld [vmem:[%s2761 + $0x44] sm:$0xf]
      %v2780 = vld [vmem:[%s2761 + $0x48] sm:$0xf]
      %v2781 = vld [vmem:[%s2761 + $0x4c] sm:$0xf]
      %v2782 = vld [vmem:[%s2761 + $0x50] sm:$0xf]
      %v2783 = vld [vmem:[%s2761 + $0x54] sm:$0xf]
      %v2784 = vld [vmem:[%s2761 + $0x58] sm:$0xf]
      %v2785 = vld [vmem:[%s2761 + $0x5c] sm:$0xf]
      %v2786 = vld [vmem:[%s2761 + $0x60] sm:$0xf]
      %v2787 = vld [vmem:[%s2761 + $0x64] sm:$0xf]
      %v2788 = vld [vmem:[%s2761 + $0x68] sm:$0xf]
      %v2789 = vld [vmem:[%s2761 + $0x6c] sm:$0xf]
      %v2790 = vld [vmem:[%s2761 + $0x70] sm:$0xf]
      %v2791 = vld [vmem:[%s2761 + $0x74] sm:$0xf]
      %v2792 = vld [vmem:[%s2761 + $0x78] sm:$0xf]
      %v2793 = vld [vmem:[%s2761 + $0x7c] sm:$0xf]
      %v2794 = vld [vmem:[%s2761 + $0x80] sm:$0xf]
      %v2795 = vld [vmem:[%s2761 + $0x84] sm:$0xf]
      %v2796 = vld [vmem:[%s2761 + $0x88] sm:$0xf]
      %v2797 = vld [vmem:[%s2761 + $0x8c] sm:$0xf]
      %v2798 = vld [vmem:[%s2761 + $0x90] sm:$0xf]
      %v2799 = vld [vmem:[%s2761 + $0x94] sm:$0xf]
      %v2800 = vld [vmem:[%s2761 + $0x98] sm:$0xf]
      %v2801 = vld [vmem:[%s2761 + $0x9c] sm:$0xf]
      %v2802 = vld [vmem:[%s2761 + $0xa0] sm:$0xf]
      %v2803 = vld [vmem:[%s2761 + $0xa4] sm:$0xf]
      %v2804 = vld [vmem:[%s2761 + $0xa8] sm:$0xf]
      %v2805 = vld [vmem:[%s2761 + $0xac] sm:$0xf]
      %v2806 = vld [vmem:[%s2761 + $0xb0] sm:$0xf]
      %v2807 = vld [vmem:[%s2761 + $0xb4] sm:$0xf]
      %v2808 = vld [vmem:[%s2761 + $0xb8] sm:$0xf]
      %v2809 = vld [vmem:[%s2761 + $0xbc] sm:$0xf]
      %v2858 = vunpack.c.l.b16 %v2762
      %v2859 = vunpack.c.l.b16 %v2763
      %v2860 = vunpack.c.l.b16 %v2764
      %v2861 = vunpack.c.l.b16 %v2765
      %v2862 = vunpack.c.l.b16 %v2766
      %v2863 = vunpack.c.l.b16 %v2767
      %v2864 = vunpack.c.l.b16 %v2768
      %v2865 = vunpack.c.l.b16 %v2769
      %v2866 = vunpack.c.l.b16 %v2770
      %v2867 = vunpack.c.l.b16 %v2771
      %v2868 = vunpack.c.l.b16 %v2772
      %v2869 = vunpack.c.l.b16 %v2773
      %v2870 = vunpack.c.l.b16 %v2774
      %v2871 = vunpack.c.l.b16 %v2775
      %v2872 = vunpack.c.l.b16 %v2776
      %v2873 = vunpack.c.l.b16 %v2777
      %v2874 = vunpack.c.l.b16 %v2778
      %v2875 = vunpack.c.l.b16 %v2779
      %v2876 = vunpack.c.l.b16 %v2780
      %v2877 = vunpack.c.l.b16 %v2781
      %v2878 = vunpack.c.l.b16 %v2782
      %v2879 = vunpack.c.l.b16 %v2783
      %v2880 = vunpack.c.l.b16 %v2784
      %v2881 = vunpack.c.l.b16 %v2785
      %v2882 = vunpack.c.l.b16 %v2786
      %v2883 = vunpack.c.l.b16 %v2787
      %v2884 = vunpack.c.l.b16 %v2788
      %v2885 = vunpack.c.l.b16 %v2789
      %v2886 = vunpack.c.l.b16 %v2790
      %v2887 = vunpack.c.l.b16 %v2791
      %v2888 = vunpack.c.l.b16 %v2792
      %v2889 = vunpack.c.l.b16 %v2793
      %v2890 = vunpack.c.l.b16 %v2794
      %v2891 = vunpack.c.l.b16 %v2795
      %v2892 = vunpack.c.l.b16 %v2796
      %v2893 = vunpack.c.l.b16 %v2797
      %v2894 = vunpack.c.l.b16 %v2798
      %v2895 = vunpack.c.l.b16 %v2799
      %v2896 = vunpack.c.l.b16 %v2800
      %v2897 = vunpack.c.l.b16 %v2801
      %v2898 = vunpack.c.l.b16 %v2802
      %v2899 = vunpack.c.l.b16 %v2803
      %v2900 = vunpack.c.l.b16 %v2804
      %v2901 = vunpack.c.l.b16 %v2805
      %v2902 = vunpack.c.l.b16 %v2806
      %v2903 = vunpack.c.l.b16 %v2807
      %v2904 = vunpack.c.l.b16 %v2808
      %v2905 = vunpack.c.l.b16 %v2809
      %v2906 = vpack.c.b16 %v2859, %v2858
      %v2907 = vpack.c.b16 %v2861, %v2860
      %v2908 = vpack.c.b16 %v2863, %v2862
      %v2909 = vpack.c.b16 %v2865, %v2864
      %v2910 = vpack.c.b16 %v2867, %v2866
      %v2911 = vpack.c.b16 %v2869, %v2868
      %v2912 = vpack.c.b16 %v2871, %v2870
      %v2913 = vpack.c.b16 %v2873, %v2872
      %v2914 = vpack.c.b16 %v2875, %v2874
      %v2915 = vpack.c.b16 %v2877, %v2876
      %v2916 = vpack.c.b16 %v2879, %v2878
      %v2917 = vpack.c.b16 %v2881, %v2880
      %v2918 = vpack.c.b16 %v2883, %v2882
      %v2919 = vpack.c.b16 %v2885, %v2884
      %v2920 = vpack.c.b16 %v2887, %v2886
      %v2921 = vpack.c.b16 %v2889, %v2888
      %v2922 = vpack.c.b16 %v2891, %v2890
      %v2923 = vpack.c.b16 %v2893, %v2892
      %v2924 = vpack.c.b16 %v2895, %v2894
      %v2925 = vpack.c.b16 %v2897, %v2896
      %v2926 = vpack.c.b16 %v2899, %v2898
      %v2927 = vpack.c.b16 %v2901, %v2900
      %v2928 = vpack.c.b16 %v2903, %v2902
      %v2929 = vpack.c.b16 %v2905, %v2904
      %2954 = vmatprep.subr.bf16.mxu0 0
      %2955 = vmatpush1.bf16.msra.mxu0 %v2913
      %2956 = vmatprep.subr.bf16.mxu0 0
      %2957 = vmatpush1.bf16.msra.mxu0 %v2912
      %2958 = vmatprep.subr.bf16.mxu0 0
      %2959 = vmatpush1.bf16.msra.mxu0 %v2911
      %2960 = vmatprep.subr.bf16.mxu0 0
      %2961 = vmatpush1.bf16.msra.mxu0 %v2910
      %2962 = vmatprep.subr.bf16.mxu0 0
      %2963 = vmatpush1.bf16.msra.mxu0 %v2909
      %2964 = vmatprep.subr.bf16.mxu0 0
      %2965 = vmatpush1.bf16.msra.mxu0 %v2908
      %2966 = vmatprep.subr.bf16.mxu0 0
      %2967 = vmatpush1.bf16.msra.mxu0 %v2907
      %2968 = vmatprep.subr.bf16.mxu0 0
      %2969 = vmatpush1.bf16.msra.mxu0 %v2906
      %2970 = vmatprep.subr.bf16.mxu0 0
      %2971 = vmatpush2.bf16.msra.mxu0 %v2921
      %2972 = vmatprep.subr.bf16.mxu0 0
      %2973 = vmatpush2.bf16.msra.mxu0 %v2920
      %2974 = vmatprep.subr.bf16.mxu0 0
      %2975 = vmatpush2.bf16.msra.mxu0 %v2919
      %2976 = vmatprep.subr.bf16.mxu0 0
      %2977 = vmatpush2.bf16.msra.mxu0 %v2918
      %2978 = vmatprep.subr.bf16.mxu0 0
      %2979 = vmatpush2.bf16.msra.mxu0 %v2917
      %2980 = vmatprep.subr.bf16.mxu0 0
      %2981 = vmatpush2.bf16.msra.mxu0 %v2916
      %2982 = vmatprep.subr.bf16.mxu0 0
      %2983 = vmatpush2.bf16.msra.mxu0 %v2915
      %2984 = vmatprep.subr.bf16.mxu0 0
      %2985 = vmatpush2.bf16.msra.mxu0 %v2914
      %2986 = vmatprep.mubr.bf16.mxu0 %v2566
      %2987 = vmatmul.mubr.bf16.gmra.mxu0 %v2494
      %v2988 = vpop.f32.mrf.mxu0
      %v2989 = vadd.f32 0.0, %v2988
      %v2990 = vpop.f32.mrf.mxu0
      %v2991 = vpop.f32.mrf.mxu0
      %v2992 = vadd.f32 0.0, %v2991
      %v2993 = vpop.f32.mrf.mxu0
      %2994 = vmatprep.mubr.bf16.mxu0 %v2578
      %2995 = vmatmul.mubr.bf16.gmra.mxu0 %v2495
      %v2996 = vpop.f32.mrf.mxu0
      %v2997 = vadd.f32 0.0, %v2996
      %v2998 = vpop.f32.mrf.mxu0
      %v2999 = vpop.f32.mrf.mxu0
      %v3000 = vadd.f32 0.0, %v2999
      %v3001 = vpop.f32.mrf.mxu0
      %3002 = vmatprep.mubr.bf16.mxu0 %v2590
      %3003 = vmatmul.mubr.bf16.gmra.mxu0 %v2496
      %v3004 = vpop.f32.mrf.mxu0
      %v3005 = vadd.f32 0.0, %v3004
      %v3006 = vpop.f32.mrf.mxu0
      %v3007 = vpop.f32.mrf.mxu0
      %v3008 = vadd.f32 0.0, %v3007
      %v3009 = vpop.f32.mrf.mxu0
      %3010 = vmatprep.mubr.bf16.mxu0 %v2602
      %3011 = vmatmul.mubr.bf16.gmra.mxu0 %v2497
      %v3012 = vpop.f32.mrf.mxu0
      %v3013 = vadd.f32 0.0, %v3012
      %v3014 = vpop.f32.mrf.mxu0
      %v3015 = vpop.f32.mrf.mxu0
      %v3016 = vadd.f32 0.0, %v3015
      %v3017 = vpop.f32.mrf.mxu0
      %3018 = vmatprep.mubr.bf16.mxu0 %v2614
      %3019 = vmatmul.mubr.bf16.gmra.mxu0 %v2498
      %v3020 = vpop.f32.mrf.mxu0
      %v3021 = vadd.f32 0.0, %v3020
      %v3022 = vpop.f32.mrf.mxu0
      %v3023 = vpop.f32.mrf.mxu0
      %v3024 = vadd.f32 0.0, %v3023
      %v3025 = vpop.f32.mrf.mxu0
      %3026 = vmatprep.mubr.bf16.mxu0 %v2626
      %3027 = vmatmul.mubr.bf16.gmra.mxu0 %v2499
      %v3028 = vpop.f32.mrf.mxu0
      %v3029 = vadd.f32 0.0, %v3028
      %v3030 = vpop.f32.mrf.mxu0
      %v3031 = vpop.f32.mrf.mxu0
      %v3032 = vadd.f32 0.0, %v3031
      %v3033 = vpop.f32.mrf.mxu0
      %3034 = vmatprep.mubr.bf16.mxu0 %v2638
      %3035 = vmatmul.mubr.bf16.gmra.mxu0 %v2500
      %v3036 = vpop.f32.mrf.mxu0
      %v3037 = vadd.f32 0.0, %v3036
      %v3038 = vpop.f32.mrf.mxu0
      %v3039 = vpop.f32.mrf.mxu0
      %v3040 = vadd.f32 0.0, %v3039
      %v3041 = vpop.f32.mrf.mxu0
      %3042 = vmatprep.mubr.bf16.mxu0 %v2650
      %3043 = vmatmul.mubr.bf16.gmra.mxu0 %v2501
      %v3044 = vpop.f32.mrf.mxu0
      %v3045 = vadd.f32 0.0, %v3044
      %v3046 = vpop.f32.mrf.mxu0
      %v3047 = vpop.f32.mrf.mxu0
      %v3048 = vadd.f32 0.0, %v3047
      %v3049 = vpop.f32.mrf.mxu0
      %3050 = vdwg.mxu0
      %3051 = vmatprep.subr.bf16.mxu0 0
      %3052 = vmatpush1.bf16.msra.mxu0 %v2929
      %3053 = vmatprep.subr.bf16.mxu0 0
      %3054 = vmatpush1.bf16.msra.mxu0 %v2928
      %3055 = vmatprep.subr.bf16.mxu0 0
      %3056 = vmatpush1.bf16.msra.mxu0 %v2927
      %3057 = vmatprep.subr.bf16.mxu0 0
      %3058 = vmatpush1.bf16.msra.mxu0 %v2926
      %3059 = vmatprep.subr.bf16.mxu0 0
      %3060 = vmatpush1.bf16.msra.mxu0 %v2925
      %3061 = vmatprep.subr.bf16.mxu0 0
      %3062 = vmatpush1.bf16.msra.mxu0 %v2924
      %3063 = vmatprep.subr.bf16.mxu0 0
      %3064 = vmatpush1.bf16.msra.mxu0 %v2923
      %3065 = vmatprep.subr.bf16.mxu0 0
      %3066 = vmatpush1.bf16.msra.mxu0 %v2922
      %3067 = vmatprep.subr.bf16.mxu0 0
      %3068 = vmatpush2.bf16.msra.mxu0 0
      %3069 = vmatprep.subr.bf16.mxu0 0
      %3070 = vmatpush2.bf16.msra.mxu0 0
      %3071 = vmatprep.subr.bf16.mxu0 0
      %3072 = vmatpush2.bf16.msra.mxu0 0
      %3073 = vmatprep.subr.bf16.mxu0 0
      %3074 = vmatpush2.bf16.msra.mxu0 0
      %3075 = vmatprep.subr.bf16.mxu0 0
      %3076 = vmatpush2.bf16.msra.mxu0 0
      %3077 = vmatprep.subr.bf16.mxu0 0
      %3078 = vmatpush2.bf16.msra.mxu0 0
      %3079 = vmatprep.subr.bf16.mxu0 0
      %3080 = vmatpush2.bf16.msra.mxu0 0
      %3081 = vmatprep.subr.bf16.mxu0 0
      %3082 = vmatpush2.bf16.msra.mxu0 0
      %3083 = vmatprep.mubr.bf16.mxu0 0
      %3084 = vmatmul.mubr.bf16.gmra.mxu0 %v2678
      %v3085 = vpop.f32.mrf.mxu0
      %v3086 = vadd.f32 %v2989, %v3085
      %v3087 = vpop.f32.mrf.mxu0
      %v3088 = vpop.f32.mrf.mxu0
      %v3089 = vadd.f32 %v2992, %v3088
      %v3090 = vpop.f32.mrf.mxu0
      %3091 = vmatprep.mubr.bf16.mxu0 0
      %3092 = vmatmul.mubr.bf16.gmra.mxu0 %v2681
      %v3093 = vpop.f32.mrf.mxu0
      %v3094 = vadd.f32 %v2997, %v3093
      %v3095 = vpop.f32.mrf.mxu0
      %v3096 = vpop.f32.mrf.mxu0
      %v3097 = vadd.f32 %v3000, %v3096
      %v3098 = vpop.f32.mrf.mxu0
      %3099 = vmatprep.mubr.bf16.mxu0 0
      %3100 = vmatmul.mubr.bf16.gmra.mxu0 %v2684
      %v3101 = vpop.f32.mrf.mxu0
      %v3102 = vadd.f32 %v3005, %v3101
      %v3103 = vpop.f32.mrf.mxu0
      %v3104 = vpop.f32.mrf.mxu0
      %v3105 = vadd.f32 %v3008, %v3104
      %v3106 = vpop.f32.mrf.mxu0
      %3107 = vmatprep.mubr.bf16.mxu0 0
      %3108 = vmatmul.mubr.bf16.gmra.mxu0 %v2687
      %v3109 = vpop.f32.mrf.mxu0
      %v3110 = vadd.f32 %v3013, %v3109
      %v3111 = vpop.f32.mrf.mxu0
      %v3112 = vpop.f32.mrf.mxu0
      %v3113 = vadd.f32 %v3016, %v3112
      %v3114 = vpop.f32.mrf.mxu0
      %3115 = vmatprep.mubr.bf16.mxu0 0
      %3116 = vmatmul.mubr.bf16.gmra.mxu0 %v2690
      %v3117 = vpop.f32.mrf.mxu0
      %v3118 = vadd.f32 %v3021, %v3117
      %v3119 = vpop.f32.mrf.mxu0
      %v3120 = vpop.f32.mrf.mxu0
      %v3121 = vadd.f32 %v3024, %v3120
      %v3122 = vpop.f32.mrf.mxu0
      %3123 = vmatprep.mubr.bf16.mxu0 0
      %3124 = vmatmul.mubr.bf16.gmra.mxu0 %v2693
      %v3125 = vpop.f32.mrf.mxu0
      %v3126 = vadd.f32 %v3029, %v3125
      %v3127 = vpop.f32.mrf.mxu0
      %v3128 = vpop.f32.mrf.mxu0
      %v3129 = vadd.f32 %v3032, %v3128
      %v3130 = vpop.f32.mrf.mxu0
      %3131 = vmatprep.mubr.bf16.mxu0 0
      %3132 = vmatmul.mubr.bf16.gmra.mxu0 %v2696
      %v3133 = vpop.f32.mrf.mxu0
      %v3134 = vadd.f32 %v3037, %v3133
      %v3135 = vpop.f32.mrf.mxu0
      %v3136 = vpop.f32.mrf.mxu0
      %v3137 = vadd.f32 %v3040, %v3136
      %v3138 = vpop.f32.mrf.mxu0
      %3139 = vmatprep.mubr.bf16.mxu0 0
      %3140 = vmatmul.mubr.bf16.gmra.mxu0 %v2699
      %v3141 = vpop.f32.mrf.mxu0
      %v3142 = vadd.f32 %v3045, %v3141
      %v3143 = vpop.f32.mrf.mxu0
      %v3144 = vpop.f32.mrf.mxu0
      %v3145 = vadd.f32 %v3048, %v3144
      %v3146 = vpop.f32.mrf.mxu0
      %3147 = vdwg.mxu0
      %v3196 = vunpack.c.l.b16 %v2713
      %v3197 = vunpack.c.l.b16 %v2714
      %v3198 = vunpack.c.l.b16 %v2715
      %v3199 = vunpack.c.l.b16 %v2716
      %v3200 = vunpack.c.l.b16 %v2717
      %v3201 = vunpack.c.l.b16 %v2718
      %v3202 = vunpack.c.l.b16 %v2719
      %v3203 = vunpack.c.l.b16 %v2720
      %v3204 = vunpack.c.l.b16 %v2721
      %v3205 = vunpack.c.l.b16 %v2722
      %v3206 = vunpack.c.l.b16 %v2723
      %v3207 = vunpack.c.l.b16 %v2724
      %v3208 = vunpack.c.l.b16 %v2725
      %v3209 = vunpack.c.l.b16 %v2726
      %v3210 = vunpack.c.l.b16 %v2727
      %v3211 = vunpack.c.l.b16 %v2728
      %v3212 = vunpack.c.l.b16 %v2729
      %v3213 = vunpack.c.l.b16 %v2730
      %v3214 = vunpack.c.l.b16 %v2731
      %v3215 = vunpack.c.l.b16 %v2732
      %v3216 = vunpack.c.l.b16 %v2733
      %v3217 = vunpack.c.l.b16 %v2734
      %v3218 = vunpack.c.l.b16 %v2735
      %v3219 = vunpack.c.l.b16 %v2736
      %v3220 = vunpack.c.l.b16 %v2737
      %v3221 = vunpack.c.l.b16 %v2738
      %v3222 = vunpack.c.l.b16 %v2739
      %v3223 = vunpack.c.l.b16 %v2740
      %v3224 = vunpack.c.l.b16 %v2741
      %v3225 = vunpack.c.l.b16 %v2742
      %v3226 = vunpack.c.l.b16 %v2743
      %v3227 = vunpack.c.l.b16 %v2744
      %v3228 = vunpack.c.l.b16 %v2745
      %v3229 = vunpack.c.l.b16 %v2746
      %v3230 = vunpack.c.l.b16 %v2747
      %v3231 = vunpack.c.l.b16 %v2748
      %v3232 = vunpack.c.l.b16 %v2749
      %v3233 = vunpack.c.l.b16 %v2750
      %v3234 = vunpack.c.l.b16 %v2751
      %v3235 = vunpack.c.l.b16 %v2752
      %v3236 = vunpack.c.l.b16 %v2753
      %v3237 = vunpack.c.l.b16 %v2754
      %v3238 = vunpack.c.l.b16 %v2755
      %v3239 = vunpack.c.l.b16 %v2756
      %v3240 = vunpack.c.l.b16 %v2757
      %v3241 = vunpack.c.l.b16 %v2758
      %v3242 = vunpack.c.l.b16 %v2759
      %v3243 = vunpack.c.l.b16 %v2760
      %v3244 = vpack.c.b16 %v3197, %v3196
      %v3245 = vpack.c.b16 %v3199, %v3198
      %v3246 = vpack.c.b16 %v3201, %v3200
      %v3247 = vpack.c.b16 %v3203, %v3202
      %v3248 = vpack.c.b16 %v3205, %v3204
      %v3249 = vpack.c.b16 %v3207, %v3206
      %v3250 = vpack.c.b16 %v3209, %v3208
      %v3251 = vpack.c.b16 %v3211, %v3210
      %v3252 = vpack.c.b16 %v3213, %v3212
      %v3253 = vpack.c.b16 %v3215, %v3214
      %v3254 = vpack.c.b16 %v3217, %v3216
      %v3255 = vpack.c.b16 %v3219, %v3218
      %v3256 = vpack.c.b16 %v3221, %v3220
      %v3257 = vpack.c.b16 %v3223, %v3222
      %v3258 = vpack.c.b16 %v3225, %v3224
      %v3259 = vpack.c.b16 %v3227, %v3226
      %v3260 = vpack.c.b16 %v3229, %v3228
      %v3261 = vpack.c.b16 %v3231, %v3230
      %v3262 = vpack.c.b16 %v3233, %v3232
      %v3263 = vpack.c.b16 %v3235, %v3234
      %v3264 = vpack.c.b16 %v3237, %v3236
      %v3265 = vpack.c.b16 %v3239, %v3238
      %v3266 = vpack.c.b16 %v3241, %v3240
      %v3267 = vpack.c.b16 %v3243, %v3242
      %3292 = vmatprep.subr.bf16.mxu0 0
      %3293 = vmatpush1.bf16.msra.mxu0 %v3251
      %3294 = vmatprep.subr.bf16.mxu0 0
      %3295 = vmatpush1.bf16.msra.mxu0 %v3250
      %3296 = vmatprep.subr.bf16.mxu0 0
      %3297 = vmatpush1.bf16.msra.mxu0 %v3249
      %3298 = vmatprep.subr.bf16.mxu0 0
      %3299 = vmatpush1.bf16.msra.mxu0 %v3248
      %3300 = vmatprep.subr.bf16.mxu0 0
      %3301 = vmatpush1.bf16.msra.mxu0 %v3247
      %3302 = vmatprep.subr.bf16.mxu0 0
      %3303 = vmatpush1.bf16.msra.mxu0 %v3246
      %3304 = vmatprep.subr.bf16.mxu0 0
      %3305 = vmatpush1.bf16.msra.mxu0 %v3245
      %3306 = vmatprep.subr.bf16.mxu0 0
      %3307 = vmatpush1.bf16.msra.mxu0 %v3244
      %3308 = vmatprep.subr.bf16.mxu0 0
      %3309 = vmatpush2.bf16.msra.mxu0 %v3259
      %3310 = vmatprep.subr.bf16.mxu0 0
      %3311 = vmatpush2.bf16.msra.mxu0 %v3258
      %3312 = vmatprep.subr.bf16.mxu0 0
      %3313 = vmatpush2.bf16.msra.mxu0 %v3257
      %3314 = vmatprep.subr.bf16.mxu0 0
      %3315 = vmatpush2.bf16.msra.mxu0 %v3256
      %3316 = vmatprep.subr.bf16.mxu0 0
      %3317 = vmatpush2.bf16.msra.mxu0 %v3255
      %3318 = vmatprep.subr.bf16.mxu0 0
      %3319 = vmatpush2.bf16.msra.mxu0 %v3254
      %3320 = vmatprep.subr.bf16.mxu0 0
      %3321 = vmatpush2.bf16.msra.mxu0 %v3253
      %3322 = vmatprep.subr.bf16.mxu0 0
      %3323 = vmatpush2.bf16.msra.mxu0 %v3252
      %3324 = vmatprep.mubr.bf16.mxu0 %v2554
      %3325 = vmatmul.mubr.bf16.gmra.mxu0 %v2493
      %v3326 = vpop.f32.mrf.mxu0
      %v3327 = vadd.f32 %v3086, %v3326
      %v3328 = vpop.f32.mrf.mxu0
      %v3329 = vpop.f32.mrf.mxu0
      %v3330 = vadd.f32 %v3089, %v3329
      %v3331 = vpop.f32.mrf.mxu0
      %3332 = vmatprep.mubr.bf16.mxu0 %v2566
      %3333 = vmatmul.mubr.bf16.gmra.mxu0 %v2494
      %v3334 = vpop.f32.mrf.mxu0
      %v3335 = vadd.f32 %v3094, %v3334
      %v3336 = vpop.f32.mrf.mxu0
      %v3337 = vpop.f32.mrf.mxu0
      %v3338 = vadd.f32 %v3097, %v3337
      %v3339 = vpop.f32.mrf.mxu0
      %3340 = vmatprep.mubr.bf16.mxu0 %v2578
      %3341 = vmatmul.mubr.bf16.gmra.mxu0 %v2495
      %v3342 = vpop.f32.mrf.mxu0
      %v3343 = vadd.f32 %v3102, %v3342
      %v3344 = vpop.f32.mrf.mxu0
      %v3345 = vpop.f32.mrf.mxu0
      %v3346 = vadd.f32 %v3105, %v3345
      %v3347 = vpop.f32.mrf.mxu0
      %3348 = vmatprep.mubr.bf16.mxu0 %v2590
      %3349 = vmatmul.mubr.bf16.gmra.mxu0 %v2496
      %v3350 = vpop.f32.mrf.mxu0
      %v3351 = vadd.f32 %v3110, %v3350
      %v3352 = vpop.f32.mrf.mxu0
      %v3353 = vpop.f32.mrf.mxu0
      %v3354 = vadd.f32 %v3113, %v3353
      %v3355 = vpop.f32.mrf.mxu0
      %3356 = vmatprep.mubr.bf16.mxu0 %v2602
      %3357 = vmatmul.mubr.bf16.gmra.mxu0 %v2497
      %v3358 = vpop.f32.mrf.mxu0
      %v3359 = vadd.f32 %v3118, %v3358
      %v3360 = vpop.f32.mrf.mxu0
      %v3361 = vpop.f32.mrf.mxu0
      %v3362 = vadd.f32 %v3121, %v3361
      %v3363 = vpop.f32.mrf.mxu0
      %3364 = vmatprep.mubr.bf16.mxu0 %v2614
      %3365 = vmatmul.mubr.bf16.gmra.mxu0 %v2498
      %v3366 = vpop.f32.mrf.mxu0
      %v3367 = vadd.f32 %v3126, %v3366
      %v3368 = vpop.f32.mrf.mxu0
      %v3369 = vpop.f32.mrf.mxu0
      %v3370 = vadd.f32 %v3129, %v3369
      %v3371 = vpop.f32.mrf.mxu0
      %3372 = vmatprep.mubr.bf16.mxu0 %v2626
      %3373 = vmatmul.mubr.bf16.gmra.mxu0 %v2499
      %v3374 = vpop.f32.mrf.mxu0
      %v3375 = vadd.f32 %v3134, %v3374
      %v3376 = vpop.f32.mrf.mxu0
      %v3377 = vpop.f32.mrf.mxu0
      %v3378 = vadd.f32 %v3137, %v3377
      %v3379 = vpop.f32.mrf.mxu0
      %3380 = vmatprep.mubr.bf16.mxu0 %v2638
      %3381 = vmatmul.mubr.bf16.gmra.mxu0 %v2500
      %v3382 = vpop.f32.mrf.mxu0
      %v3383 = vadd.f32 %v3142, %v3382
      %v3384 = vpop.f32.mrf.mxu0
      %v3385 = vpop.f32.mrf.mxu0
      %v3386 = vadd.f32 %v3145, %v3385
      %v3387 = vpop.f32.mrf.mxu0
      %3388 = vdwg.mxu0
      %3389 = vmatprep.subr.bf16.mxu0 0
      %3390 = vmatpush1.bf16.msra.mxu0 %v3267
      %3391 = vmatprep.subr.bf16.mxu0 0
      %3392 = vmatpush1.bf16.msra.mxu0 %v3266
      %3393 = vmatprep.subr.bf16.mxu0 0
      %3394 = vmatpush1.bf16.msra.mxu0 %v3265
      %3395 = vmatprep.subr.bf16.mxu0 0
      %3396 = vmatpush1.bf16.msra.mxu0 %v3264
      %3397 = vmatprep.subr.bf16.mxu0 0
      %3398 = vmatpush1.bf16.msra.mxu0 %v3263
      %3399 = vmatprep.subr.bf16.mxu0 0
      %3400 = vmatpush1.bf16.msra.mxu0 %v3262
      %3401 = vmatprep.subr.bf16.mxu0 0
      %3402 = vmatpush1.bf16.msra.mxu0 %v3261
      %3403 = vmatprep.subr.bf16.mxu0 0
      %3404 = vmatpush1.bf16.msra.mxu0 %v3260
      %3405 = vmatprep.subr.bf16.mxu0 0
      %3406 = vmatpush2.bf16.msra.mxu0 0
      %3407 = vmatprep.subr.bf16.mxu0 0
      %3408 = vmatpush2.bf16.msra.mxu0 0
      %3409 = vmatprep.subr.bf16.mxu0 0
      %3410 = vmatpush2.bf16.msra.mxu0 0
      %3411 = vmatprep.subr.bf16.mxu0 0
      %3412 = vmatpush2.bf16.msra.mxu0 0
      %3413 = vmatprep.subr.bf16.mxu0 0
      %3414 = vmatpush2.bf16.msra.mxu0 0
      %3415 = vmatprep.subr.bf16.mxu0 0
      %3416 = vmatpush2.bf16.msra.mxu0 0
      %3417 = vmatprep.subr.bf16.mxu0 0
      %3418 = vmatpush2.bf16.msra.mxu0 0
      %3419 = vmatprep.subr.bf16.mxu0 0
      %3420 = vmatpush2.bf16.msra.mxu0 0
      %3421 = vmatprep.mubr.bf16.mxu0 0
      %3422 = vmatmul.mubr.bf16.gmra.mxu0 %v2675
      %v3423 = vpop.f32.mrf.mxu0
      %v3424 = vadd.f32 %v3327, %v3423
      %v3425 = vpop.f32.mrf.mxu0
      %v3426 = vpop.f32.mrf.mxu0
      %v3427 = vadd.f32 %v3330, %v3426
      %v3428 = vpop.f32.mrf.mxu0
      %3429 = vmatprep.mubr.bf16.mxu0 0
      %3430 = vmatmul.mubr.bf16.gmra.mxu0 %v2678
      %v3431 = vpop.f32.mrf.mxu0
      %v3432 = vadd.f32 %v3335, %v3431
      %v3433 = vpop.f32.mrf.mxu0
      %v3434 = vpop.f32.mrf.mxu0
      %v3435 = vadd.f32 %v3338, %v3434
      %v3436 = vpop.f32.mrf.mxu0
      %3437 = vmatprep.mubr.bf16.mxu0 0
      %3438 = vmatmul.mubr.bf16.gmra.mxu0 %v2681
      %v3439 = vpop.f32.mrf.mxu0
      %v3440 = vadd.f32 %v3343, %v3439
      %v3441 = vpop.f32.mrf.mxu0
      %v3442 = vpop.f32.mrf.mxu0
      %v3443 = vadd.f32 %v3346, %v3442
      %v3444 = vpop.f32.mrf.mxu0
      %3445 = vmatprep.mubr.bf16.mxu0 0
      %3446 = vmatmul.mubr.bf16.gmra.mxu0 %v2684
      %v3447 = vpop.f32.mrf.mxu0
      %v3448 = vadd.f32 %v3351, %v3447
      %v3449 = vpop.f32.mrf.mxu0
      %v3450 = vpop.f32.mrf.mxu0
      %v3451 = vadd.f32 %v3354, %v3450
      %v3452 = vpop.f32.mrf.mxu0
      %3453 = vmatprep.mubr.bf16.mxu0 0
      %3454 = vmatmul.mubr.bf16.gmra.mxu0 %v2687
      %v3455 = vpop.f32.mrf.mxu0
      %v3456 = vadd.f32 %v3359, %v3455
      %v3457 = vpop.f32.mrf.mxu0
      %v3458 = vpop.f32.mrf.mxu0
      %v3459 = vadd.f32 %v3362, %v3458
      %v3460 = vpop.f32.mrf.mxu0
      %3461 = vmatprep.mubr.bf16.mxu0 0
      %3462 = vmatmul.mubr.bf16.gmra.mxu0 %v2690
      %v3463 = vpop.f32.mrf.mxu0
      %v3464 = vadd.f32 %v3367, %v3463
      %v3465 = vpop.f32.mrf.mxu0
      %v3466 = vpop.f32.mrf.mxu0
      %v3467 = vadd.f32 %v3370, %v3466
      %v3468 = vpop.f32.mrf.mxu0
      %3469 = vmatprep.mubr.bf16.mxu0 0
      %3470 = vmatmul.mubr.bf16.gmra.mxu0 %v2693
      %v3471 = vpop.f32.mrf.mxu0
      %v3472 = vadd.f32 %v3375, %v3471
      %v3473 = vpop.f32.mrf.mxu0
      %v3474 = vpop.f32.mrf.mxu0
      %v3475 = vadd.f32 %v3378, %v3474
      %v3476 = vpop.f32.mrf.mxu0
      %3477 = vmatprep.mubr.bf16.mxu0 0
      %3478 = vmatmul.mubr.bf16.gmra.mxu0 %v2696
      %v3479 = vpop.f32.mrf.mxu0
      %v3480 = vadd.f32 %v3383, %v3479
      %v3481 = vpop.f32.mrf.mxu0
      %v3482 = vpop.f32.mrf.mxu0
      %v3483 = vadd.f32 %v3386, %v3482
      %v3484 = vpop.f32.mrf.mxu0
      %3485 = vdwg.mxu0
      %s3486 = scalar_lea.vmem %s4, 384
      %v3487 = vld [vmem:[%s3486] sm:$0xf]
      %v3488 = vld [vmem:[%s3486 + $0x4] sm:$0xf]
      %v3489 = vld [vmem:[%s3486 + $0x8] sm:$0xf]
      %v3490 = vld [vmem:[%s3486 + $0xc] sm:$0xf]
      %v3491 = vld [vmem:[%s3486 + $0x10] sm:$0xf]
      %v3492 = vld [vmem:[%s3486 + $0x14] sm:$0xf]
      %v3493 = vld [vmem:[%s3486 + $0x18] sm:$0xf]
      %v3494 = vld [vmem:[%s3486 + $0x1c] sm:$0xf]
      %v3495 = vld [vmem:[%s3486 + $0x20] sm:$0xf]
      %v3496 = vld [vmem:[%s3486 + $0x24] sm:$0xf]
      %v3497 = vld [vmem:[%s3486 + $0x28] sm:$0xf]
      %v3498 = vld [vmem:[%s3486 + $0x2c] sm:$0xf]
      %v3499 = vld [vmem:[%s3486 + $0x30] sm:$0xf]
      %v3500 = vld [vmem:[%s3486 + $0x34] sm:$0xf]
      %v3501 = vld [vmem:[%s3486 + $0x38] sm:$0xf]
      %v3502 = vld [vmem:[%s3486 + $0x3c] sm:$0xf]
      %v3503 = vld [vmem:[%s3486 + $0x40] sm:$0xf]
      %v3504 = vld [vmem:[%s3486 + $0x44] sm:$0xf]
      %v3505 = vld [vmem:[%s3486 + $0x48] sm:$0xf]
      %v3506 = vld [vmem:[%s3486 + $0x4c] sm:$0xf]
      %v3507 = vld [vmem:[%s3486 + $0x50] sm:$0xf]
      %v3508 = vld [vmem:[%s3486 + $0x54] sm:$0xf]
      %v3509 = vld [vmem:[%s3486 + $0x58] sm:$0xf]
      %v3510 = vld [vmem:[%s3486 + $0x5c] sm:$0xf]
      %v3511 = vld [vmem:[%s3486 + $0x60] sm:$0xf]
      %v3512 = vld [vmem:[%s3486 + $0x64] sm:$0xf]
      %v3513 = vld [vmem:[%s3486 + $0x68] sm:$0xf]
      %v3514 = vld [vmem:[%s3486 + $0x6c] sm:$0xf]
      %v3515 = vld [vmem:[%s3486 + $0x70] sm:$0xf]
      %v3516 = vld [vmem:[%s3486 + $0x74] sm:$0xf]
      %v3517 = vld [vmem:[%s3486 + $0x78] sm:$0xf]
      %v3518 = vld [vmem:[%s3486 + $0x7c] sm:$0xf]
      %v3519 = vld [vmem:[%s3486 + $0x80] sm:$0xf]
      %v3520 = vld [vmem:[%s3486 + $0x84] sm:$0xf]
      %v3521 = vld [vmem:[%s3486 + $0x88] sm:$0xf]
      %v3522 = vld [vmem:[%s3486 + $0x8c] sm:$0xf]
      %v3523 = vld [vmem:[%s3486 + $0x90] sm:$0xf]
      %v3524 = vld [vmem:[%s3486 + $0x94] sm:$0xf]
      %v3525 = vld [vmem:[%s3486 + $0x98] sm:$0xf]
      %v3526 = vld [vmem:[%s3486 + $0x9c] sm:$0xf]
      %v3527 = vld [vmem:[%s3486 + $0xa0] sm:$0xf]
      %v3528 = vld [vmem:[%s3486 + $0xa4] sm:$0xf]
      %v3529 = vld [vmem:[%s3486 + $0xa8] sm:$0xf]
      %v3530 = vld [vmem:[%s3486 + $0xac] sm:$0xf]
      %v3531 = vld [vmem:[%s3486 + $0xb0] sm:$0xf]
      %v3532 = vld [vmem:[%s3486 + $0xb4] sm:$0xf]
      %v3533 = vld [vmem:[%s3486 + $0xb8] sm:$0xf]
      %v3534 = vld [vmem:[%s3486 + $0xbc] sm:$0xf]
      %v3583 = vunpack.c.l.b16 %v3487
      %v3584 = vunpack.c.l.b16 %v3488
      %v3585 = vunpack.c.l.b16 %v3489
      %v3586 = vunpack.c.l.b16 %v3490
      %v3587 = vunpack.c.l.b16 %v3491
      %v3588 = vunpack.c.l.b16 %v3492
      %v3589 = vunpack.c.l.b16 %v3493
      %v3590 = vunpack.c.l.b16 %v3494
      %v3591 = vunpack.c.l.b16 %v3495
      %v3592 = vunpack.c.l.b16 %v3496
      %v3593 = vunpack.c.l.b16 %v3497
      %v3594 = vunpack.c.l.b16 %v3498
      %v3595 = vunpack.c.l.b16 %v3499
      %v3596 = vunpack.c.l.b16 %v3500
      %v3597 = vunpack.c.l.b16 %v3501
      %v3598 = vunpack.c.l.b16 %v3502
      %v3599 = vunpack.c.l.b16 %v3503
      %v3600 = vunpack.c.l.b16 %v3504
      %v3601 = vunpack.c.l.b16 %v3505
      %v3602 = vunpack.c.l.b16 %v3506
      %v3603 = vunpack.c.l.b16 %v3507
      %v3604 = vunpack.c.l.b16 %v3508
      %v3605 = vunpack.c.l.b16 %v3509
      %v3606 = vunpack.c.l.b16 %v3510
      %v3607 = vunpack.c.l.b16 %v3511
      %v3608 = vunpack.c.l.b16 %v3512
      %v3609 = vunpack.c.l.b16 %v3513
      %v3610 = vunpack.c.l.b16 %v3514
      %v3611 = vunpack.c.l.b16 %v3515
      %v3612 = vunpack.c.l.b16 %v3516
      %v3613 = vunpack.c.l.b16 %v3517
      %v3614 = vunpack.c.l.b16 %v3518
      %v3615 = vunpack.c.l.b16 %v3519
      %v3616 = vunpack.c.l.b16 %v3520
      %v3617 = vunpack.c.l.b16 %v3521
      %v3618 = vunpack.c.l.b16 %v3522
      %v3619 = vunpack.c.l.b16 %v3523
      %v3620 = vunpack.c.l.b16 %v3524
      %v3621 = vunpack.c.l.b16 %v3525
      %v3622 = vunpack.c.l.b16 %v3526
      %v3623 = vunpack.c.l.b16 %v3527
      %v3624 = vunpack.c.l.b16 %v3528
      %v3625 = vunpack.c.l.b16 %v3529
      %v3626 = vunpack.c.l.b16 %v3530
      %v3627 = vunpack.c.l.b16 %v3531
      %v3628 = vunpack.c.l.b16 %v3532
      %v3629 = vunpack.c.l.b16 %v3533
      %v3630 = vunpack.c.l.b16 %v3534
      %v3631 = vpack.c.b16 %v3584, %v3583
      %v3632 = vpack.c.b16 %v3586, %v3585
      %v3633 = vpack.c.b16 %v3588, %v3587
      %v3634 = vpack.c.b16 %v3590, %v3589
      %v3635 = vpack.c.b16 %v3592, %v3591
      %v3636 = vpack.c.b16 %v3594, %v3593
      %v3637 = vpack.c.b16 %v3596, %v3595
      %v3638 = vpack.c.b16 %v3598, %v3597
      %v3639 = vpack.c.b16 %v3600, %v3599
      %v3640 = vpack.c.b16 %v3602, %v3601
      %v3641 = vpack.c.b16 %v3604, %v3603
      %v3642 = vpack.c.b16 %v3606, %v3605
      %v3643 = vpack.c.b16 %v3608, %v3607
      %v3644 = vpack.c.b16 %v3610, %v3609
      %v3645 = vpack.c.b16 %v3612, %v3611
      %v3646 = vpack.c.b16 %v3614, %v3613
      %v3647 = vpack.c.b16 %v3616, %v3615
      %v3648 = vpack.c.b16 %v3618, %v3617
      %v3649 = vpack.c.b16 %v3620, %v3619
      %v3650 = vpack.c.b16 %v3622, %v3621
      %v3651 = vpack.c.b16 %v3624, %v3623
      %v3652 = vpack.c.b16 %v3626, %v3625
      %v3653 = vpack.c.b16 %v3628, %v3627
      %v3654 = vpack.c.b16 %v3630, %v3629
      %3679 = vmatprep.subr.bf16.mxu0 0
      %3680 = vmatpush1.bf16.msra.mxu0 %v3638
      %3681 = vmatprep.subr.bf16.mxu0 0
      %3682 = vmatpush1.bf16.msra.mxu0 %v3637
      %3683 = vmatprep.subr.bf16.mxu0 0
      %3684 = vmatpush1.bf16.msra.mxu0 %v3636
      %3685 = vmatprep.subr.bf16.mxu0 0
      %3686 = vmatpush1.bf16.msra.mxu0 %v3635
      %3687 = vmatprep.subr.bf16.mxu0 0
      %3688 = vmatpush1.bf16.msra.mxu0 %v3634
      %3689 = vmatprep.subr.bf16.mxu0 0
      %3690 = vmatpush1.bf16.msra.mxu0 %v3633
      %3691 = vmatprep.subr.bf16.mxu0 0
      %3692 = vmatpush1.bf16.msra.mxu0 %v3632
      %3693 = vmatprep.subr.bf16.mxu0 0
      %3694 = vmatpush1.bf16.msra.mxu0 %v3631
      %3695 = vmatprep.subr.bf16.mxu0 0
      %3696 = vmatpush2.bf16.msra.mxu0 %v3646
      %3697 = vmatprep.subr.bf16.mxu0 0
      %3698 = vmatpush2.bf16.msra.mxu0 %v3645
      %3699 = vmatprep.subr.bf16.mxu0 0
      %3700 = vmatpush2.bf16.msra.mxu0 %v3644
      %3701 = vmatprep.subr.bf16.mxu0 0
      %3702 = vmatpush2.bf16.msra.mxu0 %v3643
      %3703 = vmatprep.subr.bf16.mxu0 0
      %3704 = vmatpush2.bf16.msra.mxu0 %v3642
      %3705 = vmatprep.subr.bf16.mxu0 0
      %3706 = vmatpush2.bf16.msra.mxu0 %v3641
      %3707 = vmatprep.subr.bf16.mxu0 0
      %3708 = vmatpush2.bf16.msra.mxu0 %v3640
      %3709 = vmatprep.subr.bf16.mxu0 0
      %3710 = vmatpush2.bf16.msra.mxu0 %v3639
      %3711 = vmatprep.mubr.bf16.mxu0 %v2578
      %3712 = vmatmul.mubr.bf16.gmra.mxu0 %v2495
      %v3713 = vpop.f32.mrf.mxu0
      %v3714 = vadd.f32 0.0, %v3713
      %v3715 = vpop.f32.mrf.mxu0
      %v3716 = vpop.f32.mrf.mxu0
      %v3717 = vadd.f32 0.0, %v3716
      %v3718 = vpop.f32.mrf.mxu0
      %3719 = vmatprep.mubr.bf16.mxu0 %v2590
      %3720 = vmatmul.mubr.bf16.gmra.mxu0 %v2496
      %v3721 = vpop.f32.mrf.mxu0
      %v3722 = vadd.f32 0.0, %v3721
      %v3723 = vpop.f32.mrf.mxu0
      %v3724 = vpop.f32.mrf.mxu0
      %v3725 = vadd.f32 0.0, %v3724
      %v3726 = vpop.f32.mrf.mxu0
      %3727 = vmatprep.mubr.bf16.mxu0 %v2602
      %3728 = vmatmul.mubr.bf16.gmra.mxu0 %v2497
      %v3729 = vpop.f32.mrf.mxu0
      %v3730 = vadd.f32 0.0, %v3729
      %v3731 = vpop.f32.mrf.mxu0
      %v3732 = vpop.f32.mrf.mxu0
      %v3733 = vadd.f32 0.0, %v3732
      %v3734 = vpop.f32.mrf.mxu0
      %3735 = vmatprep.mubr.bf16.mxu0 %v2614
      %3736 = vmatmul.mubr.bf16.gmra.mxu0 %v2498
      %v3737 = vpop.f32.mrf.mxu0
      %v3738 = vadd.f32 0.0, %v3737
      %v3739 = vpop.f32.mrf.mxu0
      %v3740 = vpop.f32.mrf.mxu0
      %v3741 = vadd.f32 0.0, %v3740
      %v3742 = vpop.f32.mrf.mxu0
      %3743 = vmatprep.mubr.bf16.mxu0 %v2626
      %3744 = vmatmul.mubr.bf16.gmra.mxu0 %v2499
      %v3745 = vpop.f32.mrf.mxu0
      %v3746 = vadd.f32 0.0, %v3745
      %v3747 = vpop.f32.mrf.mxu0
      %v3748 = vpop.f32.mrf.mxu0
      %v3749 = vadd.f32 0.0, %v3748
      %v3750 = vpop.f32.mrf.mxu0
      %3751 = vmatprep.mubr.bf16.mxu0 %v2638
      %3752 = vmatmul.mubr.bf16.gmra.mxu0 %v2500
      %v3753 = vpop.f32.mrf.mxu0
      %v3754 = vadd.f32 0.0, %v3753
      %v3755 = vpop.f32.mrf.mxu0
      %v3756 = vpop.f32.mrf.mxu0
      %v3757 = vadd.f32 0.0, %v3756
      %v3758 = vpop.f32.mrf.mxu0
      %3759 = vmatprep.mubr.bf16.mxu0 %v2650
      %3760 = vmatmul.mubr.bf16.gmra.mxu0 %v2501
      %v3761 = vpop.f32.mrf.mxu0
      %v3762 = vadd.f32 0.0, %v3761
      %v3763 = vpop.f32.mrf.mxu0
      %v3764 = vpop.f32.mrf.mxu0
      %v3765 = vadd.f32 0.0, %v3764
      %v3766 = vpop.f32.mrf.mxu0
      %3767 = vmatprep.mubr.bf16.mxu0 %v2662
      %3768 = vmatmul.mubr.bf16.gmra.mxu0 %v2502
      %v3769 = vpop.f32.mrf.mxu0
      %v3770 = vadd.f32 0.0, %v3769
      %v3771 = vpop.f32.mrf.mxu0
      %v3772 = vpop.f32.mrf.mxu0
      %v3773 = vadd.f32 0.0, %v3772
      %v3774 = vpop.f32.mrf.mxu0
      %3775 = vdwg.mxu0
      %3776 = vmatprep.subr.bf16.mxu0 0
      %3777 = vmatpush1.bf16.msra.mxu0 %v3654
      %3778 = vmatprep.subr.bf16.mxu0 0
      %3779 = vmatpush1.bf16.msra.mxu0 %v3653
      %3780 = vmatprep.subr.bf16.mxu0 0
      %3781 = vmatpush1.bf16.msra.mxu0 %v3652
      %3782 = vmatprep.subr.bf16.mxu0 0
      %3783 = vmatpush1.bf16.msra.mxu0 %v3651
      %3784 = vmatprep.subr.bf16.mxu0 0
      %3785 = vmatpush1.bf16.msra.mxu0 %v3650
      %3786 = vmatprep.subr.bf16.mxu0 0
      %3787 = vmatpush1.bf16.msra.mxu0 %v3649
      %3788 = vmatprep.subr.bf16.mxu0 0
      %3789 = vmatpush1.bf16.msra.mxu0 %v3648
      %3790 = vmatprep.subr.bf16.mxu0 0
      %3791 = vmatpush1.bf16.msra.mxu0 %v3647
      %3792 = vmatprep.subr.bf16.mxu0 0
      %3793 = vmatpush2.bf16.msra.mxu0 0
      %3794 = vmatprep.subr.bf16.mxu0 0
      %3795 = vmatpush2.bf16.msra.mxu0 0
      %3796 = vmatprep.subr.bf16.mxu0 0
      %3797 = vmatpush2.bf16.msra.mxu0 0
      %3798 = vmatprep.subr.bf16.mxu0 0
      %3799 = vmatpush2.bf16.msra.mxu0 0
      %3800 = vmatprep.subr.bf16.mxu0 0
      %3801 = vmatpush2.bf16.msra.mxu0 0
      %3802 = vmatprep.subr.bf16.mxu0 0
      %3803 = vmatpush2.bf16.msra.mxu0 0
      %3804 = vmatprep.subr.bf16.mxu0 0
      %3805 = vmatpush2.bf16.msra.mxu0 0
      %3806 = vmatprep.subr.bf16.mxu0 0
      %3807 = vmatpush2.bf16.msra.mxu0 0
      %3808 = vmatprep.mubr.bf16.mxu0 0
      %3809 = vmatmul.mubr.bf16.gmra.mxu0 %v2681
      %v3810 = vpop.f32.mrf.mxu0
      %v3811 = vadd.f32 %v3714, %v3810
      %v3812 = vpop.f32.mrf.mxu0
      %v3813 = vpop.f32.mrf.mxu0
      %v3814 = vadd.f32 %v3717, %v3813
      %v3815 = vpop.f32.mrf.mxu0
      %3816 = vmatprep.mubr.bf16.mxu0 0
      %3817 = vmatmul.mubr.bf16.gmra.mxu0 %v2684
      %v3818 = vpop.f32.mrf.mxu0
      %v3819 = vadd.f32 %v3722, %v3818
      %v3820 = vpop.f32.mrf.mxu0
      %v3821 = vpop.f32.mrf.mxu0
      %v3822 = vadd.f32 %v3725, %v3821
      %v3823 = vpop.f32.mrf.mxu0
      %3824 = vmatprep.mubr.bf16.mxu0 0
      %3825 = vmatmul.mubr.bf16.gmra.mxu0 %v2687
      %v3826 = vpop.f32.mrf.mxu0
      %v3827 = vadd.f32 %v3730, %v3826
      %v3828 = vpop.f32.mrf.mxu0
      %v3829 = vpop.f32.mrf.mxu0
      %v3830 = vadd.f32 %v3733, %v3829
      %v3831 = vpop.f32.mrf.mxu0
      %3832 = vmatprep.mubr.bf16.mxu0 0
      %3833 = vmatmul.mubr.bf16.gmra.mxu0 %v2690
      %v3834 = vpop.f32.mrf.mxu0
      %v3835 = vadd.f32 %v3738, %v3834
      %v3836 = vpop.f32.mrf.mxu0
      %v3837 = vpop.f32.mrf.mxu0
      %v3838 = vadd.f32 %v3741, %v3837
      %v3839 = vpop.f32.mrf.mxu0
      %3840 = vmatprep.mubr.bf16.mxu0 0
      %3841 = vmatmul.mubr.bf16.gmra.mxu0 %v2693
      %v3842 = vpop.f32.mrf.mxu0
      %v3843 = vadd.f32 %v3746, %v3842
      %v3844 = vpop.f32.mrf.mxu0
      %v3845 = vpop.f32.mrf.mxu0
      %v3846 = vadd.f32 %v3749, %v3845
      %v3847 = vpop.f32.mrf.mxu0
      %3848 = vmatprep.mubr.bf16.mxu0 0
      %3849 = vmatmul.mubr.bf16.gmra.mxu0 %v2696
      %v3850 = vpop.f32.mrf.mxu0
      %v3851 = vadd.f32 %v3754, %v3850
      %v3852 = vpop.f32.mrf.mxu0
      %v3853 = vpop.f32.mrf.mxu0
      %v3854 = vadd.f32 %v3757, %v3853
      %v3855 = vpop.f32.mrf.mxu0
      %3856 = vmatprep.mubr.bf16.mxu0 0
      %3857 = vmatmul.mubr.bf16.gmra.mxu0 %v2699
      %v3858 = vpop.f32.mrf.mxu0
      %v3859 = vadd.f32 %v3762, %v3858
      %v3860 = vpop.f32.mrf.mxu0
      %v3861 = vpop.f32.mrf.mxu0
      %v3862 = vadd.f32 %v3765, %v3861
      %v3863 = vpop.f32.mrf.mxu0
      %3864 = vmatprep.mubr.bf16.mxu0 0
      %3865 = vmatmul.mubr.bf16.gmra.mxu0 %v2702
      %v3866 = vpop.f32.mrf.mxu0
      %v3867 = vadd.f32 %v3770, %v3866
      %v3868 = vpop.f32.mrf.mxu0
      %v3869 = vpop.f32.mrf.mxu0
      %v3870 = vadd.f32 %v3773, %v3869
      %v3871 = vpop.f32.mrf.mxu0
      %3872 = vdwg.mxu0
      %v3873 = vadd.f32 %v3424, %v3811
      %v3874 = vadd.f32 %v3427, %v3814
      %v3875 = vadd.f32 %v3432, %v3819
      %v3876 = vadd.f32 %v3435, %v3822
      %v3877 = vadd.f32 %v3440, %v3827
      %v3878 = vadd.f32 %v3443, %v3830
      %v3879 = vadd.f32 %v3448, %v3835
      %v3880 = vadd.f32 %v3451, %v3838
      %v3881 = vadd.f32 %v3456, %v3843
      %v3882 = vadd.f32 %v3459, %v3846
      %v3883 = vadd.f32 %v3464, %v3851
      %v3884 = vadd.f32 %v3467, %v3854
      %v3885 = vadd.f32 %v3472, %v3859
      %v3886 = vadd.f32 %v3475, %v3862
      %v3887 = vadd.f32 %v3480, %v3867
      %v3888 = vadd.f32 %v3483, %v3870
      %v3889 = vld [vmem:[%s5] sm:$0x1]
      %v3891 = vlaneseq
      %v3892 = vshrl.u32 %v3891, 7
      %v3893 = vsub.s32 0, %v3892
      %v3894 = vrot.slane %v3889, %v3893
      %v3896 = vmul.f32 %v3873, %v3894
      %v3897 = vmul.f32 %v3874, %v3894
      %v3898 = vmul.f32 %v3875, %v3894
      %v3899 = vmul.f32 %v3876, %v3894
      %v3900 = vmul.f32 %v3877, %v3894
      %v3901 = vmul.f32 %v3878, %v3894
      %v3902 = vmul.f32 %v3879, %v3894
      %v3903 = vmul.f32 %v3880, %v3894
      %v3904 = vmul.f32 %v3881, %v3894
      %v3905 = vmul.f32 %v3882, %v3894
      %v3906 = vmul.f32 %v3883, %v3894
      %v3907 = vmul.f32 %v3884, %v3894
      %v3908 = vmul.f32 %v3885, %v3894
      %v3909 = vmul.f32 %v3886, %v3894
      %v3910 = vmul.f32 %v3887, %v3894
      %v3911 = vmul.f32 %v3888, %v3894
      %v3912 = vld [vmem:[%s6] sm:$0x1]
      %v3914 = vlaneseq
      %v3915 = vshrl.u32 %v3914, 7
      %v3916 = vsub.s32 0, %v3915
      %v3917 = vrot.slane %v3912, %v3916
      %v3919 = vadd.f32 %v3896, %v3917
      %v3920 = vadd.f32 %v3897, %v3917
      %v3921 = vadd.f32 %v3898, %v3917
      %v3922 = vadd.f32 %v3899, %v3917
      %v3923 = vadd.f32 %v3900, %v3917
      %v3924 = vadd.f32 %v3901, %v3917
      %v3925 = vadd.f32 %v3902, %v3917
      %v3926 = vadd.f32 %v3903, %v3917
      %v3927 = vadd.f32 %v3904, %v3917
      %v3928 = vadd.f32 %v3905, %v3917
      %v3929 = vadd.f32 %v3906, %v3917
      %v3930 = vadd.f32 %v3907, %v3917
      %v3931 = vadd.f32 %v3908, %v3917
      %v3932 = vadd.f32 %v3909, %v3917
      %v3933 = vadd.f32 %v3910, %v3917
      %v3934 = vadd.f32 %v3911, %v3917
      %vm3935 = vsmask.f32 3328
      %vm3936 = vsmask.f32 7440
      %vm3937 = vmor %vm3935, %vm3936
      %v3939 = vshrl.u32 %v315, 16
      %v3941 = vrot.slane %v3939, 4
      %v3942 = vshll.u32 %v315, 16
      %v3944 = vrot.slane %v3942, 5
      %v3945 = vor.u32 %v3941, %v3944
      %v3946 = vrot.slane %v3945, 4
      %v3948 = vshll.u32 %v316, 16
      %v3950 = vrot.slane %v3948, 5
      %v3951 = vsel %vm3937, %v3946, %v3950
      %v3952 = vshrl.u32 %v316, 16
      %v3954 = vrot.slane %v3952, 4
      %v3955 = vor.u32 %v3954, %v3950
      %v3956 = vrot.slane %v3955, 4
      %v3958 = vshll.u32 %v317, 16
      %v3960 = vrot.slane %v3958, 5
      %v3961 = vsel %vm3937, %v3956, %v3960
      %v3963 = vshrl.u32 %v318, 16
      %v3965 = vrot.slane %v3963, 4
      %v3966 = vshll.u32 %v318, 16
      %v3968 = vrot.slane %v3966, 5
      %v3969 = vor.u32 %v3965, %v3968
      %v3970 = vrot.slane %v3969, 4
      %v3972 = vshll.u32 %v319, 16
      %v3974 = vrot.slane %v3972, 5
      %v3975 = vsel %vm3937, %v3970, %v3974
      %v3976 = vshrl.u32 %v319, 16
      %v3978 = vrot.slane %v3976, 4
      %v3979 = vor.u32 %v3978, %v3974
      %v3980 = vrot.slane %v3979, 4
      %v3982 = vshll.u32 %v320, 16
      %v3984 = vrot.slane %v3982, 5
      %v3985 = vsel %vm3937, %v3980, %v3984
      %v3987 = vshrl.u32 %v321, 16
      %v3989 = vrot.slane %v3987, 4
      %v3990 = vshll.u32 %v321, 16
      %v3992 = vrot.slane %v3990, 5
      %v3993 = vor.u32 %v3989, %v3992
      %v3994 = vrot.slane %v3993, 4
      %v3996 = vshll.u32 %v322, 16
      %v3998 = vrot.slane %v3996, 5
      %v3999 = vsel %vm3937, %v3994, %v3998
      %v4000 = vshrl.u32 %v322, 16
      %v4002 = vrot.slane %v4000, 4
      %v4003 = vor.u32 %v4002, %v3998
      %v4004 = vrot.slane %v4003, 4
      %v4006 = vshll.u32 %v323, 16
      %v4008 = vrot.slane %v4006, 5
      %v4009 = vsel %vm3937, %v4004, %v4008
      %v4011 = vshrl.u32 %v324, 16
      %v4013 = vrot.slane %v4011, 4
      %v4014 = vshll.u32 %v324, 16
      %v4016 = vrot.slane %v4014, 5
      %v4017 = vor.u32 %v4013, %v4016
      %v4018 = vrot.slane %v4017, 4
      %v4020 = vshll.u32 %v325, 16
      %v4022 = vrot.slane %v4020, 5
      %v4023 = vsel %vm3937, %v4018, %v4022
      %v4024 = vshrl.u32 %v325, 16
      %v4026 = vrot.slane %v4024, 4
      %v4027 = vor.u32 %v4026, %v4022
      %v4028 = vrot.slane %v4027, 4
      %v4030 = vshll.u32 %v326, 16
      %v4032 = vrot.slane %v4030, 5
      %v4033 = vsel %vm3937, %v4028, %v4032
      %v4035 = vshrl.u32 %v327, 16
      %v4037 = vrot.slane %v4035, 4
      %v4038 = vshll.u32 %v327, 16
      %v4040 = vrot.slane %v4038, 5
      %v4041 = vor.u32 %v4037, %v4040
      %v4042 = vrot.slane %v4041, 4
      %v4044 = vshll.u32 %v328, 16
      %v4046 = vrot.slane %v4044, 5
      %v4047 = vsel %vm3937, %v4042, %v4046
      %v4048 = vshrl.u32 %v328, 16
      %v4050 = vrot.slane %v4048, 4
      %v4051 = vor.u32 %v4050, %v4046
      %v4052 = vrot.slane %v4051, 4
      %v4054 = vshll.u32 %v329, 16
      %v4056 = vrot.slane %v4054, 5
      %v4057 = vsel %vm3937, %v4052, %v4056
      %v4059 = vshrl.u32 %v330, 16
      %v4061 = vrot.slane %v4059, 4
      %v4062 = vshll.u32 %v330, 16
      %v4064 = vrot.slane %v4062, 5
      %v4065 = vor.u32 %v4061, %v4064
      %v4066 = vrot.slane %v4065, 4
      %v4068 = vshll.u32 %v331, 16
      %v4070 = vrot.slane %v4068, 5
      %v4071 = vsel %vm3937, %v4066, %v4070
      %v4072 = vshrl.u32 %v331, 16
      %v4074 = vrot.slane %v4072, 4
      %v4075 = vor.u32 %v4074, %v4070
      %v4076 = vrot.slane %v4075, 4
      %v4078 = vshll.u32 %v332, 16
      %v4080 = vrot.slane %v4078, 5
      %v4081 = vsel %vm3937, %v4076, %v4080
      %v4083 = vshrl.u32 %v333, 16
      %v4085 = vrot.slane %v4083, 4
      %v4086 = vshll.u32 %v333, 16
      %v4088 = vrot.slane %v4086, 5
      %v4089 = vor.u32 %v4085, %v4088
      %v4090 = vrot.slane %v4089, 4
      %v4092 = vshll.u32 %v334, 16
      %v4094 = vrot.slane %v4092, 5
      %v4095 = vsel %vm3937, %v4090, %v4094
      %v4096 = vshrl.u32 %v334, 16
      %v4098 = vrot.slane %v4096, 4
      %v4099 = vor.u32 %v4098, %v4094
      %v4100 = vrot.slane %v4099, 4
      %v4102 = vshll.u32 %v335, 16
      %v4104 = vrot.slane %v4102, 5
      %v4105 = vsel %vm3937, %v4100, %v4104
      %v4107 = vshrl.u32 %v336, 16
      %v4109 = vrot.slane %v4107, 4
      %v4110 = vshll.u32 %v336, 16
      %v4112 = vrot.slane %v4110, 5
      %v4113 = vor.u32 %v4109, %v4112
      %v4114 = vrot.slane %v4113, 4
      %v4116 = vshll.u32 %v337, 16
      %v4118 = vrot.slane %v4116, 5
      %v4119 = vsel %vm3937, %v4114, %v4118
      %v4120 = vshrl.u32 %v337, 16
      %v4122 = vrot.slane %v4120, 4
      %v4123 = vor.u32 %v4122, %v4118
      %v4124 = vrot.slane %v4123, 4
      %v4126 = vshll.u32 %v338, 16
      %v4128 = vrot.slane %v4126, 5
      %v4129 = vsel %vm3937, %v4124, %v4128
      %v4146 = vunpack.c.l.bf16 %v3951
      %v4147 = vunpack.c.l.bf16 %v3961
      %v4148 = vunpack.c.l.bf16 %v3975
      %v4149 = vunpack.c.l.bf16 %v3985
      %v4150 = vunpack.c.l.bf16 %v3999
      %v4151 = vunpack.c.l.bf16 %v4009
      %v4152 = vunpack.c.l.bf16 %v4023
      %v4153 = vunpack.c.l.bf16 %v4033
      %v4154 = vunpack.c.l.bf16 %v4047
      %v4155 = vunpack.c.l.bf16 %v4057
      %v4156 = vunpack.c.l.bf16 %v4071
      %v4157 = vunpack.c.l.bf16 %v4081
      %v4158 = vunpack.c.l.bf16 %v4095
      %v4159 = vunpack.c.l.bf16 %v4105
      %v4160 = vunpack.c.l.bf16 %v4119
      %v4161 = vunpack.c.l.bf16 %v4129
      %v4162 = vadd.f32 %v3919, %v4146
      %v4163 = vadd.f32 %v3920, %v4147
      %v4164 = vadd.f32 %v3921, %v4148
      %v4165 = vadd.f32 %v3922, %v4149
      %v4166 = vadd.f32 %v3923, %v4150
      %v4167 = vadd.f32 %v3924, %v4151
      %v4168 = vadd.f32 %v3925, %v4152
      %v4169 = vadd.f32 %v3926, %v4153
      %v4170 = vadd.f32 %v3927, %v4154
      %v4171 = vadd.f32 %v3928, %v4155
      %v4172 = vadd.f32 %v3929, %v4156
      %v4173 = vadd.f32 %v3930, %v4157
      %v4174 = vadd.f32 %v3931, %v4158
      %v4175 = vadd.f32 %v3932, %v4159
      %v4176 = vadd.f32 %v3933, %v4160
      %v4177 = vadd.f32 %v3934, %v4161
      %v4178 = vmax.f32 %v4162, 0.0
      %v4179 = vmax.f32 %v4163, 0.0
      %v4180 = vmax.f32 %v4164, 0.0
      %v4181 = vmax.f32 %v4165, 0.0
      %v4182 = vmax.f32 %v4166, 0.0
      %v4183 = vmax.f32 %v4167, 0.0
      %v4184 = vmax.f32 %v4168, 0.0
      %v4185 = vmax.f32 %v4169, 0.0
      %v4186 = vmax.f32 %v4170, 0.0
      %v4187 = vmax.f32 %v4171, 0.0
      %v4188 = vmax.f32 %v4172, 0.0
      %v4189 = vmax.f32 %v4173, 0.0
      %v4190 = vmax.f32 %v4174, 0.0
      %v4191 = vmax.f32 %v4175, 0.0
      %v4192 = vmax.f32 %v4176, 0.0
      %v4193 = vmax.f32 %v4177, 0.0
      %4194 = vst [vmem:[%s302] sm:$0xff] %v4178
      %4195 = vst [vmem:[%s302 + $0x8] sm:$0xff] %v4179
      %4196 = vst [vmem:[%s302 + $0x10] sm:$0xff] %v4180
      %4197 = vst [vmem:[%s302 + $0x18] sm:$0xff] %v4181
      %4198 = vst [vmem:[%s302 + $0x20] sm:$0xff] %v4182
      %4199 = vst [vmem:[%s302 + $0x28] sm:$0xff] %v4183
      %4200 = vst [vmem:[%s302 + $0x30] sm:$0xff] %v4184
      %4201 = vst [vmem:[%s302 + $0x38] sm:$0xff] %v4185
      %4202 = vst [vmem:[%s302 + $0x40] sm:$0xff] %v4186
      %4203 = vst [vmem:[%s302 + $0x48] sm:$0xff] %v4187
      %4204 = vst [vmem:[%s302 + $0x50] sm:$0xff] %v4188
      %4205 = vst [vmem:[%s302 + $0x58] sm:$0xff] %v4189
      %4206 = vst [vmem:[%s302 + $0x60] sm:$0xff] %v4190
      %4207 = vst [vmem:[%s302 + $0x68] sm:$0xff] %v4191
      %4208 = vst [vmem:[%s302 + $0x70] sm:$0xff] %v4192
      %4209 = vst [vmem:[%s302 + $0x78] sm:$0xff] %v4193
      %s4210 = smul.u32 8, %s23
      %p4211 = scmp.lt.s32.totalorder %s22, 1
      %s4212 = scalar_select %p4211, %s22, 1
      %p4213 = scmp.lt.s32.totalorder %s4210, 15
      %s4214 = scalar_select %p4213, %s4210, 15
      %s4215 = smul.addr %s4214, 2
      %s4216 = smul.addr %s4212, 32
      %s4217 = sadd.s32 %s4215, %s4216
      %s4218 = smul.addr %s4217, 8
      %s4219 = scalar_lea.vmem %s7, %s4218
      // Predicated region
      $region57: #{basic_block_forward.1} parent=47 // pred_check
        %p4220 = pneg %p202
      $region58: #{basic_block_forward.1} parent=47 // pred_check_branch
        %4222 = sbr.rel (%p4220) target = $region60
      $region59: #{basic_block_forward.1} parent=47 // pred_region
        %s4223 = smul.u32 8, %s23
      $region60: #{basic_block_forward.1} parent=47 // pred_fallthru
        _
    $region48: #{basic_block_forward.1} parent=5 // pred_fallthru
      _
    %p4224 = scmp.le.s32.totalorder 2, %s13
    // Predicated region
    $region61: #{basic_block_forward.1} parent=5 // pred_check
      %p4225 = pneg %p4224
    $region62: #{basic_block_forward.1} parent=5 // pred_check_branch
      %4227 = sbr.rel (%p4225) target = $region64
    $region63: #{basic_block_forward.1} parent=5 // pred_region
      %s4228 = ssub.s32 %s13, 2
      // Predicated region
      $region65: #{basic_block_forward.1} parent=63 // pred_check
        %p4229 = pneg %p208
      $region66: #{basic_block_forward.1} parent=63 // pred_check_branch
        %4231 = sbr.rel (%p4229) target = $region68
      $region67: #{basic_block_forward.1} parent=63 // pred_region
        %s4232 = smul.u32 8, %s25
        %p4233 = scmp.lt.s32.totalorder %s24, 1
        %s4234 = scalar_select %p4233, %s24, 1
        %p4235 = scmp.lt.s32.totalorder %s4232, 15
        %s4236 = scalar_select %p4235, %s4232, 15
        %s4237 = smul.addr %s4236, 2
        %s4238 = smul.addr %s4234, 32
        %s4239 = sadd.s32 %s4237, %s4238
        %s4240 = smul.addr %s4239, 8
        %s4241 = scalar_lea.vmem %s7, %s4240
      $region68: #{basic_block_forward.1} parent=63 // pred_fallthru
        _
    $region64: #{basic_block_forward.1} parent=5 // pred_fallthru
      _
  $region6: #{basic_block_forward.1} parent=0 // loop_footer
    %s17 = sadd.s32 1, %s13
  $region7: #{basic_block_forward.1} parent=0 // loop_footer_branch
    %12 = sbr.rel target = $region3
  $region8: #{basic_block_forward.1} parent=0 // loop_exit
    _

</llo_original>
